<compile_context>
chip_gen: v7x
topology: tpu7x:2x2x1
jax: 0.10.0
libtpu: 0.0.40
codegen_flags: <defaults>
</compile_context>

<pallas_src>
import numpy as np

import jax
import jax.numpy as jnp
from jax.experimental import pallas as pl
from jax.experimental.pallas import tpu as pltpu

LATENT = 32
BATCH = 2


# ------------------------------- Pallas kernel ------------------------------


def decoder_kernel(x_ref, w0_ref, b0_ref,
                   a1_ref, d1_ref, a2_ref, d2_ref, a3_ref, d3_ref, a4_ref,
                   out_ref, p1, p2, p3, p4):
    f32 = jnp.float32
    B = x_ref.shape[0]

    def zero_border_rows(p_ref):
        # Only the top/bottom padding rows need explicit zeroing; the left /
        # right zero borders are folded (as zero columns) into the conv
        # matrices and tanh(0) == 0 keeps them zero.
        n_rows, n_lanes = p_ref.shape[1], p_ref.shape[2]
        z = jnp.zeros((B, 1, n_lanes), f32)
        p_ref[:, 0:1, :] = z
        p_ref[:, n_rows - 1:n_rows, :] = z

    def conv_rows(p_ref, a_ref, H):
        # 3x3 "same" conv as 3 matmuls over padded row slabs.
        K = p_ref.shape[2]
        acc = jnp.dot(p_ref[:, 0:H, :].reshape(B * H, K), a_ref[0],
                      preferred_element_type=f32)
        for kh in (1, 2):
            acc = acc + jnp.dot(p_ref[:, kh:kh + H, :].reshape(B * H, K),
                                a_ref[kh], preferred_element_type=f32)
        return acc

    # ---- Tanh -> Linear.  Columns of w0/b0 are pre-permuted on the host so
    #      the result is already the padded HWC row layout of the 4x4x12 map.
    h = jnp.dot(jnp.tanh(x_ref[...]), w0_ref[...],
                preferred_element_type=f32) + b0_ref[...]            # (B, 4*72)
    h = jnp.tanh(h)                                                  # pre-conv1 Tanh
    zero_border_rows(p1)
    for i in range(4):
        p1[:, 1 + i:2 + i, :] = h[:, i * 72:(i + 1) * 72].reshape(B, 1, 72)

    # ---- Conv1 (12->12 on 4x4) + folded 2x upsample -> 8x8x12 ----
    y = jnp.tanh(conv_rows(p1, a1_ref, 4))                           # (B*4, 120)
    y = jnp.dot(d1_ref[...], y, preferred_element_type=f32)          # (B*8, 120)
    zero_border_rows(p2)
    p2[:, 1:9, :] = y.reshape(B, 8, 120)

    # ---- Conv2 (12->12 on 8x8) + folded 2x upsample -> 16x16x12 ----
    y = jnp.tanh(conv_rows(p2, a2_ref, 8))                           # (B*8, 216)
    y = jnp.dot(d2_ref[...], y, preferred_element_type=f32)          # (B*16, 216)
    zero_border_rows(p3)
    p3[:, 1:17, :] = y.reshape(B, 16, 216)

    # ---- Conv3 (12->8 on 16x16) + folded 2x upsample -> 32x32x8 ----
    y = jnp.tanh(conv_rows(p3, a3_ref, 16))                          # (B*16, 272)
    y = jnp.dot(d3_ref[...], y, preferred_element_type=f32)          # (B*32, 272)
    zero_border_rows(p4)
    p4[:, 1:33, :] = y.reshape(B, 32, 272)

    # ---- Conv4 (8->3 on 32x32); columns ordered c*32 + j -> direct NCHW ----
    y = conv_rows(p4, a4_ref, 32)                                    # (B*32, 96)
    for c in range(3):
        out_ref[:, c:c + 1, :, :] = (
            y[:, c * 32:(c + 1) * 32].reshape(B, 1, 32, 32))


# ------------------------------- JAX wrapper ---------------------------------


def _vmem_spec():
    return pl.BlockSpec(memory_space=pltpu.MemorySpace.VMEM)


def decoder_forward(x, params):
    B = x.shape[0]
    return pl.pallas_call(
        decoder_kernel,
        out_shape=jax.ShapeDtypeStruct((B, 3, 32, 32), jnp.float32),
        in_specs=[_vmem_spec() for _ in range(10)],
        out_specs=_vmem_spec(),
        scratch_shapes=[
            pltpu.VMEM((B, 6, 72), jnp.float32),     # padded  4x4x12 map
            pltpu.VMEM((B, 10, 120), jnp.float32),   # padded  8x8x12 map
            pltpu.VMEM((B, 18, 216), jnp.float32),   # padded 16x16x12 map
            pltpu.VMEM((B, 34, 272), jnp.float32),   # padded 32x32x8  map
        ],
    )(x, params["w0"], params["b0"],
      params["a1"], params["d1"],
      params["a2"], params["d2"],
      params["a3"], params["d3"],
      params["a4"])


# ---------------------- Host-side weight preprocessing -----------------------


def _linear_mats(w0_torch, b0_torch):
    """Reorder the Linear(L,192) columns so it directly emits the padded HWC
    rows of the 4x4x12 map: column index = i*72 + j_pad*12 + c, with the
    border columns (j_pad in {0,5}) left at zero."""
    w0 = np.asarray(w0_torch, np.float32)      # (192, L), torch layout
    b0 = np.asarray(b0_torch, np.float32)      # (192,)
    L = w0.shape[1]
    W = np.zeros((L, 4 * 72), np.float32)
    b = np.zeros((1, 4 * 72), np.float32)
    for i in range(4):
        for j in range(4):
            for c in range(12):
                src = c * 16 + i * 4 + j       # torch Reshape(12,4,4) order
                dst = i * 72 + (j + 1) * 12 + c
                W[:, dst] = w0[src, :]
                b[0, dst] = b0[src]
    return jnp.asarray(W), jnp.asarray(b)


def _conv_row_mats(w, width, *, upsample_pad, nchw_cols=False):
    """Per-kh lane matrices for a 3x3 'same' conv acting on padded row slabs
    (lanes = j_pad*Cin + c).

    upsample_pad=True : columns are the NEXT layer's padded rows, i.e. the conv
        result is 2x nearest-upsampled along width and embedded with zero side
        borders -> column (1 + 2*j + dj)*Cout + co.
    upsample_pad=False: final conv; nchw_cols orders columns as co*W + j so the
        kernel can write NCHW directly.
    """
    w = np.asarray(w, np.float32)              # (Cout, Cin, 3, 3), torch layout
    Cout, Cin = w.shape[0], w.shape[1]
    K = (width + 2) * Cin
    N = (2 * width + 2) * Cout if upsample_pad else width * Cout
    A = np.zeros((3, K, N), np.float32)
    for kh in range(3):
        for kw in range(3):
            for j in range(width):
                for c in range(Cin):
                    r = (j + kw) * Cin + c
                    for co in range(Cout):
                        v = w[co, c, kh, kw]
                        if upsample_pad:
                            A[kh, r, (1 + 2 * j) * Cout + co] += v
                            A[kh, r, (2 + 2 * j) * Cout + co] += v
                        elif nchw_cols:
                            A[kh, r, co * width + j] += v
                        else:
                            A[kh, r, j * Cout + co] += v
    return jnp.asarray(A)


def _row_dup_mat(batch, H):
    """0/1 matrix duplicating every image row (2x nearest height upsample)."""
    D = np.zeros((batch * 2 * H, batch * H), np.float32)
    for b in range(batch):
        for i in range(2 * H):
            D[b * 2 * H + i, b * H + i // 2] = 1.0
    return jnp.asarray(D)


def prepare_kernel_params(tp, batch):
    w0, b0 = _linear_mats(tp["w0"], tp["b0"])
    return {
        "w0": w0, "b0": b0,
        "a1": _conv_row_mats(tp["wc1"], 4, upsample_pad=True),
        "a2": _conv_row_mats(tp["wc2"], 8, upsample_pad=True),
        "a3": _conv_row_mats(tp["wc3"], 16, upsample_pad=True),
        "a4": _conv_row_mats(tp["wc4"], 32, upsample_pad=False, nchw_cols=True),
        "d1": _row_dup_mat(batch, 4),
        "d2": _row_dup_mat(batch, 8),
        "d3": _row_dup_mat(batch, 16),
    }


# --------------------------- Parameters & reference --------------------------


def init_torch_params(key, latent):
    ks = jax.random.split(key, 6)

    def u(k, shape, fan_in):
        bound = 1.0 / float(np.sqrt(fan_in))
        return jax.random.uniform(k, shape, jnp.float32, -bound, bound)

    return {
        "w0": u(ks[0], (192, latent), latent),   # torch Linear weight (out,in)
        "b0": u(ks[1], (192,), latent),
        "wc1": u(ks[2], (12, 12, 3, 3), 12 * 9),
        "wc2": u(ks[3], (12, 12, 3, 3), 12 * 9),
        "wc3": u(ks[4], (8, 12, 3, 3), 12 * 9),
        "wc4": u(ks[5], (3, 8, 3, 3), 8 * 9),
    }


def reference_forward(x, tp):
    """Pure-JAX mirror of the PyTorch module (NCHW), high precision."""
    hp = jax.lax.Precision.HIGHEST

    def conv(z, w):
        return jax.lax.conv_general_dilated(
            z, w, window_strides=(1, 1), padding=((1, 1), (1, 1)),
            dimension_numbers=("NCHW", "OIHW", "NCHW"), precision=hp)

    def up(z):
        return jnp.repeat(jnp.repeat(z, 2, axis=2), 2, axis=3)

    h = jnp.tanh(x)
    h = jnp.dot(h, tp["w0"].T, precision=hp) + tp["b0"]
    h = h.reshape(x.shape[0], 12, 4, 4)
    h = up(conv(jnp.tanh(h), tp["wc1"]))
    h = up(conv(jnp.tanh(h), tp["wc2"]))
    h = up(conv(jnp.tanh(h), tp["wc3"]))
    h = conv(jnp.tanh(h), tp["wc4"])
    return h


if __name__ == "__main__":
    key = jax.random.PRNGKey(0)
    kx, kp = jax.random.split(key)
    x = jax.random.normal(kx, (BATCH, LATENT), jnp.float32)

    torch_params = init_torch_params(kp, LATENT)
    params = prepare_kernel_params(torch_params, BATCH)

    fwd = jax.jit(decoder_forward)
    out = jax.block_until_ready(fwd(x, params))

    assert out.shape == (BATCH, 3, 32, 32), out.shape
    assert out.dtype == jnp.float32
    assert bool(jnp.all(jnp.isfinite(out)))

    # Self-check against the PyTorch-equivalent reference (tolerance accounts
    # for MXU accumulation-order / precision differences only).
    ref = reference_forward(x, torch_params)
    err = float(jnp.max(jnp.abs(out - ref)))
    assert err < 1e-2, f"max abs error vs reference: {err}"

    print("KERNEL_OK")
</pallas_src>

<mosaic_0001>
module attributes {stable_mosaic.version = 11 : i64} {
  func.func @decoder_kernel(%arg0: memref<2x32xf32, #tpu.memory_space<vmem>>, %arg1: memref<32x288xf32, #tpu.memory_space<vmem>>, %arg2: memref<1x288xf32, #tpu.memory_space<vmem>>, %arg3: memref<3x72x120xf32, #tpu.memory_space<vmem>>, %arg4: memref<16x8xf32, #tpu.memory_space<vmem>>, %arg5: memref<3x120x216xf32, #tpu.memory_space<vmem>>, %arg6: memref<32x16xf32, #tpu.memory_space<vmem>>, %arg7: memref<3x216x272xf32, #tpu.memory_space<vmem>>, %arg8: memref<64x32xf32, #tpu.memory_space<vmem>>, %arg9: memref<3x272x96xf32, #tpu.memory_space<vmem>>, %arg10: memref<2x3x32x32xf32, #tpu.memory_space<vmem>>, %arg11: memref<2x6x72xf32, #tpu.memory_space<vmem>>, %arg12: memref<2x10x120xf32, #tpu.memory_space<vmem>>, %arg13: memref<2x18x216xf32, #tpu.memory_space<vmem>>, %arg14: memref<2x34x272xf32, #tpu.memory_space<vmem>>) attributes {dimension_semantics = [], scalar_prefetch = 0 : i64, scratch_operands = 4 : i64, tpu.core_type = #tpu.core_type<tc>} {
    %c0 = arith.constant 0 : index
    %c0_0 = arith.constant 0 : index
    %0 = vector.load %arg0[%c0, %c0_0] : memref<2x32xf32, #tpu.memory_space<vmem>>, vector<2x32xf32>
    %1 = math.tanh %0 : vector<2x32xf32>
    %c0_1 = arith.constant 0 : index
    %c0_2 = arith.constant 0 : index
    %2 = vector.load %arg1[%c0_1, %c0_2] : memref<32x288xf32, #tpu.memory_space<vmem>>, vector<32x288xf32>
    %cst = arith.constant dense<0.000000e+00> : vector<2x288xf32>
    %3 = tpu.matmul %1, %2, %cst {dimension_numbers = #tpu.dot_dimension_numbers<[1], [0], [0], [1], [0, 0, 1, 1], [], []>} : vector<2x32xf32>, vector<32x288xf32>, vector<2x288xf32> -> vector<2x288xf32>
    %c0_3 = arith.constant 0 : index
    %c0_4 = arith.constant 0 : index
    %4 = vector.load %arg2[%c0_3, %c0_4] : memref<1x288xf32, #tpu.memory_space<vmem>>, vector<1x288xf32>
    %5 = vector.broadcast %4 : vector<1x288xf32> to vector<2x288xf32>
    %6 = arith.addf %3, %5 : vector<2x288xf32>
    %7 = math.tanh %6 : vector<2x288xf32>
    %cst_5 = arith.constant 0.000000e+00 : f32
    %8 = vector.broadcast %cst_5 : f32 to vector<2x1x72xf32>
    %c0_6 = arith.constant 0 : index
    %c0_7 = arith.constant 0 : index
    %c0_8 = arith.constant 0 : index
    %9 = vector.load %arg11[%c0_6, %c0_7, %c0_8] : memref<2x6x72xf32, #tpu.memory_space<vmem>>, vector<2x1x72xf32>
    tpu.vector_store %arg11[%c0_6, %c0_7, %c0_8], %8 {strides = array<i32>} : memref<2x6x72xf32, #tpu.memory_space<vmem>>, vector<2x1x72xf32>,
    %c0_9 = arith.constant 0 : index
    %c5 = arith.constant 5 : index
    %c0_10 = arith.constant 0 : index
    %10 = vector.load %arg11[%c0_9, %c5, %c0_10] : memref<2x6x72xf32, #tpu.memory_space<vmem>>, vector<2x1x72xf32>
    tpu.vector_store %arg11[%c0_9, %c5, %c0_10], %8 {strides = array<i32>} : memref<2x6x72xf32, #tpu.memory_space<vmem>>, vector<2x1x72xf32>,
    %11 = vector.extract_strided_slice %7 {offsets = [0, 0], sizes = [2, 72], strides = [1, 1]} : vector<2x288xf32> to vector<2x72xf32>
    %12 = vector.shape_cast %11 : vector<2x72xf32> to vector<2x1x72xf32>
    %c0_11 = arith.constant 0 : index
    %c1 = arith.constant 1 : index
    %c0_12 = arith.constant 0 : index
    %13 = vector.load %arg11[%c0_11, %c1, %c0_12] : memref<2x6x72xf32, #tpu.memory_space<vmem>>, vector<2x1x72xf32>
    tpu.vector_store %arg11[%c0_11, %c1, %c0_12], %12 {strides = array<i32>} : memref<2x6x72xf32, #tpu.memory_space<vmem>>, vector<2x1x72xf32>,
    %14 = vector.extract_strided_slice %7 {offsets = [0, 72], sizes = [2, 72], strides = [1, 1]} : vector<2x288xf32> to vector<2x72xf32>
    %15 = vector.shape_cast %14 : vector<2x72xf32> to vector<2x1x72xf32>
    %c0_13 = arith.constant 0 : index
    %c2 = arith.constant 2 : index
    %c0_14 = arith.constant 0 : index
    %16 = vector.load %arg11[%c0_13, %c2, %c0_14] : memref<2x6x72xf32, #tpu.memory_space<vmem>>, vector<2x1x72xf32>
    tpu.vector_store %arg11[%c0_13, %c2, %c0_14], %15 {strides = array<i32>} : memref<2x6x72xf32, #tpu.memory_space<vmem>>, vector<2x1x72xf32>,
    %17 = vector.extract_strided_slice %7 {offsets = [0, 144], sizes = [2, 72], strides = [1, 1]} : vector<2x288xf32> to vector<2x72xf32>
    %18 = vector.shape_cast %17 : vector<2x72xf32> to vector<2x1x72xf32>
    %c0_15 = arith.constant 0 : index
    %c3 = arith.constant 3 : index
    %c0_16 = arith.constant 0 : index
    %19 = vector.load %arg11[%c0_15, %c3, %c0_16] : memref<2x6x72xf32, #tpu.memory_space<vmem>>, vector<2x1x72xf32>
    tpu.vector_store %arg11[%c0_15, %c3, %c0_16], %18 {strides = array<i32>} : memref<2x6x72xf32, #tpu.memory_space<vmem>>, vector<2x1x72xf32>,
    %20 = vector.extract_strided_slice %7 {offsets = [0, 216], sizes = [2, 72], strides = [1, 1]} : vector<2x288xf32> to vector<2x72xf32>
    %21 = vector.shape_cast %20 : vector<2x72xf32> to vector<2x1x72xf32>
    %c0_17 = arith.constant 0 : index
    %c4 = arith.constant 4 : index
    %c0_18 = arith.constant 0 : index
    %22 = vector.load %arg11[%c0_17, %c4, %c0_18] : memref<2x6x72xf32, #tpu.memory_space<vmem>>, vector<2x1x72xf32>
    tpu.vector_store %arg11[%c0_17, %c4, %c0_18], %21 {strides = array<i32>} : memref<2x6x72xf32, #tpu.memory_space<vmem>>, vector<2x1x72xf32>,
    %c0_19 = arith.constant 0 : index
    %c0_20 = arith.constant 0 : index
    %c0_21 = arith.constant 0 : index
    %23 = vector.load %arg11[%c0_19, %c0_20, %c0_21] : memref<2x6x72xf32, #tpu.memory_space<vmem>>, vector<2x4x72xf32>
    %24 = vector.shape_cast %23 : vector<2x4x72xf32> to vector<8x72xf32>
    %c0_22 = arith.constant 0 : index
    %c0_23 = arith.constant 0 : index
    %c0_24 = arith.constant 0 : index
    %25 = vector.load %arg3[%c0_22, %c0_23, %c0_24] : memref<3x72x120xf32, #tpu.memory_space<vmem>>, vector<1x72x120xf32>
    %26 = vector.shape_cast %25 : vector<1x72x120xf32> to vector<72x120xf32>
    %cst_25 = arith.constant dense<0.000000e+00> : vector<8x120xf32>
    %27 = tpu.matmul %24, %26, %cst_25 {dimension_numbers = #tpu.dot_dimension_numbers<[1], [0], [0], [1], [0, 0, 1, 1], [], []>} : vector<8x72xf32>, vector<72x120xf32>, vector<8x120xf32> -> vector<8x120xf32>
    %c0_26 = arith.constant 0 : index
    %c1_27 = arith.constant 1 : index
    %c0_28 = arith.constant 0 : index
    %28 = vector.load %arg11[%c0_26, %c1_27, %c0_28] : memref<2x6x72xf32, #tpu.memory_space<vmem>>, vector<2x4x72xf32>
    %29 = vector.shape_cast %28 : vector<2x4x72xf32> to vector<8x72xf32>
    %c1_29 = arith.constant 1 : index
    %c0_30 = arith.constant 0 : index
    %c0_31 = arith.constant 0 : index
    %30 = vector.load %arg3[%c1_29, %c0_30, %c0_31] : memref<3x72x120xf32, #tpu.memory_space<vmem>>, vector<1x72x120xf32>
    %31 = vector.shape_cast %30 : vector<1x72x120xf32> to vector<72x120xf32>
    %cst_32 = arith.constant dense<0.000000e+00> : vector<8x120xf32>
    %32 = tpu.matmul %29, %31, %cst_32 {dimension_numbers = #tpu.dot_dimension_numbers<[1], [0], [0], [1], [0, 0, 1, 1], [], []>} : vector<8x72xf32>, vector<72x120xf32>, vector<8x120xf32> -> vector<8x120xf32>
    %33 = arith.addf %27, %32 : vector<8x120xf32>
    %c0_33 = arith.constant 0 : index
    %c2_34 = arith.constant 2 : index
    %c0_35 = arith.constant 0 : index
    %34 = vector.load %arg11[%c0_33, %c2_34, %c0_35] : memref<2x6x72xf32, #tpu.memory_space<vmem>>, vector<2x4x72xf32>
    %35 = vector.shape_cast %34 : vector<2x4x72xf32> to vector<8x72xf32>
    %c2_36 = arith.constant 2 : index
    %c0_37 = arith.constant 0 : index
    %c0_38 = arith.constant 0 : index
    %36 = vector.load %arg3[%c2_36, %c0_37, %c0_38] : memref<3x72x120xf32, #tpu.memory_space<vmem>>, vector<1x72x120xf32>
    %37 = vector.shape_cast %36 : vector<1x72x120xf32> to vector<72x120xf32>
    %cst_39 = arith.constant dense<0.000000e+00> : vector<8x120xf32>
    %38 = tpu.matmul %35, %37, %cst_39 {dimension_numbers = #tpu.dot_dimension_numbers<[1], [0], [0], [1], [0, 0, 1, 1], [], []>} : vector<8x72xf32>, vector<72x120xf32>, vector<8x120xf32> -> vector<8x120xf32>
    %39 = arith.addf %33, %38 : vector<8x120xf32>
    %40 = math.tanh %39 : vector<8x120xf32>
    %c0_40 = arith.constant 0 : index
    %c0_41 = arith.constant 0 : index
    %41 = vector.load %arg4[%c0_40, %c0_41] : memref<16x8xf32, #tpu.memory_space<vmem>>, vector<16x8xf32>
    %cst_42 = arith.constant dense<0.000000e+00> : vector<16x120xf32>
    %42 = tpu.matmul %41, %40, %cst_42 {dimension_numbers = #tpu.dot_dimension_numbers<[1], [0], [0], [1], [0, 0, 1, 1], [], []>} : vector<16x8xf32>, vector<8x120xf32>, vector<16x120xf32> -> vector<16x120xf32>
    %cst_43 = arith.constant 0.000000e+00 : f32
    %43 = vector.broadcast %cst_43 : f32 to vector<2x1x120xf32>
    %c0_44 = arith.constant 0 : index
    %c0_45 = arith.constant 0 : index
    %c0_46 = arith.constant 0 : index
    %44 = vector.load %arg12[%c0_44, %c0_45, %c0_46] : memref<2x10x120xf32, #tpu.memory_space<vmem>>, vector<2x1x120xf32>
    tpu.vector_store %arg12[%c0_44, %c0_45, %c0_46], %43 {strides = array<i32>} : memref<2x10x120xf32, #tpu.memory_space<vmem>>, vector<2x1x120xf32>,
    %c0_47 = arith.constant 0 : index
    %c9 = arith.constant 9 : index
    %c0_48 = arith.constant 0 : index
    %45 = vector.load %arg12[%c0_47, %c9, %c0_48] : memref<2x10x120xf32, #tpu.memory_space<vmem>>, vector<2x1x120xf32>
    tpu.vector_store %arg12[%c0_47, %c9, %c0_48], %43 {strides = array<i32>} : memref<2x10x120xf32, #tpu.memory_space<vmem>>, vector<2x1x120xf32>,
    %46 = vector.shape_cast %42 : vector<16x120xf32> to vector<2x8x120xf32>
    %c0_49 = arith.constant 0 : index
    %c1_50 = arith.constant 1 : index
    %c0_51 = arith.constant 0 : index
    %47 = vector.load %arg12[%c0_49, %c1_50, %c0_51] : memref<2x10x120xf32, #tpu.memory_space<vmem>>, vector<2x8x120xf32>
    tpu.vector_store %arg12[%c0_49, %c1_50, %c0_51], %46 {strides = array<i32>} : memref<2x10x120xf32, #tpu.memory_space<vmem>>, vector<2x8x120xf32>,
    %c0_52 = arith.constant 0 : index
    %c0_53 = arith.constant 0 : index
    %c0_54 = arith.constant 0 : index
    %48 = vector.load %arg12[%c0_52, %c0_53, %c0_54] : memref<2x10x120xf32, #tpu.memory_space<vmem>>, vector<2x8x120xf32>
    %49 = vector.shape_cast %48 : vector<2x8x120xf32> to vector<16x120xf32>
    %c0_55 = arith.constant 0 : index
    %c0_56 = arith.constant 0 : index
    %c0_57 = arith.constant 0 : index
    %50 = vector.load %arg5[%c0_55, %c0_56, %c0_57] : memref<3x120x216xf32, #tpu.memory_space<vmem>>, vector<1x120x216xf32>
    %51 = vector.shape_cast %50 : vector<1x120x216xf32> to vector<120x216xf32>
    %cst_58 = arith.constant dense<0.000000e+00> : vector<16x216xf32>
    %52 = tpu.matmul %49, %51, %cst_58 {dimension_numbers = #tpu.dot_dimension_numbers<[1], [0], [0], [1], [0, 0, 1, 1], [], []>} : vector<16x120xf32>, vector<120x216xf32>, vector<16x216xf32> -> vector<16x216xf32>
    %c0_59 = arith.constant 0 : index
    %c1_60 = arith.constant 1 : index
    %c0_61 = arith.constant 0 : index
    %53 = vector.load %arg12[%c0_59, %c1_60, %c0_61] : memref<2x10x120xf32, #tpu.memory_space<vmem>>, vector<2x8x120xf32>
    %54 = vector.shape_cast %53 : vector<2x8x120xf32> to vector<16x120xf32>
    %c1_62 = arith.constant 1 : index
    %c0_63 = arith.constant 0 : index
    %c0_64 = arith.constant 0 : index
    %55 = vector.load %arg5[%c1_62, %c0_63, %c0_64] : memref<3x120x216xf32, #tpu.memory_space<vmem>>, vector<1x120x216xf32>
    %56 = vector.shape_cast %55 : vector<1x120x216xf32> to vector<120x216xf32>
    %cst_65 = arith.constant dense<0.000000e+00> : vector<16x216xf32>
    %57 = tpu.matmul %54, %56, %cst_65 {dimension_numbers = #tpu.dot_dimension_numbers<[1], [0], [0], [1], [0, 0, 1, 1], [], []>} : vector<16x120xf32>, vector<120x216xf32>, vector<16x216xf32> -> vector<16x216xf32>
    %58 = arith.addf %52, %57 : vector<16x216xf32>
    %c0_66 = arith.constant 0 : index
    %c2_67 = arith.constant 2 : index
    %c0_68 = arith.constant 0 : index
    %59 = vector.load %arg12[%c0_66, %c2_67, %c0_68] : memref<2x10x120xf32, #tpu.memory_space<vmem>>, vector<2x8x120xf32>
    %60 = vector.shape_cast %59 : vector<2x8x120xf32> to vector<16x120xf32>
    %c2_69 = arith.constant 2 : index
    %c0_70 = arith.constant 0 : index
    %c0_71 = arith.constant 0 : index
    %61 = vector.load %arg5[%c2_69, %c0_70, %c0_71] : memref<3x120x216xf32, #tpu.memory_space<vmem>>, vector<1x120x216xf32>
    %62 = vector.shape_cast %61 : vector<1x120x216xf32> to vector<120x216xf32>
    %cst_72 = arith.constant dense<0.000000e+00> : vector<16x216xf32>
    %63 = tpu.matmul %60, %62, %cst_72 {dimension_numbers = #tpu.dot_dimension_numbers<[1], [0], [0], [1], [0, 0, 1, 1], [], []>} : vector<16x120xf32>, vector<120x216xf32>, vector<16x216xf32> -> vector<16x216xf32>
    %64 = arith.addf %58, %63 : vector<16x216xf32>
    %65 = math.tanh %64 : vector<16x216xf32>
    %c0_73 = arith.constant 0 : index
    %c0_74 = arith.constant 0 : index
    %66 = vector.load %arg6[%c0_73, %c0_74] : memref<32x16xf32, #tpu.memory_space<vmem>>, vector<32x16xf32>
    %cst_75 = arith.constant dense<0.000000e+00> : vector<32x216xf32>
    %67 = tpu.matmul %66, %65, %cst_75 {dimension_numbers = #tpu.dot_dimension_numbers<[1], [0], [0], [1], [0, 0, 1, 1], [], []>} : vector<32x16xf32>, vector<16x216xf32>, vector<32x216xf32> -> vector<32x216xf32>
    %cst_76 = arith.constant 0.000000e+00 : f32
    %68 = vector.broadcast %cst_76 : f32 to vector<2x1x216xf32>
    %c0_77 = arith.constant 0 : index
    %c0_78 = arith.constant 0 : index
    %c0_79 = arith.constant 0 : index
    %69 = vector.load %arg13[%c0_77, %c0_78, %c0_79] : memref<2x18x216xf32, #tpu.memory_space<vmem>>, vector<2x1x216xf32>
    tpu.vector_store %arg13[%c0_77, %c0_78, %c0_79], %68 {strides = array<i32>} : memref<2x18x216xf32, #tpu.memory_space<vmem>>, vector<2x1x216xf32>,
    %c0_80 = arith.constant 0 : index
    %c17 = arith.constant 17 : index
    %c0_81 = arith.constant 0 : index
    %70 = vector.load %arg13[%c0_80, %c17, %c0_81] : memref<2x18x216xf32, #tpu.memory_space<vmem>>, vector<2x1x216xf32>
    tpu.vector_store %arg13[%c0_80, %c17, %c0_81], %68 {strides = array<i32>} : memref<2x18x216xf32, #tpu.memory_space<vmem>>, vector<2x1x216xf32>,
    %71 = vector.shape_cast %67 : vector<32x216xf32> to vector<2x16x216xf32>
    %c0_82 = arith.constant 0 : index
    %c1_83 = arith.constant 1 : index
    %c0_84 = arith.constant 0 : index
    %72 = vector.load %arg13[%c0_82, %c1_83, %c0_84] : memref<2x18x216xf32, #tpu.memory_space<vmem>>, vector<2x16x216xf32>
    tpu.vector_store %arg13[%c0_82, %c1_83, %c0_84], %71 {strides = array<i32>} : memref<2x18x216xf32, #tpu.memory_space<vmem>>, vector<2x16x216xf32>,
    %c0_85 = arith.constant 0 : index
    %c0_86 = arith.constant 0 : index
    %c0_87 = arith.constant 0 : index
    %73 = vector.load %arg13[%c0_85, %c0_86, %c0_87] : memref<2x18x216xf32, #tpu.memory_space<vmem>>, vector<2x16x216xf32>
    %74 = vector.shape_cast %73 : vector<2x16x216xf32> to vector<32x216xf32>
    %c0_88 = arith.constant 0 : index
    %c0_89 = arith.constant 0 : index
    %c0_90 = arith.constant 0 : index
    %75 = vector.load %arg7[%c0_88, %c0_89, %c0_90] : memref<3x216x272xf32, #tpu.memory_space<vmem>>, vector<1x216x272xf32>
    %76 = vector.shape_cast %75 : vector<1x216x272xf32> to vector<216x272xf32>
    %cst_91 = arith.constant dense<0.000000e+00> : vector<32x272xf32>
    %77 = tpu.matmul %74, %76, %cst_91 {dimension_numbers = #tpu.dot_dimension_numbers<[1], [0], [0], [1], [0, 0, 1, 1], [], []>} : vector<32x216xf32>, vector<216x272xf32>, vector<32x272xf32> -> vector<32x272xf32>
    %c0_92 = arith.constant 0 : index
    %c1_93 = arith.constant 1 : index
    %c0_94 = arith.constant 0 : index
    %78 = vector.load %arg13[%c0_92, %c1_93, %c0_94] : memref<2x18x216xf32, #tpu.memory_space<vmem>>, vector<2x16x216xf32>
    %79 = vector.shape_cast %78 : vector<2x16x216xf32> to vector<32x216xf32>
    %c1_95 = arith.constant 1 : index
    %c0_96 = arith.constant 0 : index
    %c0_97 = arith.constant 0 : index
    %80 = vector.load %arg7[%c1_95, %c0_96, %c0_97] : memref<3x216x272xf32, #tpu.memory_space<vmem>>, vector<1x216x272xf32>
    %81 = vector.shape_cast %80 : vector<1x216x272xf32> to vector<216x272xf32>
    %cst_98 = arith.constant dense<0.000000e+00> : vector<32x272xf32>
    %82 = tpu.matmul %79, %81, %cst_98 {dimension_numbers = #tpu.dot_dimension_numbers<[1], [0], [0], [1], [0, 0, 1, 1], [], []>} : vector<32x216xf32>, vector<216x272xf32>, vector<32x272xf32> -> vector<32x272xf32>
    %83 = arith.addf %77, %82 : vector<32x272xf32>
    %c0_99 = arith.constant 0 : index
    %c2_100 = arith.constant 2 : index
    %c0_101 = arith.constant 0 : index
    %84 = vector.load %arg13[%c0_99, %c2_100, %c0_101] : memref<2x18x216xf32, #tpu.memory_space<vmem>>, vector<2x16x216xf32>
    %85 = vector.shape_cast %84 : vector<2x16x216xf32> to vector<32x216xf32>
    %c2_102 = arith.constant 2 : index
    %c0_103 = arith.constant 0 : index
    %c0_104 = arith.constant 0 : index
    %86 = vector.load %arg7[%c2_102, %c0_103, %c0_104] : memref<3x216x272xf32, #tpu.memory_space<vmem>>, vector<1x216x272xf32>
    %87 = vector.shape_cast %86 : vector<1x216x272xf32> to vector<216x272xf32>
    %cst_105 = arith.constant dense<0.000000e+00> : vector<32x272xf32>
    %88 = tpu.matmul %85, %87, %cst_105 {dimension_numbers = #tpu.dot_dimension_numbers<[1], [0], [0], [1], [0, 0, 1, 1], [], []>} : vector<32x216xf32>, vector<216x272xf32>, vector<32x272xf32> -> vector<32x272xf32>
    %89 = arith.addf %83, %88 : vector<32x272xf32>
    %90 = math.tanh %89 : vector<32x272xf32>
    %c0_106 = arith.constant 0 : index
    %c0_107 = arith.constant 0 : index
    %91 = vector.load %arg8[%c0_106, %c0_107] : memref<64x32xf32, #tpu.memory_space<vmem>>, vector<64x32xf32>
    %cst_108 = arith.constant dense<0.000000e+00> : vector<64x272xf32>
    %92 = tpu.matmul %91, %90, %cst_108 {dimension_numbers = #tpu.dot_dimension_numbers<[1], [0], [0], [1], [0, 0, 1, 1], [], []>} : vector<64x32xf32>, vector<32x272xf32>, vector<64x272xf32> -> vector<64x272xf32>
    %cst_109 = arith.constant 0.000000e+00 : f32
    %93 = vector.broadcast %cst_109 : f32 to vector<2x1x272xf32>
    %c0_110 = arith.constant 0 : index
    %c0_111 = arith.constant 0 : index
    %c0_112 = arith.constant 0 : index
    %94 = vector.load %arg14[%c0_110, %c0_111, %c0_112] : memref<2x34x272xf32, #tpu.memory_space<vmem>>, vector<2x1x272xf32>
    tpu.vector_store %arg14[%c0_110, %c0_111, %c0_112], %93 {strides = array<i32>} : memref<2x34x272xf32, #tpu.memory_space<vmem>>, vector<2x1x272xf32>,
    %c0_113 = arith.constant 0 : index
    %c33 = arith.constant 33 : index
    %c0_114 = arith.constant 0 : index
    %95 = vector.load %arg14[%c0_113, %c33, %c0_114] : memref<2x34x272xf32, #tpu.memory_space<vmem>>, vector<2x1x272xf32>
    tpu.vector_store %arg14[%c0_113, %c33, %c0_114], %93 {strides = array<i32>} : memref<2x34x272xf32, #tpu.memory_space<vmem>>, vector<2x1x272xf32>,
    %96 = vector.shape_cast %92 : vector<64x272xf32> to vector<2x32x272xf32>
    %c0_115 = arith.constant 0 : index
    %c1_116 = arith.constant 1 : index
    %c0_117 = arith.constant 0 : index
    %97 = vector.load %arg14[%c0_115, %c1_116, %c0_117] : memref<2x34x272xf32, #tpu.memory_space<vmem>>, vector<2x32x272xf32>
    tpu.vector_store %arg14[%c0_115, %c1_116, %c0_117], %96 {strides = array<i32>} : memref<2x34x272xf32, #tpu.memory_space<vmem>>, vector<2x32x272xf32>,
    %c0_118 = arith.constant 0 : index
    %c0_119 = arith.constant 0 : index
    %c0_120 = arith.constant 0 : index
    %98 = vector.load %arg14[%c0_118, %c0_119, %c0_120] : memref<2x34x272xf32, #tpu.memory_space<vmem>>, vector<2x32x272xf32>
    %99 = vector.shape_cast %98 : vector<2x32x272xf32> to vector<64x272xf32>
    %c0_121 = arith.constant 0 : index
    %c0_122 = arith.constant 0 : index
    %c0_123 = arith.constant 0 : index
    %100 = vector.load %arg9[%c0_121, %c0_122, %c0_123] : memref<3x272x96xf32, #tpu.memory_space<vmem>>, vector<1x272x96xf32>
    %101 = vector.shape_cast %100 : vector<1x272x96xf32> to vector<272x96xf32>
    %cst_124 = arith.constant dense<0.000000e+00> : vector<64x96xf32>
    %102 = tpu.matmul %99, %101, %cst_124 {dimension_numbers = #tpu.dot_dimension_numbers<[1], [0], [0], [1], [0, 0, 1, 1], [], []>} : vector<64x272xf32>, vector<272x96xf32>, vector<64x96xf32> -> vector<64x96xf32>
    %c0_125 = arith.constant 0 : index
    %c1_126 = arith.constant 1 : index
    %c0_127 = arith.constant 0 : index
    %103 = vector.load %arg14[%c0_125, %c1_126, %c0_127] : memref<2x34x272xf32, #tpu.memory_space<vmem>>, vector<2x32x272xf32>
    %104 = vector.shape_cast %103 : vector<2x32x272xf32> to vector<64x272xf32>
    %c1_128 = arith.constant 1 : index
    %c0_129 = arith.constant 0 : index
    %c0_130 = arith.constant 0 : index
    %105 = vector.load %arg9[%c1_128, %c0_129, %c0_130] : memref<3x272x96xf32, #tpu.memory_space<vmem>>, vector<1x272x96xf32>
    %106 = vector.shape_cast %105 : vector<1x272x96xf32> to vector<272x96xf32>
    %cst_131 = arith.constant dense<0.000000e+00> : vector<64x96xf32>
    %107 = tpu.matmul %104, %106, %cst_131 {dimension_numbers = #tpu.dot_dimension_numbers<[1], [0], [0], [1], [0, 0, 1, 1], [], []>} : vector<64x272xf32>, vector<272x96xf32>, vector<64x96xf32> -> vector<64x96xf32>
    %108 = arith.addf %102, %107 : vector<64x96xf32>
    %c0_132 = arith.constant 0 : index
    %c2_133 = arith.constant 2 : index
    %c0_134 = arith.constant 0 : index
    %109 = vector.load %arg14[%c0_132, %c2_133, %c0_134] : memref<2x34x272xf32, #tpu.memory_space<vmem>>, vector<2x32x272xf32>
    %110 = vector.shape_cast %109 : vector<2x32x272xf32> to vector<64x272xf32>
    %c2_135 = arith.constant 2 : index
    %c0_136 = arith.constant 0 : index
    %c0_137 = arith.constant 0 : index
    %111 = vector.load %arg9[%c2_135, %c0_136, %c0_137] : memref<3x272x96xf32, #tpu.memory_space<vmem>>, vector<1x272x96xf32>
    %112 = vector.shape_cast %111 : vector<1x272x96xf32> to vector<272x96xf32>
    %cst_138 = arith.constant dense<0.000000e+00> : vector<64x96xf32>
    %113 = tpu.matmul %110, %112, %cst_138 {dimension_numbers = #tpu.dot_dimension_numbers<[1], [0], [0], [1], [0, 0, 1, 1], [], []>} : vector<64x272xf32>, vector<272x96xf32>, vector<64x96xf32> -> vector<64x96xf32>
    %114 = arith.addf %108, %113 : vector<64x96xf32>
    %115 = vector.extract_strided_slice %114 {offsets = [0, 0], sizes = [64, 32], strides = [1, 1]} : vector<64x96xf32> to vector<64x32xf32>
    %116 = vector.shape_cast %115 : vector<64x32xf32> to vector<2x1x32x32xf32>
    %c0_139 = arith.constant 0 : index
    %c0_140 = arith.constant 0 : index
    %c0_141 = arith.constant 0 : index
    %c0_142 = arith.constant 0 : index
    %117 = vector.load %arg10[%c0_139, %c0_140, %c0_141, %c0_142] : memref<2x3x32x32xf32, #tpu.memory_space<vmem>>, vector<2x1x32x32xf32>
    tpu.vector_store %arg10[%c0_139, %c0_140, %c0_141, %c0_142], %116 {strides = array<i32>} : memref<2x3x32x32xf32, #tpu.memory_space<vmem>>, vector<2x1x32x32xf32>,
    %118 = vector.extract_strided_slice %114 {offsets = [0, 32], sizes = [64, 32], strides = [1, 1]} : vector<64x96xf32> to vector<64x32xf32>
    %119 = vector.shape_cast %118 : vector<64x32xf32> to vector<2x1x32x32xf32>
    %c0_143 = arith.constant 0 : index
    %c1_144 = arith.constant 1 : index
    %c0_145 = arith.constant 0 : index
    %c0_146 = arith.constant 0 : index
    %120 = vector.load %arg10[%c0_143, %c1_144, %c0_145, %c0_146] : memref<2x3x32x32xf32, #tpu.memory_space<vmem>>, vector<2x1x32x32xf32>
    tpu.vector_store %arg10[%c0_143, %c1_144, %c0_145, %c0_146], %119 {strides = array<i32>} : memref<2x3x32x32xf32, #tpu.memory_space<vmem>>, vector<2x1x32x32xf32>,
    %121 = vector.extract_strided_slice %114 {offsets = [0, 64], sizes = [64, 32], strides = [1, 1]} : vector<64x96xf32> to vector<64x32xf32>
    %122 = vector.shape_cast %121 : vector<64x32xf32> to vector<2x1x32x32xf32>
    %c0_147 = arith.constant 0 : index
    %c2_148 = arith.constant 2 : index
    %c0_149 = arith.constant 0 : index
    %c0_150 = arith.constant 0 : index
    %123 = vector.load %arg10[%c0_147, %c2_148, %c0_149, %c0_150] : memref<2x3x32x32xf32, #tpu.memory_space<vmem>>, vector<2x1x32x32xf32>
    tpu.vector_store %arg10[%c0_147, %c2_148, %c0_149, %c0_150], %122 {strides = array<i32>} : memref<2x3x32x32xf32, #tpu.memory_space<vmem>>, vector<2x1x32x32xf32>,
    return
  }
}

</mosaic_0001>

<llo_original>
// kernel: decoder_forward.1
$region0: #{decoder_forward.1}
  #allocation0 [shape = 'u32[]', space=smem, size = 0x4, offset = 0x4, fixed_abs, tag = 'smem constant byte address 0x4 - core index']
  #allocation1 [shape = 'u32[144,128]{1,0:T(1,128)}', space=vmem, size = 0x12000, scoped, tag = 'internal scratch']
  #allocation2 [shape = 'f32[2,6,72]{2,1,0:T(8,128)}', space=vmem, size = 0x2000, scoped, tag = 'scratch operand']
  #allocation3 [shape = 'f32[2,10,120]{2,1,0:T(8,128)}', space=vmem, size = 0x4000, scoped, tag = 'scratch operand']
  #allocation4 [shape = 'f32[2,18,216]{2,1,0:T(8,128)}', space=vmem, size = 0xc000, scoped, tag = 'scratch operand']
  #allocation5 [shape = 'f32[2,34,272]{2,1,0:T(8,128)}', space=vmem, size = 0x1e000, scoped, tag = 'scratch operand']
  %s0 = inlined_call_operand.vmem [shape: f32[2,32], index: 0, kind: input, shape index: {}]
  %s1 = inlined_call_operand.vmem [shape: f32[32,288], index: 1, kind: input, shape index: {}]
  %s2 = inlined_call_operand.vmem [shape: f32[1,288], index: 2, kind: input, shape index: {}]
  %s3 = inlined_call_operand.vmem [shape: f32[3,72,120], index: 3, kind: input, shape index: {}]
  %s4 = inlined_call_operand.vmem [shape: f32[16,8], index: 4, kind: input, shape index: {}]
  %s5 = inlined_call_operand.vmem [shape: f32[3,120,216], index: 5, kind: input, shape index: {}]
  %s6 = inlined_call_operand.vmem [shape: f32[32,16], index: 6, kind: input, shape index: {}]
  %s7 = inlined_call_operand.vmem [shape: f32[3,216,272], index: 7, kind: input, shape index: {}]
  %s8 = inlined_call_operand.vmem [shape: f32[64,32], index: 8, kind: input, shape index: {}]
  %s9 = inlined_call_operand.vmem [shape: f32[3,272,96], index: 9, kind: input, shape index: {}]
  %s10 = inlined_call_operand.hbm [shape: f32[2,3,32,32], index: 10, kind: output, shape index: {}]
  %s11 = sld [smem:[#allocation0]]
  $region50: #{decoder_forward.1} parent=0
    _
  %s13 = ssub.s32 1, %s11
  %s14 = scalar_select 0, %s13, %s11
  $region1: #{decoder_forward.1} parent=0
    #allocation6 [shape = 'u8[98304]{0}', space=vmem, size = 0x18000, scoped, tag = 'output window, operand 0, single buffered']
    #allocation7 [shape = 's32[1]{0}', space=sflag, size = 0x4, scoped, tag = 'scoped memory for decoder_forward.1']
    %15 = vsyncpa [#allocation7], 0
    // Predicated region
    $region2: #{decoder_forward.1} parent=1 // pred_check
      _
    $region3: #{decoder_forward.1} parent=1 // pred_check_branch
      %17 = sbr.rel (0) target = $region5
    $region4: #{decoder_forward.1} parent=1 // pred_region
      _
    $region5: #{decoder_forward.1} parent=1 // pred_fallthru
      _
    // Predicated region
    $region6: #{decoder_forward.1} parent=1 // pred_check
      _
    $region7: #{decoder_forward.1} parent=1 // pred_check_branch
      %19 = sbr.rel (0) target = $region9
    $region8: #{decoder_forward.1} parent=1 // pred_region
      _
    $region9: #{decoder_forward.1} parent=1 // pred_fallthru
      _
    // Predicated region
    $region10: #{decoder_forward.1} parent=1 // pred_check
      _
    $region11: #{decoder_forward.1} parent=1 // pred_check_branch
      %21 = sbr.rel (0) target = $region13
    $region12: #{decoder_forward.1} parent=1 // pred_region
      _
    $region13: #{decoder_forward.1} parent=1 // pred_fallthru
      _
    // Predicated region
    $region14: #{decoder_forward.1} parent=1 // pred_check
      _
    $region15: #{decoder_forward.1} parent=1 // pred_check_branch
      %23 = sbr.rel (0) target = $region17
    $region16: #{decoder_forward.1} parent=1 // pred_region
      _
    $region17: #{decoder_forward.1} parent=1 // pred_fallthru
      _
    // Predicated region
    $region18: #{decoder_forward.1} parent=1 // pred_check
      _
    $region19: #{decoder_forward.1} parent=1 // pred_check_branch
      %25 = sbr.rel (0) target = $region21
    $region20: #{decoder_forward.1} parent=1 // pred_region
      _
    $region21: #{decoder_forward.1} parent=1 // pred_fallthru
      _
    // Predicated region
    $region22: #{decoder_forward.1} parent=1 // pred_check
      _
    $region23: #{decoder_forward.1} parent=1 // pred_check_branch
      %27 = sbr.rel (0) target = $region25
    $region24: #{decoder_forward.1} parent=1 // pred_region
      _
    $region25: #{decoder_forward.1} parent=1 // pred_fallthru
      _
    // Predicated region
    $region26: #{decoder_forward.1} parent=1 // pred_check
      _
    $region27: #{decoder_forward.1} parent=1 // pred_check_branch
      %29 = sbr.rel (0) target = $region29
    $region28: #{decoder_forward.1} parent=1 // pred_region
      _
    $region29: #{decoder_forward.1} parent=1 // pred_fallthru
      _
    // Predicated region
    $region30: #{decoder_forward.1} parent=1 // pred_check
      _
    $region31: #{decoder_forward.1} parent=1 // pred_check_branch
      %31 = sbr.rel (0) target = $region33
    $region32: #{decoder_forward.1} parent=1 // pred_region
      _
    $region33: #{decoder_forward.1} parent=1 // pred_fallthru
      _
    // Predicated region
    $region34: #{decoder_forward.1} parent=1 // pred_check
      _
    $region35: #{decoder_forward.1} parent=1 // pred_check_branch
      %33 = sbr.rel (0) target = $region37
    $region36: #{decoder_forward.1} parent=1 // pred_region
      _
    $region37: #{decoder_forward.1} parent=1 // pred_fallthru
      _
    // Predicated region
    $region38: #{decoder_forward.1} parent=1 // pred_check
      _
    $region39: #{decoder_forward.1} parent=1 // pred_check_branch
      %35 = sbr.rel (0) target = $region41
    $region40: #{decoder_forward.1} parent=1 // pred_region
      _
    $region41: #{decoder_forward.1} parent=1 // pred_fallthru
      _
    %v36 = vld [vmem:[%s0] sm:$0x3]
    %v37 = vtanh.pop %v36
    %v38 = vld [vmem:[%s1] sm:$0xff]
    %v39 = vld [vmem:[%s1 + $0x8] sm:$0xff]
    %v40 = vld [vmem:[%s1 + $0x10] sm:$0xff]
    %v41 = vld [vmem:[%s1 + $0x18] sm:$0xff]
    %v42 = vld [vmem:[%s1 + $0x20] sm:$0xff]
    %v43 = vld [vmem:[%s1 + $0x28] sm:$0xff]
    %v44 = vld [vmem:[%s1 + $0x30] sm:$0xff]
    %v45 = vld [vmem:[%s1 + $0x38] sm:$0xff]
    %v46 = vld [vmem:[%s1 + $0x40] sm:$0xff]
    %v47 = vld [vmem:[%s1 + $0x48] sm:$0xff]
    %v48 = vld [vmem:[%s1 + $0x50] sm:$0xff]
    %v49 = vld [vmem:[%s1 + $0x58] sm:$0xff]
    %v50 = vld [vmem:[%s2] sm:$0x7]
    %v52 = vlaneseq
    %v53 = vshrl.u32 %v52, 7
    %v54 = vsub.s32 0, %v53
    %v55 = vrot.slane %v50, %v54
    %v56 = vlaneseq
    %v57 = vshrl.u32 %v56, 7
    %v58 = vsub.s32 1, %v57
    %v59 = vrot.slane %v50, %v58
    %v60 = vlaneseq
    %v61 = vshrl.u32 %v60, 7
    %v62 = vsub.s32 2, %v61
    %v63 = vrot.slane %v50, %v62
    %vm67 = vcmask 261120
    %v69 = vsel %vm67, %v37, 0
    %71 = vmatprep.subr.mxu0 %v39
    %72 = vmatpush1.msra.mxu0 %v38
    %73 = vmatprep.subr.mxu0 %v42
    %74 = vmatpush1.msra.mxu0 %v41
    %75 = vmatprep.subr.mxu0 %v45
    %76 = vmatpush1.msra.mxu0 %v44
    %77 = vmatprep.subr.mxu0 %v48
    %78 = vmatpush1.msra.mxu0 %v47
    %79 = vmatprep.subr.mxu0 0.0
    %80 = vmatpush1.msra.mxu0 0.0
    %81 = vmatprep.subr.mxu0 0.0
    %82 = vmatpush1.msra.mxu0 0.0
    %83 = vmatprep.subr.mxu0 0.0
    %84 = vmatpush1.msra.mxu0 0.0
    %85 = vmatprep.subr.mxu0 0.0
    %86 = vmatpush1.msra.mxu0 0.0
    %87 = vmatprep.subr.mxu0 0.0
    %88 = vmatpush1.msra.mxu0 0.0
    %89 = vmatprep.subr.mxu0 0.0
    %90 = vmatpush1.msra.mxu0 0.0
    %91 = vmatprep.subr.mxu0 0.0
    %92 = vmatpush1.msra.mxu0 0.0
    %93 = vmatprep.subr.mxu0 0.0
    %94 = vmatpush1.msra.mxu0 0.0
    %95 = vmatprep.subr.mxu0 0.0
    %96 = vmatpush1.msra.mxu0 0.0
    %97 = vmatprep.subr.mxu0 0.0
    %98 = vmatpush1.msra.mxu0 0.0
    %99 = vmatprep.subr.mxu0 0.0
    %100 = vmatpush1.msra.mxu0 0.0
    %101 = vmatprep.subr.mxu0 0.0
    %102 = vmatpush1.msra.mxu0 0.0
    %103 = vmatprep.subr.mxu0 0.0
    %104 = vmatpush1.msra.mxu0 0.0
    %105 = vmatprep.subr.mxu0 0.0
    %106 = vmatpush1.msra.mxu0 0.0
    %107 = vmatprep.subr.mxu0 0.0
    %108 = vmatpush1.msra.mxu0 0.0
    %109 = vmatprep.subr.mxu0 0.0
    %110 = vmatpush1.msra.mxu0 0.0
    %111 = vmatprep.subr.mxu0 0.0
    %112 = vmatpush1.msra.mxu0 0.0
    %113 = vmatprep.subr.mxu0 0.0
    %114 = vmatpush1.msra.mxu0 0.0
    %115 = vmatprep.subr.mxu0 0.0
    %116 = vmatpush1.msra.mxu0 0.0
    %117 = vmatprep.subr.mxu0 0.0
    %118 = vmatpush1.msra.mxu0 0.0
    %119 = vmatprep.subr.mxu0 0.0
    %120 = vmatpush1.msra.mxu0 0.0
    %121 = vmatprep.subr.mxu0 0.0
    %122 = vmatpush1.msra.mxu0 0.0
    %123 = vmatprep.subr.mxu0 0.0
    %124 = vmatpush1.msra.mxu0 0.0
    %125 = vmatprep.subr.mxu0 0.0
    %126 = vmatpush1.msra.mxu0 0.0
    %127 = vmatprep.subr.mxu0 0.0
    %128 = vmatpush1.msra.mxu0 0.0
    %129 = vmatprep.subr.mxu0 0.0
    %130 = vmatpush1.msra.mxu0 0.0
    %131 = vmatprep.subr.mxu0 0.0
    %132 = vmatpush1.msra.mxu0 0.0
    %133 = vmatprep.subr.mxu0 0.0
    %134 = vmatpush1.msra.mxu0 0.0
    %135 = vmatprep.mubr.f32.mxu0 0.0
    %136 = vmatmul.mubr.f32.gmra.mrb[0].mxu0 %v69
    %v137 = vpop.f32.mrb[0].mxu0
    %v138 = vadd.f32 %v55, %v137
    %v139 = vpop.f32.mrb[0].mxu0
    %v140 = vadd.f32 %v59, %v139
    %141 = vdwg.mxu0
    %142 = vmatprep.subr.mxu0 0.0
    %143 = vmatpush1.msra.mxu0 %v40
    %144 = vmatprep.subr.mxu0 0.0
    %145 = vmatpush1.msra.mxu0 %v43
    %146 = vmatprep.subr.mxu0 0.0
    %147 = vmatpush1.msra.mxu0 %v46
    %148 = vmatprep.subr.mxu0 0.0
    %149 = vmatpush1.msra.mxu0 %v49
    %150 = vmatprep.subr.mxu0 0.0
    %151 = vmatpush1.msra.mxu0 0.0
    %152 = vmatprep.subr.mxu0 0.0
    %153 = vmatpush1.msra.mxu0 0.0
    %154 = vmatprep.subr.mxu0 0.0
    %155 = vmatpush1.msra.mxu0 0.0
    %156 = vmatprep.subr.mxu0 0.0
    %157 = vmatpush1.msra.mxu0 0.0
    %158 = vmatprep.subr.mxu0 0.0
    %159 = vmatpush1.msra.mxu0 0.0
    %160 = vmatprep.subr.mxu0 0.0
    %161 = vmatpush1.msra.mxu0 0.0
    %162 = vmatprep.subr.mxu0 0.0
    %163 = vmatpush1.msra.mxu0 0.0
    %164 = vmatprep.subr.mxu0 0.0
    %165 = vmatpush1.msra.mxu0 0.0
    %166 = vmatprep.subr.mxu0 0.0
    %167 = vmatpush1.msra.mxu0 0.0
    %168 = vmatprep.subr.mxu0 0.0
    %169 = vmatpush1.msra.mxu0 0.0
    %170 = vmatprep.subr.mxu0 0.0
    %171 = vmatpush1.msra.mxu0 0.0
    %172 = vmatprep.subr.mxu0 0.0
    %173 = vmatpush1.msra.mxu0 0.0
    %174 = vmatprep.subr.mxu0 0.0
    %175 = vmatpush1.msra.mxu0 0.0
    %176 = vmatprep.subr.mxu0 0.0
    %177 = vmatpush1.msra.mxu0 0.0
    %178 = vmatprep.subr.mxu0 0.0
    %179 = vmatpush1.msra.mxu0 0.0
    %180 = vmatprep.subr.mxu0 0.0
    %181 = vmatpush1.msra.mxu0 0.0
    %182 = vmatprep.subr.mxu0 0.0
    %183 = vmatpush1.msra.mxu0 0.0
    %184 = vmatprep.subr.mxu0 0.0
    %185 = vmatpush1.msra.mxu0 0.0
    %186 = vmatprep.subr.mxu0 0.0
    %187 = vmatpush1.msra.mxu0 0.0
    %188 = vmatprep.subr.mxu0 0.0
    %189 = vmatpush1.msra.mxu0 0.0
    %190 = vmatprep.subr.mxu0 0.0
    %191 = vmatpush1.msra.mxu0 0.0
    %192 = vmatprep.subr.mxu0 0.0
    %193 = vmatpush1.msra.mxu0 0.0
    %194 = vmatprep.subr.mxu0 0.0
    %195 = vmatpush1.msra.mxu0 0.0
    %196 = vmatprep.subr.mxu0 0.0
    %197 = vmatpush1.msra.mxu0 0.0
    %198 = vmatprep.subr.mxu0 0.0
    %199 = vmatpush1.msra.mxu0 0.0
    %200 = vmatprep.subr.mxu0 0.0
    %201 = vmatpush1.msra.mxu0 0.0
    %202 = vmatprep.subr.mxu0 0.0
    %203 = vmatpush1.msra.mxu0 0.0
    %204 = vmatprep.subr.mxu0 0.0
    %205 = vmatpush1.msra.mxu0 0.0
    %206 = vmatprep.mubr.f32.mxu0 0.0
    %207 = vmatmul.mubr.f32.gmra.mrb[0].mxu0 %v69
    %v208 = vpop.f32.mrb[0].mxu0
    %v209 = vadd.f32 %v63, %v208
    %v210 = vpop.f32.mrb[0].mxu0
    %211 = vdwg.mxu0
    %v212 = vtanh.pop %v138
    %v213 = vtanh.pop %v140
    %v214 = vtanh.pop %v209
    %vm215 = vcmask 581632
    %216 = vst.msk [vmem:[#allocation2] sm:$0x1] %vm215, 0.0
    %217 = vst.msk [vmem:[#allocation2 + $0x8] sm:$0x1] %vm215, 0.0
    %218 = vst.msk [vmem:[#allocation2 + $0x5] sm:$0x1] %vm215, 0.0
    %219 = vst.msk [vmem:[#allocation2 + $0xd] sm:$0x1] %vm215, 0.0
    %v222 = vunpack.c.l.s4 1966171168
    %v223 = vunpack.c.0.s8 %v222
    %v224 = vlaneseq
    %v225 = vshrl.u32 %v224, 7
    %v226 = vsub.s32 %v223, %v225
    %v227 = vrot.slane %v212, %v226
    %v228 = vcombine.high %v227, %v227
    %v230 = vunpack.c.l.s4 1966171168
    %v231 = vunpack.c.0.s8 %v230
    %v232 = vlaneseq
    %v233 = vshrl.u32 %v232, 7
    %v234 = vsub.s32 %v231, %v233
    %v235 = vrot.slane %v227, %v234
    %v237 = vunpack.c.l.s4 1966171168
    %v238 = vunpack.c.0.s8 %v237
    %v239 = vlaneseq
    %v240 = vshrl.u32 %v239, 7
    %v241 = vsub.s32 %v238, %v240
    %v242 = vrot.slane %v228, %v241
    %245 = vst.msk [vmem:[#allocation2 + $0x1] sm:$0x1] %vm215, %v235
    %246 = vst.msk [vmem:[#allocation2 + $0x9] sm:$0x1] %vm215, %v242
    %v248 = vcombine.low %v212, %v213
    %v250 = vunpack.c.l.s4 1966171168
    %v251 = vunpack.c.0.s8 %v250
    %v252 = vlaneseq
    %v253 = vshrl.u32 %v252, 7
    %v254 = vsub.s32 %v251, %v253
    %v255 = vrot.slane %v248, %v254
    %v256 = vcombine.high %v255, %v255
    %v258 = vunpack.c.l.s4 1966171168
    %v259 = vunpack.c.0.s8 %v258
    %v260 = vlaneseq
    %v261 = vshrl.u32 %v260, 7
    %v262 = vsub.s32 %v259, %v261
    %v263 = vrot.slane %v255, %v262
    %v265 = vunpack.c.l.s4 1966171168
    %v266 = vunpack.c.0.s8 %v265
    %v267 = vlaneseq
    %v268 = vshrl.u32 %v267, 7
    %v269 = vsub.s32 %v266, %v268
    %v270 = vrot.slane %v256, %v269
    %v271 = vlaneseq
    %v272 = vshrl.u32 %v271, 7
    %v273 = vsub.s32 0, %v272
    %v274 = vrot.slane %v263, %v273
    %v275 = vlaneseq
    %v276 = vshrl.u32 %v275, 7
    %v277 = vsub.s32 1, %v276
    %v278 = vrot.slane %v263, %v277
    %v279 = vlaneseq
    %v280 = vshrl.u32 %v279, 7
    %v281 = vsub.s32 0, %v280
    %v282 = vrot.slane %v270, %v281
    %v283 = vlaneseq
    %v284 = vshrl.u32 %v283, 7
    %v285 = vsub.s32 1, %v284
    %v286 = vrot.slane %v270, %v285
    %287 = vrot.lane.b32.xlu0 %v274, 56
    %v288 = vpop.permute.xlu0 %287
    %289 = vrot.lane.b32.xlu0 %v278, 56
    %v290 = vpop.permute.xlu0 %289
    %291 = vrot.lane.b32.xlu0 %v282, 56
    %v292 = vpop.permute.xlu0 %291
    %293 = vrot.lane.b32.xlu0 %v286, 56
    %v294 = vpop.permute.xlu0 %293
    %vm295 = vcmask 457728
    %v296 = vsel %vm295, %v288, %v290
    %v297 = vsel %vm295, %v292, %v294
    %300 = vst.msk [vmem:[#allocation2 + $0x2] sm:$0x1] %vm215, %v296
    %301 = vst.msk [vmem:[#allocation2 + $0xa] sm:$0x1] %vm215, %v297
    %v303 = vunpack.c.l.s4 1966171168
    %v304 = vunpack.c.0.s8 %v303
    %v305 = vlaneseq
    %v306 = vshrl.u32 %v305, 7
    %v307 = vsub.s32 %v304, %v306
    %v308 = vrot.slane %v213, %v307
    %v309 = vcombine.high %v308, %v308
    %v311 = vunpack.c.l.s4 1966171168
    %v312 = vunpack.c.0.s8 %v311
    %v313 = vlaneseq
    %v314 = vshrl.u32 %v313, 7
    %v315 = vsub.s32 %v312, %v314
    %v316 = vrot.slane %v308, %v315
    %v318 = vunpack.c.l.s4 1966171168
    %v319 = vunpack.c.0.s8 %v318
    %v320 = vlaneseq
    %v321 = vshrl.u32 %v320, 7
    %v322 = vsub.s32 %v319, %v321
    %v323 = vrot.slane %v309, %v322
    %v324 = vlaneseq
    %v325 = vshrl.u32 %v324, 7
    %v326 = vsub.s32 0, %v325
    %v327 = vrot.slane %v316, %v326
    %v328 = vlaneseq
    %v329 = vshrl.u32 %v328, 7
    %v330 = vsub.s32 0, %v329
    %v331 = vrot.slane %v323, %v330
    %332 = vrot.lane.b32.xlu0 %v327, 112
    %v333 = vpop.permute.xlu0 %332
    %334 = vrot.lane.b32.xlu0 %v331, 112
    %v335 = vpop.permute.xlu0 %334
    %338 = vst.msk [vmem:[#allocation2 + $0x3] sm:$0x1] %vm215, %v333
    %339 = vst.msk [vmem:[#allocation2 + $0xb] sm:$0x1] %vm215, %v335
    %v341 = vcombine.low %v213, %v214
    %v343 = vunpack.c.l.s4 1966171168
    %v344 = vunpack.c.0.s8 %v343
    %v345 = vlaneseq
    %v346 = vshrl.u32 %v345, 7
    %v347 = vsub.s32 %v344, %v346
    %v348 = vrot.slane %v341, %v347
    %v349 = vcombine.high %v348, %v348
    %v351 = vunpack.c.l.s4 1966171168
    %v352 = vunpack.c.0.s8 %v351
    %v353 = vlaneseq
    %v354 = vshrl.u32 %v353, 7
    %v355 = vsub.s32 %v352, %v354
    %v356 = vrot.slane %v348, %v355
    %v358 = vunpack.c.l.s4 1966171168
    %v359 = vunpack.c.0.s8 %v358
    %v360 = vlaneseq
    %v361 = vshrl.u32 %v360, 7
    %v362 = vsub.s32 %v359, %v361
    %v363 = vrot.slane %v349, %v362
    %v364 = vlaneseq
    %v365 = vshrl.u32 %v364, 7
    %v366 = vsub.s32 0, %v365
    %v367 = vrot.slane %v356, %v366
    %v368 = vlaneseq
    %v369 = vshrl.u32 %v368, 7
    %v370 = vsub.s32 1, %v369
    %v371 = vrot.slane %v356, %v370
    %v372 = vlaneseq
    %v373 = vshrl.u32 %v372, 7
    %v374 = vsub.s32 0, %v373
    %v375 = vrot.slane %v363, %v374
    %v376 = vlaneseq
    %v377 = vshrl.u32 %v376, 7
    %v378 = vsub.s32 1, %v377
    %v379 = vrot.slane %v363, %v378
    %380 = vrot.lane.b32.xlu0 %v367, 40
    %v381 = vpop.permute.xlu0 %380
    %382 = vrot.lane.b32.xlu0 %v371, 40
    %v383 = vpop.permute.xlu0 %382
    %384 = vrot.lane.b32.xlu0 %v375, 40
    %v385 = vpop.permute.xlu0 %384
    %386 = vrot.lane.b32.xlu0 %v379, 40
    %v387 = vpop.permute.xlu0 %386
    %vm388 = vcmask 326656
    %v389 = vsel %vm388, %v381, %v383
    %v390 = vsel %vm388, %v385, %v387
    %393 = vst.msk [vmem:[#allocation2 + $0x4] sm:$0x1] %vm215, %v389
    %394 = vst.msk [vmem:[#allocation2 + $0xc] sm:$0x1] %vm215, %v390
    %v395 = vld [vmem:[#allocation2] sm:$0xf]
    %v396 = vld [vmem:[#allocation2 + $0x8] sm:$0xf]
    %v397 = vld [vmem:[%s3] sm:$0xff]
    %v398 = vld [vmem:[%s3 + $0x8] sm:$0xff]
    %v399 = vld [vmem:[%s3 + $0x10] sm:$0xff]
    %v400 = vld [vmem:[%s3 + $0x18] sm:$0xff]
    %v401 = vld [vmem:[%s3 + $0x20] sm:$0xff]
    %v402 = vld [vmem:[%s3 + $0x28] sm:$0xff]
    %v403 = vld [vmem:[%s3 + $0x30] sm:$0xff]
    %v404 = vld [vmem:[%s3 + $0x38] sm:$0xff]
    %v405 = vld [vmem:[%s3 + $0x40] sm:$0xff]
    %v406 = vld [vmem:[#allocation2 + $0x1] sm:$0xf]
    %v407 = vld [vmem:[#allocation2 + $0x9] sm:$0xf]
    %s408 = scalar_lea.vmem %s3, 72
    %v409 = vld [vmem:[%s408] sm:$0xff]
    %v410 = vld [vmem:[%s408 + $0x8] sm:$0xff]
    %v411 = vld [vmem:[%s408 + $0x10] sm:$0xff]
    %v412 = vld [vmem:[%s408 + $0x18] sm:$0xff]
    %v413 = vld [vmem:[%s408 + $0x20] sm:$0xff]
    %v414 = vld [vmem:[%s408 + $0x28] sm:$0xff]
    %v415 = vld [vmem:[%s408 + $0x30] sm:$0xff]
    %v416 = vld [vmem:[%s408 + $0x38] sm:$0xff]
    %v417 = vld [vmem:[%s408 + $0x40] sm:$0xff]
    %v420 = vcombine.low %v406, %v407
    %vm421 = vcmask 588800
    %v422 = vsel %vm421, %v420, 0
    %424 = vmatprep.subr.mxu0 0.0
    %425 = vmatpush1.msra.mxu0 %v409
    %426 = vmatprep.subr.mxu0 0.0
    %427 = vmatpush1.msra.mxu0 %v410
    %428 = vmatprep.subr.mxu0 0.0
    %429 = vmatpush1.msra.mxu0 %v411
    %430 = vmatprep.subr.mxu0 0.0
    %431 = vmatpush1.msra.mxu0 %v412
    %432 = vmatprep.subr.mxu0 0.0
    %433 = vmatpush1.msra.mxu0 %v413
    %434 = vmatprep.subr.mxu0 0.0
    %435 = vmatpush1.msra.mxu0 %v414
    %436 = vmatprep.subr.mxu0 0.0
    %437 = vmatpush1.msra.mxu0 %v415
    %438 = vmatprep.subr.mxu0 0.0
    %439 = vmatpush1.msra.mxu0 %v416
    %440 = vmatprep.subr.mxu0 0.0
    %441 = vmatpush1.msra.mxu0 %v417
    %442 = vmatprep.subr.mxu0 0.0
    %443 = vmatpush1.msra.mxu0 0.0
    %444 = vmatprep.subr.mxu0 0.0
    %445 = vmatpush1.msra.mxu0 0.0
    %446 = vmatprep.subr.mxu0 0.0
    %447 = vmatpush1.msra.mxu0 0.0
    %448 = vmatprep.subr.mxu0 0.0
    %449 = vmatpush1.msra.mxu0 0.0
    %450 = vmatprep.subr.mxu0 0.0
    %451 = vmatpush1.msra.mxu0 0.0
    %452 = vmatprep.subr.mxu0 0.0
    %453 = vmatpush1.msra.mxu0 0.0
    %454 = vmatprep.subr.mxu0 0.0
    %455 = vmatpush1.msra.mxu0 0.0
    %456 = vmatprep.subr.mxu0 0.0
    %457 = vmatpush1.msra.mxu0 0.0
    %458 = vmatprep.subr.mxu0 0.0
    %459 = vmatpush1.msra.mxu0 0.0
    %460 = vmatprep.subr.mxu0 0.0
    %461 = vmatpush1.msra.mxu0 0.0
    %462 = vmatprep.subr.mxu0 0.0
    %463 = vmatpush1.msra.mxu0 0.0
    %464 = vmatprep.subr.mxu0 0.0
    %465 = vmatpush1.msra.mxu0 0.0
    %466 = vmatprep.subr.mxu0 0.0
    %467 = vmatpush1.msra.mxu0 0.0
    %468 = vmatprep.subr.mxu0 0.0
    %469 = vmatpush1.msra.mxu0 0.0
    %470 = vmatprep.subr.mxu0 0.0
    %471 = vmatpush1.msra.mxu0 0.0
    %472 = vmatprep.subr.mxu0 0.0
    %473 = vmatpush1.msra.mxu0 0.0
    %474 = vmatprep.subr.mxu0 0.0
    %475 = vmatpush1.msra.mxu0 0.0
    %476 = vmatprep.subr.mxu0 0.0
    %477 = vmatpush1.msra.mxu0 0.0
    %478 = vmatprep.subr.mxu0 0.0
    %479 = vmatpush1.msra.mxu0 0.0
    %480 = vmatprep.subr.mxu0 0.0
    %481 = vmatpush1.msra.mxu0 0.0
    %482 = vmatprep.subr.mxu0 0.0
    %483 = vmatpush1.msra.mxu0 0.0
    %484 = vmatprep.subr.mxu0 0.0
    %485 = vmatpush1.msra.mxu0 0.0
    %486 = vmatprep.subr.mxu0 0.0
    %487 = vmatpush1.msra.mxu0 0.0
    %488 = vmatprep.mubr.f32.mxu0 0.0
    %489 = vmatmul.mubr.f32.gmra.mrb[0].mxu0 %v422
    %v490 = vpop.f32.mrb[0].mxu0
    %v491 = vadd.f32 0.0, %v490
    %v492 = vpop.f32.mrb[0].mxu0
    %493 = vdwg.mxu0
    %v496 = vcombine.low %v395, %v396
    %v497 = vsel %vm421, %v496, 0
    %499 = vmatprep.subr.mxu0 0.0
    %500 = vmatpush1.msra.mxu0 %v397
    %501 = vmatprep.subr.mxu0 0.0
    %502 = vmatpush1.msra.mxu0 %v398
    %503 = vmatprep.subr.mxu0 0.0
    %504 = vmatpush1.msra.mxu0 %v399
    %505 = vmatprep.subr.mxu0 0.0
    %506 = vmatpush1.msra.mxu0 %v400
    %507 = vmatprep.subr.mxu0 0.0
    %508 = vmatpush1.msra.mxu0 %v401
    %509 = vmatprep.subr.mxu0 0.0
    %510 = vmatpush1.msra.mxu0 %v402
    %511 = vmatprep.subr.mxu0 0.0
    %512 = vmatpush1.msra.mxu0 %v403
    %513 = vmatprep.subr.mxu0 0.0
    %514 = vmatpush1.msra.mxu0 %v404
    %515 = vmatprep.subr.mxu0 0.0
    %516 = vmatpush1.msra.mxu0 %v405
    %517 = vmatprep.subr.mxu0 0.0
    %518 = vmatpush1.msra.mxu0 0.0
    %519 = vmatprep.subr.mxu0 0.0
    %520 = vmatpush1.msra.mxu0 0.0
    %521 = vmatprep.subr.mxu0 0.0
    %522 = vmatpush1.msra.mxu0 0.0
    %523 = vmatprep.subr.mxu0 0.0
    %524 = vmatpush1.msra.mxu0 0.0
    %525 = vmatprep.subr.mxu0 0.0
    %526 = vmatpush1.msra.mxu0 0.0
    %527 = vmatprep.subr.mxu0 0.0
    %528 = vmatpush1.msra.mxu0 0.0
    %529 = vmatprep.subr.mxu0 0.0
    %530 = vmatpush1.msra.mxu0 0.0
    %531 = vmatprep.subr.mxu0 0.0
    %532 = vmatpush1.msra.mxu0 0.0
    %533 = vmatprep.subr.mxu0 0.0
    %534 = vmatpush1.msra.mxu0 0.0
    %535 = vmatprep.subr.mxu0 0.0
    %536 = vmatpush1.msra.mxu0 0.0
    %537 = vmatprep.subr.mxu0 0.0
    %538 = vmatpush1.msra.mxu0 0.0
    %539 = vmatprep.subr.mxu0 0.0
    %540 = vmatpush1.msra.mxu0 0.0
    %541 = vmatprep.subr.mxu0 0.0
    %542 = vmatpush1.msra.mxu0 0.0
    %543 = vmatprep.subr.mxu0 0.0
    %544 = vmatpush1.msra.mxu0 0.0
    %545 = vmatprep.subr.mxu0 0.0
    %546 = vmatpush1.msra.mxu0 0.0
    %547 = vmatprep.subr.mxu0 0.0
    %548 = vmatpush1.msra.mxu0 0.0
    %549 = vmatprep.subr.mxu0 0.0
    %550 = vmatpush1.msra.mxu0 0.0
    %551 = vmatprep.subr.mxu0 0.0
    %552 = vmatpush1.msra.mxu0 0.0
    %553 = vmatprep.subr.mxu0 0.0
    %554 = vmatpush1.msra.mxu0 0.0
    %555 = vmatprep.subr.mxu0 0.0
    %556 = vmatpush1.msra.mxu0 0.0
    %557 = vmatprep.subr.mxu0 0.0
    %558 = vmatpush1.msra.mxu0 0.0
    %559 = vmatprep.subr.mxu0 0.0
    %560 = vmatpush1.msra.mxu0 0.0
    %561 = vmatprep.subr.mxu0 0.0
    %562 = vmatpush1.msra.mxu0 0.0
    %563 = vmatprep.mubr.f32.mxu0 0.0
    %564 = vmatmul.mubr.f32.gmra.mrb[0].mxu0 %v497
    %v565 = vpop.f32.mrb[0].mxu0
    %v566 = vadd.f32 %v491, %v565
    %v567 = vpop.f32.mrb[0].mxu0
    %568 = vdwg.mxu0
    %v569 = vld [vmem:[#allocation2 + $0x2] sm:$0xf]
    %v570 = vld [vmem:[#allocation2 + $0xa] sm:$0xf]
    %s571 = scalar_lea.vmem %s3, 144
    %v572 = vld [vmem:[%s571] sm:$0xff]
    %v573 = vld [vmem:[%s571 + $0x8] sm:$0xff]
    %v574 = vld [vmem:[%s571 + $0x10] sm:$0xff]
    %v575 = vld [vmem:[%s571 + $0x18] sm:$0xff]
    %v576 = vld [vmem:[%s571 + $0x20] sm:$0xff]
    %v577 = vld [vmem:[%s571 + $0x28] sm:$0xff]
    %v578 = vld [vmem:[%s571 + $0x30] sm:$0xff]
    %v579 = vld [vmem:[%s571 + $0x38] sm:$0xff]
    %v580 = vld [vmem:[%s571 + $0x40] sm:$0xff]
    %v583 = vcombine.low %v569, %v570
    %v584 = vsel %vm421, %v583, 0
    %586 = vmatprep.subr.mxu0 0.0
    %587 = vmatpush1.msra.mxu0 %v572
    %588 = vmatprep.subr.mxu0 0.0
    %589 = vmatpush1.msra.mxu0 %v573
    %590 = vmatprep.subr.mxu0 0.0
    %591 = vmatpush1.msra.mxu0 %v574
    %592 = vmatprep.subr.mxu0 0.0
    %593 = vmatpush1.msra.mxu0 %v575
    %594 = vmatprep.subr.mxu0 0.0
    %595 = vmatpush1.msra.mxu0 %v576
    %596 = vmatprep.subr.mxu0 0.0
    %597 = vmatpush1.msra.mxu0 %v577
    %598 = vmatprep.subr.mxu0 0.0
    %599 = vmatpush1.msra.mxu0 %v578
    %600 = vmatprep.subr.mxu0 0.0
    %601 = vmatpush1.msra.mxu0 %v579
    %602 = vmatprep.subr.mxu0 0.0
    %603 = vmatpush1.msra.mxu0 %v580
    %604 = vmatprep.subr.mxu0 0.0
    %605 = vmatpush1.msra.mxu0 0.0
    %606 = vmatprep.subr.mxu0 0.0
    %607 = vmatpush1.msra.mxu0 0.0
    %608 = vmatprep.subr.mxu0 0.0
    %609 = vmatpush1.msra.mxu0 0.0
    %610 = vmatprep.subr.mxu0 0.0
    %611 = vmatpush1.msra.mxu0 0.0
    %612 = vmatprep.subr.mxu0 0.0
    %613 = vmatpush1.msra.mxu0 0.0
    %614 = vmatprep.subr.mxu0 0.0
    %615 = vmatpush1.msra.mxu0 0.0
    %616 = vmatprep.subr.mxu0 0.0
    %617 = vmatpush1.msra.mxu0 0.0
    %618 = vmatprep.subr.mxu0 0.0
    %619 = vmatpush1.msra.mxu0 0.0
    %620 = vmatprep.subr.mxu0 0.0
    %621 = vmatpush1.msra.mxu0 0.0
    %622 = vmatprep.subr.mxu0 0.0
    %623 = vmatpush1.msra.mxu0 0.0
    %624 = vmatprep.subr.mxu0 0.0
    %625 = vmatpush1.msra.mxu0 0.0
    %626 = vmatprep.subr.mxu0 0.0
    %627 = vmatpush1.msra.mxu0 0.0
    %628 = vmatprep.subr.mxu0 0.0
    %629 = vmatpush1.msra.mxu0 0.0
    %630 = vmatprep.subr.mxu0 0.0
    %631 = vmatpush1.msra.mxu0 0.0
    %632 = vmatprep.subr.mxu0 0.0
    %633 = vmatpush1.msra.mxu0 0.0
    %634 = vmatprep.subr.mxu0 0.0
    %635 = vmatpush1.msra.mxu0 0.0
    %636 = vmatprep.subr.mxu0 0.0
    %637 = vmatpush1.msra.mxu0 0.0
    %638 = vmatprep.subr.mxu0 0.0
    %639 = vmatpush1.msra.mxu0 0.0
    %640 = vmatprep.subr.mxu0 0.0
    %641 = vmatpush1.msra.mxu0 0.0
    %642 = vmatprep.subr.mxu0 0.0
    %643 = vmatpush1.msra.mxu0 0.0
    %644 = vmatprep.subr.mxu0 0.0
    %645 = vmatpush1.msra.mxu0 0.0
    %646 = vmatprep.subr.mxu0 0.0
    %647 = vmatpush1.msra.mxu0 0.0
    %648 = vmatprep.subr.mxu0 0.0
    %649 = vmatpush1.msra.mxu0 0.0
    %650 = vmatprep.mubr.f32.mxu0 0.0
    %651 = vmatmul.mubr.f32.gmra.mrb[0].mxu0 %v584
    %v652 = vpop.f32.mrb[0].mxu0
    %v653 = vadd.f32 0.0, %v652
    %v654 = vpop.f32.mrb[0].mxu0
    %655 = vdwg.mxu0
    %v656 = vadd.f32 %v566, %v653
    %v657 = vtanh.pop %v656
    %v658 = vld [vmem:[%s4] sm:$0xff]
    %v659 = vld [vmem:[%s4 + $0x8] sm:$0xff]
    %vm660 = vcmask 64512
    %v662 = vsel %vm660, %v658, 0
    %v665 = vsel %vm660, %v659, 0
    %667 = vmatprep.subr.mxu0 0.0
    %668 = vmatpush1.msra.mxu0 %v657
    %669 = vmatprep.subr.mxu0 0.0
    %670 = vmatpush1.msra.mxu0 0.0
    %671 = vmatprep.subr.mxu0 0.0
    %672 = vmatpush1.msra.mxu0 0.0
    %673 = vmatprep.subr.mxu0 0.0
    %674 = vmatpush1.msra.mxu0 0.0
    %675 = vmatprep.subr.mxu0 0.0
    %676 = vmatpush1.msra.mxu0 0.0
    %677 = vmatprep.subr.mxu0 0.0
    %678 = vmatpush1.msra.mxu0 0.0
    %679 = vmatprep.subr.mxu0 0.0
    %680 = vmatpush1.msra.mxu0 0.0
    %681 = vmatprep.subr.mxu0 0.0
    %682 = vmatpush1.msra.mxu0 0.0
    %683 = vmatprep.subr.mxu0 0.0
    %684 = vmatpush1.msra.mxu0 0.0
    %685 = vmatprep.subr.mxu0 0.0
    %686 = vmatpush1.msra.mxu0 0.0
    %687 = vmatprep.subr.mxu0 0.0
    %688 = vmatpush1.msra.mxu0 0.0
    %689 = vmatprep.subr.mxu0 0.0
    %690 = vmatpush1.msra.mxu0 0.0
    %691 = vmatprep.subr.mxu0 0.0
    %692 = vmatpush1.msra.mxu0 0.0
    %693 = vmatprep.subr.mxu0 0.0
    %694 = vmatpush1.msra.mxu0 0.0
    %695 = vmatprep.subr.mxu0 0.0
    %696 = vmatpush1.msra.mxu0 0.0
    %697 = vmatprep.subr.mxu0 0.0
    %698 = vmatpush1.msra.mxu0 0.0
    %699 = vmatprep.subr.mxu0 0.0
    %700 = vmatpush1.msra.mxu0 0.0
    %701 = vmatprep.subr.mxu0 0.0
    %702 = vmatpush1.msra.mxu0 0.0
    %703 = vmatprep.subr.mxu0 0.0
    %704 = vmatpush1.msra.mxu0 0.0
    %705 = vmatprep.subr.mxu0 0.0
    %706 = vmatpush1.msra.mxu0 0.0
    %707 = vmatprep.subr.mxu0 0.0
    %708 = vmatpush1.msra.mxu0 0.0
    %709 = vmatprep.subr.mxu0 0.0
    %710 = vmatpush1.msra.mxu0 0.0
    %711 = vmatprep.subr.mxu0 0.0
    %712 = vmatpush1.msra.mxu0 0.0
    %713 = vmatprep.subr.mxu0 0.0
    %714 = vmatpush1.msra.mxu0 0.0
    %715 = vmatprep.subr.mxu0 0.0
    %716 = vmatpush1.msra.mxu0 0.0
    %717 = vmatprep.subr.mxu0 0.0
    %718 = vmatpush1.msra.mxu0 0.0
    %719 = vmatprep.subr.mxu0 0.0
    %720 = vmatpush1.msra.mxu0 0.0
    %721 = vmatprep.subr.mxu0 0.0
    %722 = vmatpush1.msra.mxu0 0.0
    %723 = vmatprep.subr.mxu0 0.0
    %724 = vmatpush1.msra.mxu0 0.0
    %725 = vmatprep.subr.mxu0 0.0
    %726 = vmatpush1.msra.mxu0 0.0
    %727 = vmatprep.subr.mxu0 0.0
    %728 = vmatpush1.msra.mxu0 0.0
    %729 = vmatprep.subr.mxu0 0.0
    %730 = vmatpush1.msra.mxu0 0.0
    %731 = vmatprep.mubr.f32.mxu0 0.0
    %732 = vmatmul.mubr.f32.gmra.mrb[0].mxu0 %v662
    %v733 = vpop.f32.mrb[0].mxu0
    %v734 = vadd.f32 0.0, %v733
    %v735 = vpop.f32.mrb[0].mxu0
    %736 = vmatprep.mubr.f32.mxu0 0.0
    %737 = vmatmul.mubr.f32.gmra.mrb[0].mxu0 %v665
    %v738 = vpop.f32.mrb[0].mxu0
    %v739 = vadd.f32 0.0, %v738
    %v740 = vpop.f32.mrb[0].mxu0
    %741 = vdwg.mxu0
    %vm742 = vcmask 974848
    %743 = vst.msk [vmem:[#allocation3] sm:$0x1] %vm742, 0.0
    %744 = vst.msk [vmem:[#allocation3 + $0x10] sm:$0x1] %vm742, 0.0
    %745 = vst.msk [vmem:[#allocation3 + $0x9] sm:$0x1] %vm742, 0.0
    %746 = vst.msk [vmem:[#allocation3 + $0x19] sm:$0x1] %vm742, 0.0
    %vm747 = vcmask 982016
    %748 = vst.msk [vmem:[#allocation3 + $0x1] sm:$0xff] %vm747, %v734
    %749 = vst.msk [vmem:[#allocation3 + $0x11] sm:$0xff] %vm747, %v739
    %v750 = vld [vmem:[#allocation3] sm:$0xff]
    %v751 = vld [vmem:[#allocation3 + $0x10] sm:$0xff]
    %v752 = vld [vmem:[%s5] sm:$0xff]
    %v753 = vld [vmem:[%s5 + $0x8] sm:$0xff]
    %v754 = vld [vmem:[%s5 + $0x10] sm:$0xff]
    %v755 = vld [vmem:[%s5 + $0x18] sm:$0xff]
    %v756 = vld [vmem:[%s5 + $0x20] sm:$0xff]
    %v757 = vld [vmem:[%s5 + $0x28] sm:$0xff]
    %v758 = vld [vmem:[%s5 + $0x30] sm:$0xff]
    %v759 = vld [vmem:[%s5 + $0x38] sm:$0xff]
    %v760 = vld [vmem:[%s5 + $0x40] sm:$0xff]
    %v761 = vld [vmem:[%s5 + $0x48] sm:$0xff]
    %v762 = vld [vmem:[%s5 + $0x50] sm:$0xff]
    %v763 = vld [vmem:[%s5 + $0x58] sm:$0xff]
    %v764 = vld [vmem:[%s5 + $0x60] sm:$0xff]
    %v765 = vld [vmem:[%s5 + $0x68] sm:$0xff]
    %v766 = vld [vmem:[%s5 + $0x70] sm:$0xff]
    %v767 = vld [vmem:[%s5 + $0x78] sm:$0xff]
    %v768 = vld [vmem:[%s5 + $0x80] sm:$0xff]
    %v769 = vld [vmem:[%s5 + $0x88] sm:$0xff]
    %v770 = vld [vmem:[%s5 + $0x90] sm:$0xff]
    %v771 = vld [vmem:[%s5 + $0x98] sm:$0xff]
    %v772 = vld [vmem:[%s5 + $0xa0] sm:$0xff]
    %v773 = vld [vmem:[%s5 + $0xa8] sm:$0xff]
    %v774 = vld [vmem:[%s5 + $0xb0] sm:$0xff]
    %v775 = vld [vmem:[%s5 + $0xb8] sm:$0xff]
    %v776 = vld [vmem:[%s5 + $0xc0] sm:$0xff]
    %v777 = vld [vmem:[%s5 + $0xc8] sm:$0xff]
    %v778 = vld [vmem:[%s5 + $0xd0] sm:$0xff]
    %v779 = vld [vmem:[%s5 + $0xd8] sm:$0xff]
    %v780 = vld [vmem:[%s5 + $0xe0] sm:$0xff]
    %v781 = vld [vmem:[%s5 + $0xe8] sm:$0xff]
    %v782 = vld [vmem:[#allocation3 + $0x1] sm:$0xff]
    %v783 = vld [vmem:[#allocation3 + $0x11] sm:$0xff]
    %s784 = scalar_lea.vmem %s5, 240
    %v785 = vld [vmem:[%s784] sm:$0xff]
    %v786 = vld [vmem:[%s784 + $0x8] sm:$0xff]
    %v787 = vld [vmem:[%s784 + $0x10] sm:$0xff]
    %v788 = vld [vmem:[%s784 + $0x18] sm:$0xff]
    %v789 = vld [vmem:[%s784 + $0x20] sm:$0xff]
    %v790 = vld [vmem:[%s784 + $0x28] sm:$0xff]
    %v791 = vld [vmem:[%s784 + $0x30] sm:$0xff]
    %v792 = vld [vmem:[%s784 + $0x38] sm:$0xff]
    %v793 = vld [vmem:[%s784 + $0x40] sm:$0xff]
    %v794 = vld [vmem:[%s784 + $0x48] sm:$0xff]
    %v795 = vld [vmem:[%s784 + $0x50] sm:$0xff]
    %v796 = vld [vmem:[%s784 + $0x58] sm:$0xff]
    %v797 = vld [vmem:[%s784 + $0x60] sm:$0xff]
    %v798 = vld [vmem:[%s784 + $0x68] sm:$0xff]
    %v799 = vld [vmem:[%s784 + $0x70] sm:$0xff]
    %v800 = vld [vmem:[%s784 + $0x78] sm:$0xff]
    %v801 = vld [vmem:[%s784 + $0x80] sm:$0xff]
    %v802 = vld [vmem:[%s784 + $0x88] sm:$0xff]
    %v803 = vld [vmem:[%s784 + $0x90] sm:$0xff]
    %v804 = vld [vmem:[%s784 + $0x98] sm:$0xff]
    %v805 = vld [vmem:[%s784 + $0xa0] sm:$0xff]
    %v806 = vld [vmem:[%s784 + $0xa8] sm:$0xff]
    %v807 = vld [vmem:[%s784 + $0xb0] sm:$0xff]
    %v808 = vld [vmem:[%s784 + $0xb8] sm:$0xff]
    %v809 = vld [vmem:[%s784 + $0xc0] sm:$0xff]
    %v810 = vld [vmem:[%s784 + $0xc8] sm:$0xff]
    %v811 = vld [vmem:[%s784 + $0xd0] sm:$0xff]
    %v812 = vld [vmem:[%s784 + $0xd8] sm:$0xff]
    %v813 = vld [vmem:[%s784 + $0xe0] sm:$0xff]
    %v814 = vld [vmem:[%s784 + $0xe8] sm:$0xff]
    %v816 = vsel %vm747, %v782, 0
    %v819 = vsel %vm747, %v783, 0
    %821 = vmatprep.subr.mxu0 %v786
    %822 = vmatpush1.msra.mxu0 %v785
    %823 = vmatprep.subr.mxu0 %v788
    %824 = vmatpush1.msra.mxu0 %v787
    %825 = vmatprep.subr.mxu0 %v790
    %826 = vmatpush1.msra.mxu0 %v789
    %827 = vmatprep.subr.mxu0 %v792
    %828 = vmatpush1.msra.mxu0 %v791
    %829 = vmatprep.subr.mxu0 %v794
    %830 = vmatpush1.msra.mxu0 %v793
    %831 = vmatprep.subr.mxu0 %v796
    %832 = vmatpush1.msra.mxu0 %v795
    %833 = vmatprep.subr.mxu0 %v798
    %834 = vmatpush1.msra.mxu0 %v797
    %835 = vmatprep.subr.mxu0 %v800
    %836 = vmatpush1.msra.mxu0 %v799
    %837 = vmatprep.subr.mxu0 %v802
    %838 = vmatpush1.msra.mxu0 %v801
    %839 = vmatprep.subr.mxu0 %v804
    %840 = vmatpush1.msra.mxu0 %v803
    %841 = vmatprep.subr.mxu0 %v806
    %842 = vmatpush1.msra.mxu0 %v805
    %843 = vmatprep.subr.mxu0 %v808
    %844 = vmatpush1.msra.mxu0 %v807
    %845 = vmatprep.subr.mxu0 %v810
    %846 = vmatpush1.msra.mxu0 %v809
    %847 = vmatprep.subr.mxu0 %v812
    %848 = vmatpush1.msra.mxu0 %v811
    %849 = vmatprep.subr.mxu0 %v814
    %850 = vmatpush1.msra.mxu0 %v813
    %851 = vmatprep.subr.mxu0 0.0
    %852 = vmatpush1.msra.mxu0 0.0
    %853 = vmatprep.subr.mxu0 0.0
    %854 = vmatpush1.msra.mxu0 0.0
    %855 = vmatprep.subr.mxu0 0.0
    %856 = vmatpush1.msra.mxu0 0.0
    %857 = vmatprep.subr.mxu0 0.0
    %858 = vmatpush1.msra.mxu0 0.0
    %859 = vmatprep.subr.mxu0 0.0
    %860 = vmatpush1.msra.mxu0 0.0
    %861 = vmatprep.subr.mxu0 0.0
    %862 = vmatpush1.msra.mxu0 0.0
    %863 = vmatprep.subr.mxu0 0.0
    %864 = vmatpush1.msra.mxu0 0.0
    %865 = vmatprep.subr.mxu0 0.0
    %866 = vmatpush1.msra.mxu0 0.0
    %867 = vmatprep.subr.mxu0 0.0
    %868 = vmatpush1.msra.mxu0 0.0
    %869 = vmatprep.subr.mxu0 0.0
    %870 = vmatpush1.msra.mxu0 0.0
    %871 = vmatprep.subr.mxu0 0.0
    %872 = vmatpush1.msra.mxu0 0.0
    %873 = vmatprep.subr.mxu0 0.0
    %874 = vmatpush1.msra.mxu0 0.0
    %875 = vmatprep.subr.mxu0 0.0
    %876 = vmatpush1.msra.mxu0 0.0
    %877 = vmatprep.subr.mxu0 0.0
    %878 = vmatpush1.msra.mxu0 0.0
    %879 = vmatprep.subr.mxu0 0.0
    %880 = vmatpush1.msra.mxu0 0.0
    %881 = vmatprep.subr.mxu0 0.0
    %882 = vmatpush1.msra.mxu0 0.0
    %883 = vmatprep.subr.mxu0 0.0
    %884 = vmatpush1.msra.mxu0 0.0
    %885 = vmatprep.mubr.f32.mxu0 0.0
    %886 = vmatmul.mubr.f32.gmra.mrb[0].mxu0 %v816
    %v887 = vpop.f32.mrb[0].mxu0
    %v888 = vadd.f32 0.0, %v887
    %v889 = vpop.f32.mrb[0].mxu0
    %v890 = vadd.f32 0.0, %v889
    %891 = vmatprep.mubr.f32.mxu0 0.0
    %892 = vmatmul.mubr.f32.gmra.mrb[0].mxu0 %v819
    %v893 = vpop.f32.mrb[0].mxu0
    %v894 = vadd.f32 0.0, %v893
    %v895 = vpop.f32.mrb[0].mxu0
    %v896 = vadd.f32 0.0, %v895
    %897 = vdwg.mxu0
    %v899 = vsel %vm747, %v750, 0
    %v902 = vsel %vm747, %v751, 0
    %904 = vmatprep.subr.mxu0 %v753
    %905 = vmatpush1.msra.mxu0 %v752
    %906 = vmatprep.subr.mxu0 %v755
    %907 = vmatpush1.msra.mxu0 %v754
    %908 = vmatprep.subr.mxu0 %v757
    %909 = vmatpush1.msra.mxu0 %v756
    %910 = vmatprep.subr.mxu0 %v759
    %911 = vmatpush1.msra.mxu0 %v758
    %912 = vmatprep.subr.mxu0 %v761
    %913 = vmatpush1.msra.mxu0 %v760
    %914 = vmatprep.subr.mxu0 %v763
    %915 = vmatpush1.msra.mxu0 %v762
    %916 = vmatprep.subr.mxu0 %v765
    %917 = vmatpush1.msra.mxu0 %v764
    %918 = vmatprep.subr.mxu0 %v767
    %919 = vmatpush1.msra.mxu0 %v766
    %920 = vmatprep.subr.mxu0 %v769
    %921 = vmatpush1.msra.mxu0 %v768
    %922 = vmatprep.subr.mxu0 %v771
    %923 = vmatpush1.msra.mxu0 %v770
    %924 = vmatprep.subr.mxu0 %v773
    %925 = vmatpush1.msra.mxu0 %v772
    %926 = vmatprep.subr.mxu0 %v775
    %927 = vmatpush1.msra.mxu0 %v774
    %928 = vmatprep.subr.mxu0 %v777
    %929 = vmatpush1.msra.mxu0 %v776
    %930 = vmatprep.subr.mxu0 %v779
    %931 = vmatpush1.msra.mxu0 %v778
    %932 = vmatprep.subr.mxu0 %v781
    %933 = vmatpush1.msra.mxu0 %v780
    %934 = vmatprep.subr.mxu0 0.0
    %935 = vmatpush1.msra.mxu0 0.0
    %936 = vmatprep.subr.mxu0 0.0
    %937 = vmatpush1.msra.mxu0 0.0
    %938 = vmatprep.subr.mxu0 0.0
    %939 = vmatpush1.msra.mxu0 0.0
    %940 = vmatprep.subr.mxu0 0.0
    %941 = vmatpush1.msra.mxu0 0.0
    %942 = vmatprep.subr.mxu0 0.0
    %943 = vmatpush1.msra.mxu0 0.0
    %944 = vmatprep.subr.mxu0 0.0
    %945 = vmatpush1.msra.mxu0 0.0
    %946 = vmatprep.subr.mxu0 0.0
    %947 = vmatpush1.msra.mxu0 0.0
    %948 = vmatprep.subr.mxu0 0.0
    %949 = vmatpush1.msra.mxu0 0.0
    %950 = vmatprep.subr.mxu0 0.0
    %951 = vmatpush1.msra.mxu0 0.0
    %952 = vmatprep.subr.mxu0 0.0
    %953 = vmatpush1.msra.mxu0 0.0
    %954 = vmatprep.subr.mxu0 0.0
    %955 = vmatpush1.msra.mxu0 0.0
    %956 = vmatprep.subr.mxu0 0.0
    %957 = vmatpush1.msra.mxu0 0.0
    %958 = vmatprep.subr.mxu0 0.0
    %959 = vmatpush1.msra.mxu0 0.0
    %960 = vmatprep.subr.mxu0 0.0
    %961 = vmatpush1.msra.mxu0 0.0
    %962 = vmatprep.subr.mxu0 0.0
    %963 = vmatpush1.msra.mxu0 0.0
    %964 = vmatprep.subr.mxu0 0.0
    %965 = vmatpush1.msra.mxu0 0.0
    %966 = vmatprep.subr.mxu0 0.0
    %967 = vmatpush1.msra.mxu0 0.0
    %968 = vmatprep.mubr.f32.mxu0 0.0
    %969 = vmatmul.mubr.f32.gmra.mrb[0].mxu0 %v899
    %v970 = vpop.f32.mrb[0].mxu0
    %v971 = vadd.f32 %v888, %v970
    %v972 = vpop.f32.mrb[0].mxu0
    %v973 = vadd.f32 %v890, %v972
    %974 = vmatprep.mubr.f32.mxu0 0.0
    %975 = vmatmul.mubr.f32.gmra.mrb[0].mxu0 %v902
    %v976 = vpop.f32.mrb[0].mxu0
    %v977 = vadd.f32 %v894, %v976
    %v978 = vpop.f32.mrb[0].mxu0
    %v979 = vadd.f32 %v896, %v978
    %980 = vdwg.mxu0
    %v981 = vld [vmem:[#allocation3 + $0x2] sm:$0xff]
    %v982 = vld [vmem:[#allocation3 + $0x12] sm:$0xff]
    %s983 = scalar_lea.vmem %s5, 480
    %v984 = vld [vmem:[%s983] sm:$0xff]
    %v985 = vld [vmem:[%s983 + $0x8] sm:$0xff]
    %v986 = vld [vmem:[%s983 + $0x10] sm:$0xff]
    %v987 = vld [vmem:[%s983 + $0x18] sm:$0xff]
    %v988 = vld [vmem:[%s983 + $0x20] sm:$0xff]
    %v989 = vld [vmem:[%s983 + $0x28] sm:$0xff]
    %v990 = vld [vmem:[%s983 + $0x30] sm:$0xff]
    %v991 = vld [vmem:[%s983 + $0x38] sm:$0xff]
    %v992 = vld [vmem:[%s983 + $0x40] sm:$0xff]
    %v993 = vld [vmem:[%s983 + $0x48] sm:$0xff]
    %v994 = vld [vmem:[%s983 + $0x50] sm:$0xff]
    %v995 = vld [vmem:[%s983 + $0x58] sm:$0xff]
    %v996 = vld [vmem:[%s983 + $0x60] sm:$0xff]
    %v997 = vld [vmem:[%s983 + $0x68] sm:$0xff]
    %v998 = vld [vmem:[%s983 + $0x70] sm:$0xff]
    %v999 = vld [vmem:[%s983 + $0x78] sm:$0xff]
    %v1000 = vld [vmem:[%s983 + $0x80] sm:$0xff]
    %v1001 = vld [vmem:[%s983 + $0x88] sm:$0xff]
    %v1002 = vld [vmem:[%s983 + $0x90] sm:$0xff]
    %v1003 = vld [vmem:[%s983 + $0x98] sm:$0xff]
    %v1004 = vld [vmem:[%s983 + $0xa0] sm:$0xff]
    %v1005 = vld [vmem:[%s983 + $0xa8] sm:$0xff]
    %v1006 = vld [vmem:[%s983 + $0xb0] sm:$0xff]
    %v1007 = vld [vmem:[%s983 + $0xb8] sm:$0xff]
    %v1008 = vld [vmem:[%s983 + $0xc0] sm:$0xff]
    %v1009 = vld [vmem:[%s983 + $0xc8] sm:$0xff]
    %v1010 = vld [vmem:[%s983 + $0xd0] sm:$0xff]
    %v1011 = vld [vmem:[%s983 + $0xd8] sm:$0xff]
    %v1012 = vld [vmem:[%s983 + $0xe0] sm:$0xff]
    %v1013 = vld [vmem:[%s983 + $0xe8] sm:$0xff]
    %v1015 = vsel %vm747, %v981, 0
    %v1018 = vsel %vm747, %v982, 0
    %1020 = vmatprep.subr.mxu0 %v985
    %1021 = vmatpush1.msra.mxu0 %v984
    %1022 = vmatprep.subr.mxu0 %v987
    %1023 = vmatpush1.msra.mxu0 %v986
    %1024 = vmatprep.subr.mxu0 %v989
    %1025 = vmatpush1.msra.mxu0 %v988
    %1026 = vmatprep.subr.mxu0 %v991
    %1027 = vmatpush1.msra.mxu0 %v990
    %1028 = vmatprep.subr.mxu0 %v993
    %1029 = vmatpush1.msra.mxu0 %v992
    %1030 = vmatprep.subr.mxu0 %v995
    %1031 = vmatpush1.msra.mxu0 %v994
    %1032 = vmatprep.subr.mxu0 %v997
    %1033 = vmatpush1.msra.mxu0 %v996
    %1034 = vmatprep.subr.mxu0 %v999
    %1035 = vmatpush1.msra.mxu0 %v998
    %1036 = vmatprep.subr.mxu0 %v1001
    %1037 = vmatpush1.msra.mxu0 %v1000
    %1038 = vmatprep.subr.mxu0 %v1003
    %1039 = vmatpush1.msra.mxu0 %v1002
    %1040 = vmatprep.subr.mxu0 %v1005
    %1041 = vmatpush1.msra.mxu0 %v1004
    %1042 = vmatprep.subr.mxu0 %v1007
    %1043 = vmatpush1.msra.mxu0 %v1006
    %1044 = vmatprep.subr.mxu0 %v1009
    %1045 = vmatpush1.msra.mxu0 %v1008
    %1046 = vmatprep.subr.mxu0 %v1011
    %1047 = vmatpush1.msra.mxu0 %v1010
    %1048 = vmatprep.subr.mxu0 %v1013
    %1049 = vmatpush1.msra.mxu0 %v1012
    %1050 = vmatprep.subr.mxu0 0.0
    %1051 = vmatpush1.msra.mxu0 0.0
    %1052 = vmatprep.subr.mxu0 0.0
    %1053 = vmatpush1.msra.mxu0 0.0
    %1054 = vmatprep.subr.mxu0 0.0
    %1055 = vmatpush1.msra.mxu0 0.0
    %1056 = vmatprep.subr.mxu0 0.0
    %1057 = vmatpush1.msra.mxu0 0.0
    %1058 = vmatprep.subr.mxu0 0.0
    %1059 = vmatpush1.msra.mxu0 0.0
    %1060 = vmatprep.subr.mxu0 0.0
    %1061 = vmatpush1.msra.mxu0 0.0
    %1062 = vmatprep.subr.mxu0 0.0
    %1063 = vmatpush1.msra.mxu0 0.0
    %1064 = vmatprep.subr.mxu0 0.0
    %1065 = vmatpush1.msra.mxu0 0.0
    %1066 = vmatprep.subr.mxu0 0.0
    %1067 = vmatpush1.msra.mxu0 0.0
    %1068 = vmatprep.subr.mxu0 0.0
    %1069 = vmatpush1.msra.mxu0 0.0
    %1070 = vmatprep.subr.mxu0 0.0
    %1071 = vmatpush1.msra.mxu0 0.0
    %1072 = vmatprep.subr.mxu0 0.0
    %1073 = vmatpush1.msra.mxu0 0.0
    %1074 = vmatprep.subr.mxu0 0.0
    %1075 = vmatpush1.msra.mxu0 0.0
    %1076 = vmatprep.subr.mxu0 0.0
    %1077 = vmatpush1.msra.mxu0 0.0
    %1078 = vmatprep.subr.mxu0 0.0
    %1079 = vmatpush1.msra.mxu0 0.0
    %1080 = vmatprep.subr.mxu0 0.0
    %1081 = vmatpush1.msra.mxu0 0.0
    %1082 = vmatprep.subr.mxu0 0.0
    %1083 = vmatpush1.msra.mxu0 0.0
    %1084 = vmatprep.mubr.f32.mxu0 0.0
    %1085 = vmatmul.mubr.f32.gmra.mrb[0].mxu0 %v1015
    %v1086 = vpop.f32.mrb[0].mxu0
    %v1087 = vadd.f32 0.0, %v1086
    %v1088 = vpop.f32.mrb[0].mxu0
    %v1089 = vadd.f32 0.0, %v1088
    %1090 = vmatprep.mubr.f32.mxu0 0.0
    %1091 = vmatmul.mubr.f32.gmra.mrb[0].mxu0 %v1018
    %v1092 = vpop.f32.mrb[0].mxu0
    %v1093 = vadd.f32 0.0, %v1092
    %v1094 = vpop.f32.mrb[0].mxu0
    %v1095 = vadd.f32 0.0, %v1094
    %1096 = vdwg.mxu0
    %v1097 = vadd.f32 %v971, %v1087
    %v1098 = vadd.f32 %v973, %v1089
    %v1099 = vadd.f32 %v977, %v1093
    %v1100 = vadd.f32 %v979, %v1095
    %v1101 = vtanh.pop %v1097
    %v1102 = vtanh.pop %v1098
    %v1103 = vtanh.pop %v1099
    %v1104 = vtanh.pop %v1100
    %v1105 = vld [vmem:[%s6] sm:$0xff]
    %v1106 = vld [vmem:[%s6 + $0x8] sm:$0xff]
    %v1107 = vld [vmem:[%s6 + $0x10] sm:$0xff]
    %v1108 = vld [vmem:[%s6 + $0x18] sm:$0xff]
    %vm1109 = vcmask 130048
    %v1111 = vsel %vm1109, %v1105, 0
    %v1114 = vsel %vm1109, %v1106, 0
    %v1117 = vsel %vm1109, %v1107, 0
    %v1120 = vsel %vm1109, %v1108, 0
    %1122 = vmatprep.subr.mxu0 %v1102
    %1123 = vmatpush1.msra.mxu0 %v1101
    %1124 = vmatprep.subr.mxu0 %v1104
    %1125 = vmatpush1.msra.mxu0 %v1103
    %1126 = vmatprep.subr.mxu0 0.0
    %1127 = vmatpush1.msra.mxu0 0.0
    %1128 = vmatprep.subr.mxu0 0.0
    %1129 = vmatpush1.msra.mxu0 0.0
    %1130 = vmatprep.subr.mxu0 0.0
    %1131 = vmatpush1.msra.mxu0 0.0
    %1132 = vmatprep.subr.mxu0 0.0
    %1133 = vmatpush1.msra.mxu0 0.0
    %1134 = vmatprep.subr.mxu0 0.0
    %1135 = vmatpush1.msra.mxu0 0.0
    %1136 = vmatprep.subr.mxu0 0.0
    %1137 = vmatpush1.msra.mxu0 0.0
    %1138 = vmatprep.subr.mxu0 0.0
    %1139 = vmatpush1.msra.mxu0 0.0
    %1140 = vmatprep.subr.mxu0 0.0
    %1141 = vmatpush1.msra.mxu0 0.0
    %1142 = vmatprep.subr.mxu0 0.0
    %1143 = vmatpush1.msra.mxu0 0.0
    %1144 = vmatprep.subr.mxu0 0.0
    %1145 = vmatpush1.msra.mxu0 0.0
    %1146 = vmatprep.subr.mxu0 0.0
    %1147 = vmatpush1.msra.mxu0 0.0
    %1148 = vmatprep.subr.mxu0 0.0
    %1149 = vmatpush1.msra.mxu0 0.0
    %1150 = vmatprep.subr.mxu0 0.0
    %1151 = vmatpush1.msra.mxu0 0.0
    %1152 = vmatprep.subr.mxu0 0.0
    %1153 = vmatpush1.msra.mxu0 0.0
    %1154 = vmatprep.subr.mxu0 0.0
    %1155 = vmatpush1.msra.mxu0 0.0
    %1156 = vmatprep.subr.mxu0 0.0
    %1157 = vmatpush1.msra.mxu0 0.0
    %1158 = vmatprep.subr.mxu0 0.0
    %1159 = vmatpush1.msra.mxu0 0.0
    %1160 = vmatprep.subr.mxu0 0.0
    %1161 = vmatpush1.msra.mxu0 0.0
    %1162 = vmatprep.subr.mxu0 0.0
    %1163 = vmatpush1.msra.mxu0 0.0
    %1164 = vmatprep.subr.mxu0 0.0
    %1165 = vmatpush1.msra.mxu0 0.0
    %1166 = vmatprep.subr.mxu0 0.0
    %1167 = vmatpush1.msra.mxu0 0.0
    %1168 = vmatprep.subr.mxu0 0.0
    %1169 = vmatpush1.msra.mxu0 0.0
    %1170 = vmatprep.subr.mxu0 0.0
    %1171 = vmatpush1.msra.mxu0 0.0
    %1172 = vmatprep.subr.mxu0 0.0
    %1173 = vmatpush1.msra.mxu0 0.0
    %1174 = vmatprep.subr.mxu0 0.0
    %1175 = vmatpush1.msra.mxu0 0.0
    %1176 = vmatprep.subr.mxu0 0.0
    %1177 = vmatpush1.msra.mxu0 0.0
    %1178 = vmatprep.subr.mxu0 0.0
    %1179 = vmatpush1.msra.mxu0 0.0
    %1180 = vmatprep.subr.mxu0 0.0
    %1181 = vmatpush1.msra.mxu0 0.0
    %1182 = vmatprep.subr.mxu0 0.0
    %1183 = vmatpush1.msra.mxu0 0.0
    %1184 = vmatprep.subr.mxu0 0.0
    %1185 = vmatpush1.msra.mxu0 0.0
    %1186 = vmatprep.mubr.f32.mxu0 0.0
    %1187 = vmatmul.mubr.f32.gmra.mrb[0].mxu0 %v1111
    %v1188 = vpop.f32.mrb[0].mxu0
    %v1189 = vadd.f32 0.0, %v1188
    %v1190 = vpop.f32.mrb[0].mxu0
    %v1191 = vadd.f32 0.0, %v1190
    %1192 = vmatprep.mubr.f32.mxu0 0.0
    %1193 = vmatmul.mubr.f32.gmra.mrb[0].mxu0 %v1114
    %v1194 = vpop.f32.mrb[0].mxu0
    %v1195 = vadd.f32 0.0, %v1194
    %v1196 = vpop.f32.mrb[0].mxu0
    %v1197 = vadd.f32 0.0, %v1196
    %1198 = vmatprep.mubr.f32.mxu0 0.0
    %1199 = vmatmul.mubr.f32.gmra.mrb[0].mxu0 %v1117
    %v1200 = vpop.f32.mrb[0].mxu0
    %v1201 = vadd.f32 0.0, %v1200
    %v1202 = vpop.f32.mrb[0].mxu0
    %v1203 = vadd.f32 0.0, %v1202
    %1204 = vmatprep.mubr.f32.mxu0 0.0
    %1205 = vmatmul.mubr.f32.gmra.mrb[0].mxu0 %v1120
    %v1206 = vpop.f32.mrb[0].mxu0
    %v1207 = vadd.f32 0.0, %v1206
    %v1208 = vpop.f32.mrb[0].mxu0
    %v1209 = vadd.f32 0.0, %v1208
    %1210 = vdwg.mxu0
    %v1211 = vlaneseq
    %vm1212 = vcmp.ge.s32.totalorder %v1211, 0
    %vm1213 = vcmp.lt.s32.totalorder %v1211, 216
    %vm1214 = vmand %vm1212, %vm1213
    %1215 = vst.msk [vmem:[#allocation4] ss:$8 sm:$0x3] %vm1214, 0.0
    %1216 = vst.msk [vmem:[#allocation4] ss:$8 sm:$0x0] %vm1214, 0.0
    %s1217 = scalar_lea.vmem [#allocation4], 48
    %1218 = vst.msk [vmem:[%s1217] ss:$8 sm:$0x3] %vm1214, 0.0
    %1219 = vst.msk [vmem:[%s1217] ss:$8 sm:$0x0] %vm1214, 0.0
    %s1220 = scalar_lea.vmem [#allocation4], 33
    %1221 = vst.msk [vmem:[%s1220] ss:$8 sm:$0x3] %vm1214, 0.0
    %1222 = vst.msk [vmem:[%s1220] ss:$8 sm:$0x0] %vm1214, 0.0
    %s1223 = scalar_lea.vmem [#allocation4], 81
    %1224 = vst.msk [vmem:[%s1223] ss:$8 sm:$0x3] %vm1214, 0.0
    %1225 = vst.msk [vmem:[%s1223] ss:$8 sm:$0x0] %vm1214, 0.0
    %vm1234 = vcmask 1040384
    %v1235 = vrot.slane %v1189, 7
    %v1236 = vrot.slane %v1191, 7
    %v1237 = vrot.slane %v1195, 7
    %v1238 = vsel %vm1234, %v1235, %v1237
    %v1239 = vrot.slane %v1197, 7
    %v1240 = vsel %vm1234, %v1236, %v1239
    %v1241 = vrot.slane %v1201, 7
    %v1242 = vrot.slane %v1203, 7
    %v1243 = vrot.slane %v1207, 7
    %v1244 = vsel %vm1234, %v1241, %v1243
    %v1245 = vrot.slane %v1209, 7
    %v1246 = vsel %vm1234, %v1242, %v1245
    %1259 = vst [vmem:[#allocation4] sm:$0xfe] %v1235
    %vm1260 = vcmask 719873
    %1261 = vst.msk [vmem:[#allocation4 + $0x8] sm:$0xfe] %vm1260, %v1236
    %1262 = vst [vmem:[#allocation4 + $0x10] sm:$0xff] %v1238
    %vm1263 = vcmask 719872
    %1264 = vst.msk [vmem:[#allocation4 + $0x18] sm:$0xff] %vm1263, %v1240
    %1265 = vst [vmem:[#allocation4 + $0x20] sm:$0x1] %v1237
    %vm1266 = vcmask 712704
    %1267 = vst.msk [vmem:[#allocation4 + $0x28] sm:$0x1] %vm1266, %v1239
    %1268 = vst [vmem:[#allocation4 + $0x30] sm:$0xfe] %v1241
    %1269 = vst.msk [vmem:[#allocation4 + $0x38] sm:$0xfe] %vm1260, %v1242
    %1270 = vst [vmem:[#allocation4 + $0x40] sm:$0xff] %v1244
    %1271 = vst.msk [vmem:[#allocation4 + $0x48] sm:$0xff] %vm1263, %v1246
    %1272 = vst [vmem:[#allocation4 + $0x50] sm:$0x1] %v1243
    %1273 = vst.msk [vmem:[#allocation4 + $0x58] sm:$0x1] %vm1266, %v1245
    %v1274 = vld [vmem:[#allocation4] sm:$0xff]
    %v1275 = vld [vmem:[#allocation4 + $0x8] sm:$0xff]
    %v1276 = vld [vmem:[#allocation4 + $0x10] sm:$0xff]
    %v1277 = vld [vmem:[#allocation4 + $0x18] sm:$0xff]
    %v1278 = vld [vmem:[#allocation4 + $0x30] sm:$0xff]
    %v1279 = vld [vmem:[#allocation4 + $0x38] sm:$0xff]
    %v1280 = vld [vmem:[#allocation4 + $0x40] sm:$0xff]
    %v1281 = vld [vmem:[#allocation4 + $0x48] sm:$0xff]
    %v1282 = vld [vmem:[%s7] sm:$0xff]
    %v1283 = vld [vmem:[%s7 + $0x8] sm:$0xff]
    %v1284 = vld [vmem:[%s7 + $0x10] sm:$0xff]
    %v1285 = vld [vmem:[%s7 + $0x18] sm:$0xff]
    %v1286 = vld [vmem:[%s7 + $0x20] sm:$0xff]
    %v1287 = vld [vmem:[%s7 + $0x28] sm:$0xff]
    %v1288 = vld [vmem:[%s7 + $0x30] sm:$0xff]
    %v1289 = vld [vmem:[%s7 + $0x38] sm:$0xff]
    %v1290 = vld [vmem:[%s7 + $0x40] sm:$0xff]
    %v1291 = vld [vmem:[%s7 + $0x48] sm:$0xff]
    %v1292 = vld [vmem:[%s7 + $0x50] sm:$0xff]
    %v1293 = vld [vmem:[%s7 + $0x58] sm:$0xff]
    %v1294 = vld [vmem:[%s7 + $0x60] sm:$0xff]
    %v1295 = vld [vmem:[%s7 + $0x68] sm:$0xff]
    %v1296 = vld [vmem:[%s7 + $0x70] sm:$0xff]
    %v1297 = vld [vmem:[%s7 + $0x78] sm:$0xff]
    %v1298 = vld [vmem:[%s7 + $0x80] sm:$0xff]
    %v1299 = vld [vmem:[%s7 + $0x88] sm:$0xff]
    %v1300 = vld [vmem:[%s7 + $0x90] sm:$0xff]
    %v1301 = vld [vmem:[%s7 + $0x98] sm:$0xff]
    %v1302 = vld [vmem:[%s7 + $0xa0] sm:$0xff]
    %v1303 = vld [vmem:[%s7 + $0xa8] sm:$0xff]
    %v1304 = vld [vmem:[%s7 + $0xb0] sm:$0xff]
    %v1305 = vld [vmem:[%s7 + $0xb8] sm:$0xff]
    %v1306 = vld [vmem:[%s7 + $0xc0] sm:$0xff]
    %v1307 = vld [vmem:[%s7 + $0xc8] sm:$0xff]
    %v1308 = vld [vmem:[%s7 + $0xd0] sm:$0xff]
    %v1309 = vld [vmem:[%s7 + $0xd8] sm:$0xff]
    %v1310 = vld [vmem:[%s7 + $0xe0] sm:$0xff]
    %v1311 = vld [vmem:[%s7 + $0xe8] sm:$0xff]
    %v1312 = vld [vmem:[%s7 + $0xf0] sm:$0xff]
    %v1313 = vld [vmem:[%s7 + $0xf8] sm:$0xff]
    %v1314 = vld [vmem:[%s7 + $0x100] sm:$0xff]
    %v1315 = vld [vmem:[%s7 + $0x108] sm:$0xff]
    %v1316 = vld [vmem:[%s7 + $0x110] sm:$0xff]
    %v1317 = vld [vmem:[%s7 + $0x118] sm:$0xff]
    %v1318 = vld [vmem:[%s7 + $0x120] sm:$0xff]
    %v1319 = vld [vmem:[%s7 + $0x128] sm:$0xff]
    %v1320 = vld [vmem:[%s7 + $0x130] sm:$0xff]
    %v1321 = vld [vmem:[%s7 + $0x138] sm:$0xff]
    %v1322 = vld [vmem:[%s7 + $0x140] sm:$0xff]
    %v1323 = vld [vmem:[%s7 + $0x148] sm:$0xff]
    %v1324 = vld [vmem:[%s7 + $0x150] sm:$0xff]
    %v1325 = vld [vmem:[%s7 + $0x158] sm:$0xff]
    %v1326 = vld [vmem:[%s7 + $0x160] sm:$0xff]
    %v1327 = vld [vmem:[%s7 + $0x168] sm:$0xff]
    %v1328 = vld [vmem:[%s7 + $0x170] sm:$0xff]
    %v1329 = vld [vmem:[%s7 + $0x178] sm:$0xff]
    %v1330 = vld [vmem:[%s7 + $0x180] sm:$0xff]
    %v1331 = vld [vmem:[%s7 + $0x188] sm:$0xff]
    %v1332 = vld [vmem:[%s7 + $0x190] sm:$0xff]
    %v1333 = vld [vmem:[%s7 + $0x198] sm:$0xff]
    %v1334 = vld [vmem:[%s7 + $0x1a0] sm:$0xff]
    %v1335 = vld [vmem:[%s7 + $0x1a8] sm:$0xff]
    %v1336 = vld [vmem:[%s7 + $0x1b0] sm:$0xff]
    %v1337 = vld [vmem:[%s7 + $0x1b8] sm:$0xff]
    %v1338 = vld [vmem:[%s7 + $0x1c0] sm:$0xff]
    %v1339 = vld [vmem:[%s7 + $0x1c8] sm:$0xff]
    %v1340 = vld [vmem:[%s7 + $0x1d0] sm:$0xff]
    %v1341 = vld [vmem:[%s7 + $0x1d8] sm:$0xff]
    %v1342 = vld [vmem:[%s7 + $0x1e0] sm:$0xff]
    %v1343 = vld [vmem:[%s7 + $0x1e8] sm:$0xff]
    %v1344 = vld [vmem:[%s7 + $0x1f0] sm:$0xff]
    %v1345 = vld [vmem:[%s7 + $0x1f8] sm:$0xff]
    %v1346 = vld [vmem:[%s7 + $0x200] sm:$0xff]
    %v1347 = vld [vmem:[%s7 + $0x208] sm:$0xff]
    %v1348 = vld [vmem:[%s7 + $0x210] sm:$0xff]
    %v1349 = vld [vmem:[%s7 + $0x218] sm:$0xff]
    %v1350 = vld [vmem:[%s7 + $0x220] sm:$0xff]
    %v1351 = vld [vmem:[%s7 + $0x228] sm:$0xff]
    %v1352 = vld [vmem:[%s7 + $0x230] sm:$0xff]
    %v1353 = vld [vmem:[%s7 + $0x238] sm:$0xff]
    %v1354 = vld [vmem:[%s7 + $0x240] sm:$0xff]
    %v1355 = vld [vmem:[%s7 + $0x248] sm:$0xff]
    %v1356 = vld [vmem:[%s7 + $0x250] sm:$0xff]
    %v1357 = vld [vmem:[%s7 + $0x258] sm:$0xff]
    %v1358 = vld [vmem:[%s7 + $0x260] sm:$0xff]
    %v1359 = vld [vmem:[%s7 + $0x268] sm:$0xff]
    %v1360 = vld [vmem:[%s7 + $0x270] sm:$0xff]
    %v1361 = vld [vmem:[%s7 + $0x278] sm:$0xff]
    %v1362 = vld [vmem:[%s7 + $0x280] sm:$0xff]
    %v1363 = vld [vmem:[#allocation4] sm:$0xfe]
    %v1364 = vld [vmem:[#allocation4 + $0x8] sm:$0xfe]
    %v1365 = vld [vmem:[#allocation4 + $0x20] sm:$0x1]
    %v1366 = vld [vmem:[#allocation4 + $0x28] sm:$0x1]
    %v1367 = vld [vmem:[#allocation4 + $0x30] sm:$0xfe]
    %v1368 = vld [vmem:[#allocation4 + $0x38] sm:$0xfe]
    %v1369 = vld [vmem:[#allocation4 + $0x50] sm:$0x1]
    %v1370 = vld [vmem:[#allocation4 + $0x58] sm:$0x1]
    %vm1383 = vcmask 1046528
    %v1384 = vrot.slane %v1363, 1
    %v1385 = vrot.slane %v1276, 1
    %v1386 = vsel %vm1383, %v1384, %v1385
    %v1387 = vrot.slane %v1364, 1
    %v1388 = vrot.slane %v1277, 1
    %v1389 = vsel %vm1383, %v1387, %v1388
    %v1390 = vrot.slane %v1365, 1
    %v1391 = vsel %vm1383, %v1385, %v1390
    %v1392 = vrot.slane %v1366, 1
    %v1393 = vsel %vm1383, %v1388, %v1392
    %v1394 = vrot.slane %v1367, 1
    %v1395 = vrot.slane %v1280, 1
    %v1396 = vsel %vm1383, %v1394, %v1395
    %v1397 = vrot.slane %v1368, 1
    %v1398 = vrot.slane %v1281, 1
    %v1399 = vsel %vm1383, %v1397, %v1398
    %v1400 = vrot.slane %v1369, 1
    %v1401 = vsel %vm1383, %v1395, %v1400
    %v1402 = vrot.slane %v1370, 1
    %v1403 = vsel %vm1383, %v1398, %v1402
    %s1408 = scalar_lea.vmem %s7, 648
    %v1409 = vld [vmem:[%s1408] sm:$0xff]
    %v1410 = vld [vmem:[%s1408 + $0x8] sm:$0xff]
    %v1411 = vld [vmem:[%s1408 + $0x10] sm:$0xff]
    %v1412 = vld [vmem:[%s1408 + $0x18] sm:$0xff]
    %v1413 = vld [vmem:[%s1408 + $0x20] sm:$0xff]
    %v1414 = vld [vmem:[%s1408 + $0x28] sm:$0xff]
    %v1415 = vld [vmem:[%s1408 + $0x30] sm:$0xff]
    %v1416 = vld [vmem:[%s1408 + $0x38] sm:$0xff]
    %v1417 = vld [vmem:[%s1408 + $0x40] sm:$0xff]
    %v1418 = vld [vmem:[%s1408 + $0x48] sm:$0xff]
    %v1419 = vld [vmem:[%s1408 + $0x50] sm:$0xff]
    %v1420 = vld [vmem:[%s1408 + $0x58] sm:$0xff]
    %v1421 = vld [vmem:[%s1408 + $0x60] sm:$0xff]
    %v1422 = vld [vmem:[%s1408 + $0x68] sm:$0xff]
    %v1423 = vld [vmem:[%s1408 + $0x70] sm:$0xff]
    %v1424 = vld [vmem:[%s1408 + $0x78] sm:$0xff]
    %v1425 = vld [vmem:[%s1408 + $0x80] sm:$0xff]
    %v1426 = vld [vmem:[%s1408 + $0x88] sm:$0xff]
    %v1427 = vld [vmem:[%s1408 + $0x90] sm:$0xff]
    %v1428 = vld [vmem:[%s1408 + $0x98] sm:$0xff]
    %v1429 = vld [vmem:[%s1408 + $0xa0] sm:$0xff]
    %v1430 = vld [vmem:[%s1408 + $0xa8] sm:$0xff]
    %v1431 = vld [vmem:[%s1408 + $0xb0] sm:$0xff]
    %v1432 = vld [vmem:[%s1408 + $0xb8] sm:$0xff]
    %v1433 = vld [vmem:[%s1408 + $0xc0] sm:$0xff]
    %v1434 = vld [vmem:[%s1408 + $0xc8] sm:$0xff]
    %v1435 = vld [vmem:[%s1408 + $0xd0] sm:$0xff]
    %v1436 = vld [vmem:[%s1408 + $0xd8] sm:$0xff]
    %v1437 = vld [vmem:[%s1408 + $0xe0] sm:$0xff]
    %v1438 = vld [vmem:[%s1408 + $0xe8] sm:$0xff]
    %v1439 = vld [vmem:[%s1408 + $0xf0] sm:$0xff]
    %v1440 = vld [vmem:[%s1408 + $0xf8] sm:$0xff]
    %v1441 = vld [vmem:[%s1408 + $0x100] sm:$0xff]
    %v1442 = vld [vmem:[%s1408 + $0x108] sm:$0xff]
    %v1443 = vld [vmem:[%s1408 + $0x110] sm:$0xff]
    %v1444 = vld [vmem:[%s1408 + $0x118] sm:$0xff]
    %v1445 = vld [vmem:[%s1408 + $0x120] sm:$0xff]
    %v1446 = vld [vmem:[%s1408 + $0x128] sm:$0xff]
    %v1447 = vld [vmem:[%s1408 + $0x130] sm:$0xff]
    %v1448 = vld [vmem:[%s1408 + $0x138] sm:$0xff]
    %v1449 = vld [vmem:[%s1408 + $0x140] sm:$0xff]
    %v1450 = vld [vmem:[%s1408 + $0x148] sm:$0xff]
    %v1451 = vld [vmem:[%s1408 + $0x150] sm:$0xff]
    %v1452 = vld [vmem:[%s1408 + $0x158] sm:$0xff]
    %v1453 = vld [vmem:[%s1408 + $0x160] sm:$0xff]
    %v1454 = vld [vmem:[%s1408 + $0x168] sm:$0xff]
    %v1455 = vld [vmem:[%s1408 + $0x170] sm:$0xff]
    %v1456 = vld [vmem:[%s1408 + $0x178] sm:$0xff]
    %v1457 = vld [vmem:[%s1408 + $0x180] sm:$0xff]
    %v1458 = vld [vmem:[%s1408 + $0x188] sm:$0xff]
    %v1459 = vld [vmem:[%s1408 + $0x190] sm:$0xff]
    %v1460 = vld [vmem:[%s1408 + $0x198] sm:$0xff]
    %v1461 = vld [vmem:[%s1408 + $0x1a0] sm:$0xff]
    %v1462 = vld [vmem:[%s1408 + $0x1a8] sm:$0xff]
    %v1463 = vld [vmem:[%s1408 + $0x1b0] sm:$0xff]
    %v1464 = vld [vmem:[%s1408 + $0x1b8] sm:$0xff]
    %v1465 = vld [vmem:[%s1408 + $0x1c0] sm:$0xff]
    %v1466 = vld [vmem:[%s1408 + $0x1c8] sm:$0xff]
    %v1467 = vld [vmem:[%s1408 + $0x1d0] sm:$0xff]
    %v1468 = vld [vmem:[%s1408 + $0x1d8] sm:$0xff]
    %v1469 = vld [vmem:[%s1408 + $0x1e0] sm:$0xff]
    %v1470 = vld [vmem:[%s1408 + $0x1e8] sm:$0xff]
    %v1471 = vld [vmem:[%s1408 + $0x1f0] sm:$0xff]
    %v1472 = vld [vmem:[%s1408 + $0x1f8] sm:$0xff]
    %v1473 = vld [vmem:[%s1408 + $0x200] sm:$0xff]
    %v1474 = vld [vmem:[%s1408 + $0x208] sm:$0xff]
    %v1475 = vld [vmem:[%s1408 + $0x210] sm:$0xff]
    %v1476 = vld [vmem:[%s1408 + $0x218] sm:$0xff]
    %v1477 = vld [vmem:[%s1408 + $0x220] sm:$0xff]
    %v1478 = vld [vmem:[%s1408 + $0x228] sm:$0xff]
    %v1479 = vld [vmem:[%s1408 + $0x230] sm:$0xff]
    %v1480 = vld [vmem:[%s1408 + $0x238] sm:$0xff]
    %v1481 = vld [vmem:[%s1408 + $0x240] sm:$0xff]
    %v1482 = vld [vmem:[%s1408 + $0x248] sm:$0xff]
    %v1483 = vld [vmem:[%s1408 + $0x250] sm:$0xff]
    %v1484 = vld [vmem:[%s1408 + $0x258] sm:$0xff]
    %v1485 = vld [vmem:[%s1408 + $0x260] sm:$0xff]
    %v1486 = vld [vmem:[%s1408 + $0x268] sm:$0xff]
    %v1487 = vld [vmem:[%s1408 + $0x270] sm:$0xff]
    %v1488 = vld [vmem:[%s1408 + $0x278] sm:$0xff]
    %v1489 = vld [vmem:[%s1408 + $0x280] sm:$0xff]
    %v1490 = vsel %vm1263, %v1389, 0
    %v1492 = vsel %vm1263, %v1393, 0
    %v1494 = vsel %vm1263, %v1399, 0
    %v1496 = vsel %vm1263, %v1403, 0
    %1498 = vmatprep.subr.mxu0 %v1410
    %1499 = vmatpush1.msra.mxu0 %v1409
    %1500 = vmatprep.subr.mxu0 %v1413
    %1501 = vmatpush1.msra.mxu0 %v1412
    %1502 = vmatprep.subr.mxu0 %v1416
    %1503 = vmatpush1.msra.mxu0 %v1415
    %1504 = vmatprep.subr.mxu0 %v1419
    %1505 = vmatpush1.msra.mxu0 %v1418
    %1506 = vmatprep.subr.mxu0 %v1422
    %1507 = vmatpush1.msra.mxu0 %v1421
    %1508 = vmatprep.subr.mxu0 %v1425
    %1509 = vmatpush1.msra.mxu0 %v1424
    %1510 = vmatprep.subr.mxu0 %v1428
    %1511 = vmatpush1.msra.mxu0 %v1427
    %1512 = vmatprep.subr.mxu0 %v1431
    %1513 = vmatpush1.msra.mxu0 %v1430
    %1514 = vmatprep.subr.mxu0 %v1434
    %1515 = vmatpush1.msra.mxu0 %v1433
    %1516 = vmatprep.subr.mxu0 %v1437
    %1517 = vmatpush1.msra.mxu0 %v1436
    %1518 = vmatprep.subr.mxu0 %v1440
    %1519 = vmatpush1.msra.mxu0 %v1439
    %1520 = vmatprep.subr.mxu0 %v1443
    %1521 = vmatpush1.msra.mxu0 %v1442
    %1522 = vmatprep.subr.mxu0 %v1446
    %1523 = vmatpush1.msra.mxu0 %v1445
    %1524 = vmatprep.subr.mxu0 %v1449
    %1525 = vmatpush1.msra.mxu0 %v1448
    %1526 = vmatprep.subr.mxu0 %v1452
    %1527 = vmatpush1.msra.mxu0 %v1451
    %1528 = vmatprep.subr.mxu0 %v1455
    %1529 = vmatpush1.msra.mxu0 %v1454
    %1530 = vmatprep.subr.mxu0 %v1458
    %1531 = vmatpush1.msra.mxu0 %v1457
    %1532 = vmatprep.subr.mxu0 %v1461
    %1533 = vmatpush1.msra.mxu0 %v1460
    %1534 = vmatprep.subr.mxu0 %v1464
    %1535 = vmatpush1.msra.mxu0 %v1463
    %1536 = vmatprep.subr.mxu0 %v1467
    %1537 = vmatpush1.msra.mxu0 %v1466
    %1538 = vmatprep.subr.mxu0 %v1470
    %1539 = vmatpush1.msra.mxu0 %v1469
    %1540 = vmatprep.subr.mxu0 %v1473
    %1541 = vmatpush1.msra.mxu0 %v1472
    %1542 = vmatprep.subr.mxu0 %v1476
    %1543 = vmatpush1.msra.mxu0 %v1475
    %1544 = vmatprep.subr.mxu0 %v1479
    %1545 = vmatpush1.msra.mxu0 %v1478
    %1546 = vmatprep.subr.mxu0 %v1482
    %1547 = vmatpush1.msra.mxu0 %v1481
    %1548 = vmatprep.subr.mxu0 %v1485
    %1549 = vmatpush1.msra.mxu0 %v1484
    %1550 = vmatprep.subr.mxu0 %v1488
    %1551 = vmatpush1.msra.mxu0 %v1487
    %1552 = vmatprep.subr.mxu0 0.0
    %1553 = vmatpush1.msra.mxu0 0.0
    %1554 = vmatprep.subr.mxu0 0.0
    %1555 = vmatpush1.msra.mxu0 0.0
    %1556 = vmatprep.subr.mxu0 0.0
    %1557 = vmatpush1.msra.mxu0 0.0
    %1558 = vmatprep.subr.mxu0 0.0
    %1559 = vmatpush1.msra.mxu0 0.0
    %1560 = vmatprep.subr.mxu0 0.0
    %1561 = vmatpush1.msra.mxu0 0.0
    %1562 = vmatprep.mubr.f32.mxu0 %v1490
    %1563 = vmatmul.mubr.f32.gmra.mrb[0].mxu0 %v1386
    %v1564 = vpop.f32.mrb[0].mxu0
    %v1565 = vadd.f32 0.0, %v1564
    %v1566 = vpop.f32.mrb[0].mxu0
    %v1567 = vadd.f32 0.0, %v1566
    %1568 = vmatprep.mubr.f32.mxu0 %v1492
    %1569 = vmatmul.mubr.f32.gmra.mrb[0].mxu0 %v1391
    %v1570 = vpop.f32.mrb[0].mxu0
    %v1571 = vadd.f32 0.0, %v1570
    %v1572 = vpop.f32.mrb[0].mxu0
    %v1573 = vadd.f32 0.0, %v1572
    %1574 = vmatprep.mubr.f32.mxu0 %v1494
    %1575 = vmatmul.mubr.f32.gmra.mrb[0].mxu0 %v1396
    %v1576 = vpop.f32.mrb[0].mxu0
    %v1577 = vadd.f32 0.0, %v1576
    %v1578 = vpop.f32.mrb[0].mxu0
    %v1579 = vadd.f32 0.0, %v1578
    %1580 = vmatprep.mubr.f32.mxu0 %v1496
    %1581 = vmatmul.mubr.f32.gmra.mrb[0].mxu0 %v1401
    %v1582 = vpop.f32.mrb[0].mxu0
    %v1583 = vadd.f32 0.0, %v1582
    %v1584 = vpop.f32.mrb[0].mxu0
    %v1585 = vadd.f32 0.0, %v1584
    %1586 = vdwg.mxu0
    %1587 = vmatprep.subr.mxu0 0.0
    %1588 = vmatpush1.msra.mxu0 %v1411
    %1589 = vmatprep.subr.mxu0 0.0
    %1590 = vmatpush1.msra.mxu0 %v1414
    %1591 = vmatprep.subr.mxu0 0.0
    %1592 = vmatpush1.msra.mxu0 %v1417
    %1593 = vmatprep.subr.mxu0 0.0
    %1594 = vmatpush1.msra.mxu0 %v1420
    %1595 = vmatprep.subr.mxu0 0.0
    %1596 = vmatpush1.msra.mxu0 %v1423
    %1597 = vmatprep.subr.mxu0 0.0
    %1598 = vmatpush1.msra.mxu0 %v1426
    %1599 = vmatprep.subr.mxu0 0.0
    %1600 = vmatpush1.msra.mxu0 %v1429
    %1601 = vmatprep.subr.mxu0 0.0
    %1602 = vmatpush1.msra.mxu0 %v1432
    %1603 = vmatprep.subr.mxu0 0.0
    %1604 = vmatpush1.msra.mxu0 %v1435
    %1605 = vmatprep.subr.mxu0 0.0
    %1606 = vmatpush1.msra.mxu0 %v1438
    %1607 = vmatprep.subr.mxu0 0.0
    %1608 = vmatpush1.msra.mxu0 %v1441
    %1609 = vmatprep.subr.mxu0 0.0
    %1610 = vmatpush1.msra.mxu0 %v1444
    %1611 = vmatprep.subr.mxu0 0.0
    %1612 = vmatpush1.msra.mxu0 %v1447
    %1613 = vmatprep.subr.mxu0 0.0
    %1614 = vmatpush1.msra.mxu0 %v1450
    %1615 = vmatprep.subr.mxu0 0.0
    %1616 = vmatpush1.msra.mxu0 %v1453
    %1617 = vmatprep.subr.mxu0 0.0
    %1618 = vmatpush1.msra.mxu0 %v1456
    %1619 = vmatprep.subr.mxu0 0.0
    %1620 = vmatpush1.msra.mxu0 %v1459
    %1621 = vmatprep.subr.mxu0 0.0
    %1622 = vmatpush1.msra.mxu0 %v1462
    %1623 = vmatprep.subr.mxu0 0.0
    %1624 = vmatpush1.msra.mxu0 %v1465
    %1625 = vmatprep.subr.mxu0 0.0
    %1626 = vmatpush1.msra.mxu0 %v1468
    %1627 = vmatprep.subr.mxu0 0.0
    %1628 = vmatpush1.msra.mxu0 %v1471
    %1629 = vmatprep.subr.mxu0 0.0
    %1630 = vmatpush1.msra.mxu0 %v1474
    %1631 = vmatprep.subr.mxu0 0.0
    %1632 = vmatpush1.msra.mxu0 %v1477
    %1633 = vmatprep.subr.mxu0 0.0
    %1634 = vmatpush1.msra.mxu0 %v1480
    %1635 = vmatprep.subr.mxu0 0.0
    %1636 = vmatpush1.msra.mxu0 %v1483
    %1637 = vmatprep.subr.mxu0 0.0
    %1638 = vmatpush1.msra.mxu0 %v1486
    %1639 = vmatprep.subr.mxu0 0.0
    %1640 = vmatpush1.msra.mxu0 %v1489
    %1641 = vmatprep.subr.mxu0 0.0
    %1642 = vmatpush1.msra.mxu0 0.0
    %1643 = vmatprep.subr.mxu0 0.0
    %1644 = vmatpush1.msra.mxu0 0.0
    %1645 = vmatprep.subr.mxu0 0.0
    %1646 = vmatpush1.msra.mxu0 0.0
    %1647 = vmatprep.subr.mxu0 0.0
    %1648 = vmatpush1.msra.mxu0 0.0
    %1649 = vmatprep.subr.mxu0 0.0
    %1650 = vmatpush1.msra.mxu0 0.0
    %1651 = vmatprep.mubr.f32.mxu0 %v1490
    %1652 = vmatmul.mubr.f32.gmra.mrb[0].mxu0 %v1386
    %v1653 = vpop.f32.mrb[0].mxu0
    %v1654 = vadd.f32 0.0, %v1653
    %v1655 = vpop.f32.mrb[0].mxu0
    %1656 = vmatprep.mubr.f32.mxu0 %v1492
    %1657 = vmatmul.mubr.f32.gmra.mrb[0].mxu0 %v1391
    %v1658 = vpop.f32.mrb[0].mxu0
    %v1659 = vadd.f32 0.0, %v1658
    %v1660 = vpop.f32.mrb[0].mxu0
    %1661 = vmatprep.mubr.f32.mxu0 %v1494
    %1662 = vmatmul.mubr.f32.gmra.mrb[0].mxu0 %v1396
    %v1663 = vpop.f32.mrb[0].mxu0
    %v1664 = vadd.f32 0.0, %v1663
    %v1665 = vpop.f32.mrb[0].mxu0
    %1666 = vmatprep.mubr.f32.mxu0 %v1496
    %1667 = vmatmul.mubr.f32.gmra.mrb[0].mxu0 %v1401
    %v1668 = vpop.f32.mrb[0].mxu0
    %v1669 = vadd.f32 0.0, %v1668
    %v1670 = vpop.f32.mrb[0].mxu0
    %1671 = vdwg.mxu0
    %v1673 = vsel %vm1263, %v1275, 0
    %v1675 = vsel %vm1263, %v1277, 0
    %v1678 = vsel %vm1263, %v1279, 0
    %v1680 = vsel %vm1263, %v1281, 0
    %1682 = vmatprep.subr.mxu0 %v1283
    %1683 = vmatpush1.msra.mxu0 %v1282
    %1684 = vmatprep.subr.mxu0 %v1286
    %1685 = vmatpush1.msra.mxu0 %v1285
    %1686 = vmatprep.subr.mxu0 %v1289
    %1687 = vmatpush1.msra.mxu0 %v1288
    %1688 = vmatprep.subr.mxu0 %v1292
    %1689 = vmatpush1.msra.mxu0 %v1291
    %1690 = vmatprep.subr.mxu0 %v1295
    %1691 = vmatpush1.msra.mxu0 %v1294
    %1692 = vmatprep.subr.mxu0 %v1298
    %1693 = vmatpush1.msra.mxu0 %v1297
    %1694 = vmatprep.subr.mxu0 %v1301
    %1695 = vmatpush1.msra.mxu0 %v1300
    %1696 = vmatprep.subr.mxu0 %v1304
    %1697 = vmatpush1.msra.mxu0 %v1303
    %1698 = vmatprep.subr.mxu0 %v1307
    %1699 = vmatpush1.msra.mxu0 %v1306
    %1700 = vmatprep.subr.mxu0 %v1310
    %1701 = vmatpush1.msra.mxu0 %v1309
    %1702 = vmatprep.subr.mxu0 %v1313
    %1703 = vmatpush1.msra.mxu0 %v1312
    %1704 = vmatprep.subr.mxu0 %v1316
    %1705 = vmatpush1.msra.mxu0 %v1315
    %1706 = vmatprep.subr.mxu0 %v1319
    %1707 = vmatpush1.msra.mxu0 %v1318
    %1708 = vmatprep.subr.mxu0 %v1322
    %1709 = vmatpush1.msra.mxu0 %v1321
    %1710 = vmatprep.subr.mxu0 %v1325
    %1711 = vmatpush1.msra.mxu0 %v1324
    %1712 = vmatprep.subr.mxu0 %v1328
    %1713 = vmatpush1.msra.mxu0 %v1327
    %1714 = vmatprep.subr.mxu0 %v1331
    %1715 = vmatpush1.msra.mxu0 %v1330
    %1716 = vmatprep.subr.mxu0 %v1334
    %1717 = vmatpush1.msra.mxu0 %v1333
    %1718 = vmatprep.subr.mxu0 %v1337
    %1719 = vmatpush1.msra.mxu0 %v1336
    %1720 = vmatprep.subr.mxu0 %v1340
    %1721 = vmatpush1.msra.mxu0 %v1339
    %1722 = vmatprep.subr.mxu0 %v1343
    %1723 = vmatpush1.msra.mxu0 %v1342
    %1724 = vmatprep.subr.mxu0 %v1346
    %1725 = vmatpush1.msra.mxu0 %v1345
    %1726 = vmatprep.subr.mxu0 %v1349
    %1727 = vmatpush1.msra.mxu0 %v1348
    %1728 = vmatprep.subr.mxu0 %v1352
    %1729 = vmatpush1.msra.mxu0 %v1351
    %1730 = vmatprep.subr.mxu0 %v1355
    %1731 = vmatpush1.msra.mxu0 %v1354
    %1732 = vmatprep.subr.mxu0 %v1358
    %1733 = vmatpush1.msra.mxu0 %v1357
    %1734 = vmatprep.subr.mxu0 %v1361
    %1735 = vmatpush1.msra.mxu0 %v1360
    %1736 = vmatprep.subr.mxu0 0.0
    %1737 = vmatpush1.msra.mxu0 0.0
    %1738 = vmatprep.subr.mxu0 0.0
    %1739 = vmatpush1.msra.mxu0 0.0
    %1740 = vmatprep.subr.mxu0 0.0
    %1741 = vmatpush1.msra.mxu0 0.0
    %1742 = vmatprep.subr.mxu0 0.0
    %1743 = vmatpush1.msra.mxu0 0.0
    %1744 = vmatprep.subr.mxu0 0.0
    %1745 = vmatpush1.msra.mxu0 0.0
    %1746 = vmatprep.mubr.f32.mxu0 %v1673
    %1747 = vmatmul.mubr.f32.gmra.mrb[0].mxu0 %v1274
    %v1748 = vpop.f32.mrb[0].mxu0
    %v1749 = vadd.f32 %v1565, %v1748
    %v1750 = vpop.f32.mrb[0].mxu0
    %v1751 = vadd.f32 %v1567, %v1750
    %1752 = vmatprep.mubr.f32.mxu0 %v1675
    %1753 = vmatmul.mubr.f32.gmra.mrb[0].mxu0 %v1276
    %v1754 = vpop.f32.mrb[0].mxu0
    %v1755 = vadd.f32 %v1571, %v1754
    %v1756 = vpop.f32.mrb[0].mxu0
    %v1757 = vadd.f32 %v1573, %v1756
    %1758 = vmatprep.mubr.f32.mxu0 %v1678
    %1759 = vmatmul.mubr.f32.gmra.mrb[0].mxu0 %v1278
    %v1760 = vpop.f32.mrb[0].mxu0
    %v1761 = vadd.f32 %v1577, %v1760
    %v1762 = vpop.f32.mrb[0].mxu0
    %v1763 = vadd.f32 %v1579, %v1762
    %1764 = vmatprep.mubr.f32.mxu0 %v1680
    %1765 = vmatmul.mubr.f32.gmra.mrb[0].mxu0 %v1280
    %v1766 = vpop.f32.mrb[0].mxu0
    %v1767 = vadd.f32 %v1583, %v1766
    %v1768 = vpop.f32.mrb[0].mxu0
    %v1769 = vadd.f32 %v1585, %v1768
    %1770 = vdwg.mxu0
    %1771 = vmatprep.subr.mxu0 0.0
    %1772 = vmatpush1.msra.mxu0 %v1284
    %1773 = vmatprep.subr.mxu0 0.0
    %1774 = vmatpush1.msra.mxu0 %v1287
    %1775 = vmatprep.subr.mxu0 0.0
    %1776 = vmatpush1.msra.mxu0 %v1290
    %1777 = vmatprep.subr.mxu0 0.0
    %1778 = vmatpush1.msra.mxu0 %v1293
    %1779 = vmatprep.subr.mxu0 0.0
    %1780 = vmatpush1.msra.mxu0 %v1296
    %1781 = vmatprep.subr.mxu0 0.0
    %1782 = vmatpush1.msra.mxu0 %v1299
    %1783 = vmatprep.subr.mxu0 0.0
    %1784 = vmatpush1.msra.mxu0 %v1302
    %1785 = vmatprep.subr.mxu0 0.0
    %1786 = vmatpush1.msra.mxu0 %v1305
    %1787 = vmatprep.subr.mxu0 0.0
    %1788 = vmatpush1.msra.mxu0 %v1308
    %1789 = vmatprep.subr.mxu0 0.0
    %1790 = vmatpush1.msra.mxu0 %v1311
    %1791 = vmatprep.subr.mxu0 0.0
    %1792 = vmatpush1.msra.mxu0 %v1314
    %1793 = vmatprep.subr.mxu0 0.0
    %1794 = vmatpush1.msra.mxu0 %v1317
    %1795 = vmatprep.subr.mxu0 0.0
    %1796 = vmatpush1.msra.mxu0 %v1320
    %1797 = vmatprep.subr.mxu0 0.0
    %1798 = vmatpush1.msra.mxu0 %v1323
    %1799 = vmatprep.subr.mxu0 0.0
    %1800 = vmatpush1.msra.mxu0 %v1326
    %1801 = vmatprep.subr.mxu0 0.0
    %1802 = vmatpush1.msra.mxu0 %v1329
    %1803 = vmatprep.subr.mxu0 0.0
    %1804 = vmatpush1.msra.mxu0 %v1332
    %1805 = vmatprep.subr.mxu0 0.0
    %1806 = vmatpush1.msra.mxu0 %v1335
    %1807 = vmatprep.subr.mxu0 0.0
    %1808 = vmatpush1.msra.mxu0 %v1338
    %1809 = vmatprep.subr.mxu0 0.0
    %1810 = vmatpush1.msra.mxu0 %v1341
    %1811 = vmatprep.subr.mxu0 0.0
    %1812 = vmatpush1.msra.mxu0 %v1344
    %1813 = vmatprep.subr.mxu0 0.0
    %1814 = vmatpush1.msra.mxu0 %v1347
    %1815 = vmatprep.subr.mxu0 0.0
    %1816 = vmatpush1.msra.mxu0 %v1350
    %1817 = vmatprep.subr.mxu0 0.0
    %1818 = vmatpush1.msra.mxu0 %v1353
    %1819 = vmatprep.subr.mxu0 0.0
    %1820 = vmatpush1.msra.mxu0 %v1356
    %1821 = vmatprep.subr.mxu0 0.0
    %1822 = vmatpush1.msra.mxu0 %v1359
    %1823 = vmatprep.subr.mxu0 0.0
    %1824 = vmatpush1.msra.mxu0 %v1362
    %1825 = vmatprep.subr.mxu0 0.0
    %1826 = vmatpush1.msra.mxu0 0.0
    %1827 = vmatprep.subr.mxu0 0.0
    %1828 = vmatpush1.msra.mxu0 0.0
    %1829 = vmatprep.subr.mxu0 0.0
    %1830 = vmatpush1.msra.mxu0 0.0
    %1831 = vmatprep.subr.mxu0 0.0
    %1832 = vmatpush1.msra.mxu0 0.0
    %1833 = vmatprep.subr.mxu0 0.0
    %1834 = vmatpush1.msra.mxu0 0.0
    %1835 = vmatprep.mubr.f32.mxu0 %v1673
    %1836 = vmatmul.mubr.f32.gmra.mrb[0].mxu0 %v1274
    %v1837 = vpop.f32.mrb[0].mxu0
    %v1838 = vadd.f32 %v1654, %v1837
    %v1839 = vpop.f32.mrb[0].mxu0
    %1840 = vmatprep.mubr.f32.mxu0 %v1675
    %1841 = vmatmul.mubr.f32.gmra.mrb[0].mxu0 %v1276
    %v1842 = vpop.f32.mrb[0].mxu0
    %v1843 = vadd.f32 %v1659, %v1842
    %v1844 = vpop.f32.mrb[0].mxu0
    %1845 = vmatprep.mubr.f32.mxu0 %v1678
    %1846 = vmatmul.mubr.f32.gmra.mrb[0].mxu0 %v1278
    %v1847 = vpop.f32.mrb[0].mxu0
    %v1848 = vadd.f32 %v1664, %v1847
    %v1849 = vpop.f32.mrb[0].mxu0
    %1850 = vmatprep.mubr.f32.mxu0 %v1680
    %1851 = vmatmul.mubr.f32.gmra.mrb[0].mxu0 %v1280
    %v1852 = vpop.f32.mrb[0].mxu0
    %v1853 = vadd.f32 %v1669, %v1852
    %v1854 = vpop.f32.mrb[0].mxu0
    %1855 = vdwg.mxu0
    %v1856 = vld [vmem:[#allocation4] sm:$0xfc]
    %v1857 = vld [vmem:[#allocation4 + $0x8] sm:$0xfc]
    %v1858 = vld [vmem:[#allocation4 + $0x20] sm:$0x3]
    %v1859 = vld [vmem:[#allocation4 + $0x28] sm:$0x3]
    %v1860 = vld [vmem:[#allocation4 + $0x30] sm:$0xfc]
    %v1861 = vld [vmem:[#allocation4 + $0x38] sm:$0xfc]
    %v1862 = vld [vmem:[#allocation4 + $0x50] sm:$0x3]
    %v1863 = vld [vmem:[#allocation4 + $0x58] sm:$0x3]
    %vm1872 = vcmask 1045504
    %v1873 = vrot.slane %v1856, 2
    %v1874 = vrot.slane %v1276, 2
    %v1875 = vsel %vm1872, %v1873, %v1874
    %v1876 = vrot.slane %v1857, 2
    %v1877 = vrot.slane %v1277, 2
    %v1878 = vsel %vm1872, %v1876, %v1877
    %v1879 = vrot.slane %v1858, 2
    %v1880 = vsel %vm1872, %v1874, %v1879
    %v1881 = vrot.slane %v1859, 2
    %v1882 = vsel %vm1872, %v1877, %v1881
    %v1883 = vrot.slane %v1860, 2
    %v1884 = vrot.slane %v1280, 2
    %v1885 = vsel %vm1872, %v1883, %v1884
    %v1886 = vrot.slane %v1861, 2
    %v1887 = vrot.slane %v1281, 2
    %v1888 = vsel %vm1872, %v1886, %v1887
    %v1889 = vrot.slane %v1862, 2
    %v1890 = vsel %vm1872, %v1884, %v1889
    %v1891 = vrot.slane %v1863, 2
    %v1892 = vsel %vm1872, %v1887, %v1891
    %s1897 = scalar_lea.vmem %s7, 1296
    %v1898 = vld [vmem:[%s1897] sm:$0xff]
    %v1899 = vld [vmem:[%s1897 + $0x8] sm:$0xff]
    %v1900 = vld [vmem:[%s1897 + $0x10] sm:$0xff]
    %v1901 = vld [vmem:[%s1897 + $0x18] sm:$0xff]
    %v1902 = vld [vmem:[%s1897 + $0x20] sm:$0xff]
    %v1903 = vld [vmem:[%s1897 + $0x28] sm:$0xff]
    %v1904 = vld [vmem:[%s1897 + $0x30] sm:$0xff]
    %v1905 = vld [vmem:[%s1897 + $0x38] sm:$0xff]
    %v1906 = vld [vmem:[%s1897 + $0x40] sm:$0xff]
    %v1907 = vld [vmem:[%s1897 + $0x48] sm:$0xff]
    %v1908 = vld [vmem:[%s1897 + $0x50] sm:$0xff]
    %v1909 = vld [vmem:[%s1897 + $0x58] sm:$0xff]
    %v1910 = vld [vmem:[%s1897 + $0x60] sm:$0xff]
    %v1911 = vld [vmem:[%s1897 + $0x68] sm:$0xff]
    %v1912 = vld [vmem:[%s1897 + $0x70] sm:$0xff]
    %v1913 = vld [vmem:[%s1897 + $0x78] sm:$0xff]
    %v1914 = vld [vmem:[%s1897 + $0x80] sm:$0xff]
    %v1915 = vld [vmem:[%s1897 + $0x88] sm:$0xff]
    %v1916 = vld [vmem:[%s1897 + $0x90] sm:$0xff]
    %v1917 = vld [vmem:[%s1897 + $0x98] sm:$0xff]
    %v1918 = vld [vmem:[%s1897 + $0xa0] sm:$0xff]
    %v1919 = vld [vmem:[%s1897 + $0xa8] sm:$0xff]
    %v1920 = vld [vmem:[%s1897 + $0xb0] sm:$0xff]
    %v1921 = vld [vmem:[%s1897 + $0xb8] sm:$0xff]
    %v1922 = vld [vmem:[%s1897 + $0xc0] sm:$0xff]
    %v1923 = vld [vmem:[%s1897 + $0xc8] sm:$0xff]
    %v1924 = vld [vmem:[%s1897 + $0xd0] sm:$0xff]
    %v1925 = vld [vmem:[%s1897 + $0xd8] sm:$0xff]
    %v1926 = vld [vmem:[%s1897 + $0xe0] sm:$0xff]
    %v1927 = vld [vmem:[%s1897 + $0xe8] sm:$0xff]
    %v1928 = vld [vmem:[%s1897 + $0xf0] sm:$0xff]
    %v1929 = vld [vmem:[%s1897 + $0xf8] sm:$0xff]
    %v1930 = vld [vmem:[%s1897 + $0x100] sm:$0xff]
    %v1931 = vld [vmem:[%s1897 + $0x108] sm:$0xff]
    %v1932 = vld [vmem:[%s1897 + $0x110] sm:$0xff]
    %v1933 = vld [vmem:[%s1897 + $0x118] sm:$0xff]
    %v1934 = vld [vmem:[%s1897 + $0x120] sm:$0xff]
    %v1935 = vld [vmem:[%s1897 + $0x128] sm:$0xff]
    %v1936 = vld [vmem:[%s1897 + $0x130] sm:$0xff]
    %v1937 = vld [vmem:[%s1897 + $0x138] sm:$0xff]
    %v1938 = vld [vmem:[%s1897 + $0x140] sm:$0xff]
    %v1939 = vld [vmem:[%s1897 + $0x148] sm:$0xff]
    %v1940 = vld [vmem:[%s1897 + $0x150] sm:$0xff]
    %v1941 = vld [vmem:[%s1897 + $0x158] sm:$0xff]
    %v1942 = vld [vmem:[%s1897 + $0x160] sm:$0xff]
    %v1943 = vld [vmem:[%s1897 + $0x168] sm:$0xff]
    %v1944 = vld [vmem:[%s1897 + $0x170] sm:$0xff]
    %v1945 = vld [vmem:[%s1897 + $0x178] sm:$0xff]
    %v1946 = vld [vmem:[%s1897 + $0x180] sm:$0xff]
    %v1947 = vld [vmem:[%s1897 + $0x188] sm:$0xff]
    %v1948 = vld [vmem:[%s1897 + $0x190] sm:$0xff]
    %v1949 = vld [vmem:[%s1897 + $0x198] sm:$0xff]
    %v1950 = vld [vmem:[%s1897 + $0x1a0] sm:$0xff]
    %v1951 = vld [vmem:[%s1897 + $0x1a8] sm:$0xff]
    %v1952 = vld [vmem:[%s1897 + $0x1b0] sm:$0xff]
    %v1953 = vld [vmem:[%s1897 + $0x1b8] sm:$0xff]
    %v1954 = vld [vmem:[%s1897 + $0x1c0] sm:$0xff]
    %v1955 = vld [vmem:[%s1897 + $0x1c8] sm:$0xff]
    %v1956 = vld [vmem:[%s1897 + $0x1d0] sm:$0xff]
    %v1957 = vld [vmem:[%s1897 + $0x1d8] sm:$0xff]
    %v1958 = vld [vmem:[%s1897 + $0x1e0] sm:$0xff]
    %v1959 = vld [vmem:[%s1897 + $0x1e8] sm:$0xff]
    %v1960 = vld [vmem:[%s1897 + $0x1f0] sm:$0xff]
    %v1961 = vld [vmem:[%s1897 + $0x1f8] sm:$0xff]
    %v1962 = vld [vmem:[%s1897 + $0x200] sm:$0xff]
    %v1963 = vld [vmem:[%s1897 + $0x208] sm:$0xff]
    %v1964 = vld [vmem:[%s1897 + $0x210] sm:$0xff]
    %v1965 = vld [vmem:[%s1897 + $0x218] sm:$0xff]
    %v1966 = vld [vmem:[%s1897 + $0x220] sm:$0xff]
    %v1967 = vld [vmem:[%s1897 + $0x228] sm:$0xff]
    %v1968 = vld [vmem:[%s1897 + $0x230] sm:$0xff]
    %v1969 = vld [vmem:[%s1897 + $0x238] sm:$0xff]
    %v1970 = vld [vmem:[%s1897 + $0x240] sm:$0xff]
    %v1971 = vld [vmem:[%s1897 + $0x248] sm:$0xff]
    %v1972 = vld [vmem:[%s1897 + $0x250] sm:$0xff]
    %v1973 = vld [vmem:[%s1897 + $0x258] sm:$0xff]
    %v1974 = vld [vmem:[%s1897 + $0x260] sm:$0xff]
    %v1975 = vld [vmem:[%s1897 + $0x268] sm:$0xff]
    %v1976 = vld [vmem:[%s1897 + $0x270] sm:$0xff]
    %v1977 = vld [vmem:[%s1897 + $0x278] sm:$0xff]
    %v1978 = vld [vmem:[%s1897 + $0x280] sm:$0xff]
    %v1979 = vsel %vm1263, %v1878, 0
    %v1981 = vsel %vm1263, %v1882, 0
    %v1983 = vsel %vm1263, %v1888, 0
    %v1985 = vsel %vm1263, %v1892, 0
    %1987 = vmatprep.subr.mxu0 %v1899
    %1988 = vmatpush1.msra.mxu0 %v1898
    %1989 = vmatprep.subr.mxu0 %v1902
    %1990 = vmatpush1.msra.mxu0 %v1901
    %1991 = vmatprep.subr.mxu0 %v1905
    %1992 = vmatpush1.msra.mxu0 %v1904
    %1993 = vmatprep.subr.mxu0 %v1908
    %1994 = vmatpush1.msra.mxu0 %v1907
    %1995 = vmatprep.subr.mxu0 %v1911
    %1996 = vmatpush1.msra.mxu0 %v1910
    %1997 = vmatprep.subr.mxu0 %v1914
    %1998 = vmatpush1.msra.mxu0 %v1913
    %1999 = vmatprep.subr.mxu0 %v1917
    %2000 = vmatpush1.msra.mxu0 %v1916
    %2001 = vmatprep.subr.mxu0 %v1920
    %2002 = vmatpush1.msra.mxu0 %v1919
    %2003 = vmatprep.subr.mxu0 %v1923
    %2004 = vmatpush1.msra.mxu0 %v1922
    %2005 = vmatprep.subr.mxu0 %v1926
    %2006 = vmatpush1.msra.mxu0 %v1925
    %2007 = vmatprep.subr.mxu0 %v1929
    %2008 = vmatpush1.msra.mxu0 %v1928
    %2009 = vmatprep.subr.mxu0 %v1932
    %2010 = vmatpush1.msra.mxu0 %v1931
    %2011 = vmatprep.subr.mxu0 %v1935
    %2012 = vmatpush1.msra.mxu0 %v1934
    %2013 = vmatprep.subr.mxu0 %v1938
    %2014 = vmatpush1.msra.mxu0 %v1937
    %2015 = vmatprep.subr.mxu0 %v1941
    %2016 = vmatpush1.msra.mxu0 %v1940
    %2017 = vmatprep.subr.mxu0 %v1944
    %2018 = vmatpush1.msra.mxu0 %v1943
    %2019 = vmatprep.subr.mxu0 %v1947
    %2020 = vmatpush1.msra.mxu0 %v1946
    %2021 = vmatprep.subr.mxu0 %v1950
    %2022 = vmatpush1.msra.mxu0 %v1949
    %2023 = vmatprep.subr.mxu0 %v1953
    %2024 = vmatpush1.msra.mxu0 %v1952
    %2025 = vmatprep.subr.mxu0 %v1956
    %2026 = vmatpush1.msra.mxu0 %v1955
    %2027 = vmatprep.subr.mxu0 %v1959
    %2028 = vmatpush1.msra.mxu0 %v1958
    %2029 = vmatprep.subr.mxu0 %v1962
    %2030 = vmatpush1.msra.mxu0 %v1961
    %2031 = vmatprep.subr.mxu0 %v1965
    %2032 = vmatpush1.msra.mxu0 %v1964
    %2033 = vmatprep.subr.mxu0 %v1968
    %2034 = vmatpush1.msra.mxu0 %v1967
    %2035 = vmatprep.subr.mxu0 %v1971
    %2036 = vmatpush1.msra.mxu0 %v1970
    %2037 = vmatprep.subr.mxu0 %v1974
    %2038 = vmatpush1.msra.mxu0 %v1973
    %2039 = vmatprep.subr.mxu0 %v1977
    %2040 = vmatpush1.msra.mxu0 %v1976
    %2041 = vmatprep.subr.mxu0 0.0
    %2042 = vmatpush1.msra.mxu0 0.0
    %2043 = vmatprep.subr.mxu0 0.0
    %2044 = vmatpush1.msra.mxu0 0.0
    %2045 = vmatprep.subr.mxu0 0.0
    %2046 = vmatpush1.msra.mxu0 0.0
    %2047 = vmatprep.subr.mxu0 0.0
    %2048 = vmatpush1.msra.mxu0 0.0
    %2049 = vmatprep.subr.mxu0 0.0
    %2050 = vmatpush1.msra.mxu0 0.0
    %2051 = vmatprep.mubr.f32.mxu0 %v1979
    %2052 = vmatmul.mubr.f32.gmra.mrb[0].mxu0 %v1875
    %v2053 = vpop.f32.mrb[0].mxu0
    %v2054 = vadd.f32 0.0, %v2053
    %v2055 = vpop.f32.mrb[0].mxu0
    %v2056 = vadd.f32 0.0, %v2055
    %2057 = vmatprep.mubr.f32.mxu0 %v1981
    %2058 = vmatmul.mubr.f32.gmra.mrb[0].mxu0 %v1880
    %v2059 = vpop.f32.mrb[0].mxu0
    %v2060 = vadd.f32 0.0, %v2059
    %v2061 = vpop.f32.mrb[0].mxu0
    %v2062 = vadd.f32 0.0, %v2061
    %2063 = vmatprep.mubr.f32.mxu0 %v1983
    %2064 = vmatmul.mubr.f32.gmra.mrb[0].mxu0 %v1885
    %v2065 = vpop.f32.mrb[0].mxu0
    %v2066 = vadd.f32 0.0, %v2065
    %v2067 = vpop.f32.mrb[0].mxu0
    %v2068 = vadd.f32 0.0, %v2067
    %2069 = vmatprep.mubr.f32.mxu0 %v1985
    %2070 = vmatmul.mubr.f32.gmra.mrb[0].mxu0 %v1890
    %v2071 = vpop.f32.mrb[0].mxu0
    %v2072 = vadd.f32 0.0, %v2071
    %v2073 = vpop.f32.mrb[0].mxu0
    %v2074 = vadd.f32 0.0, %v2073
    %2075 = vdwg.mxu0
    %2076 = vmatprep.subr.mxu0 0.0
    %2077 = vmatpush1.msra.mxu0 %v1900
    %2078 = vmatprep.subr.mxu0 0.0
    %2079 = vmatpush1.msra.mxu0 %v1903
    %2080 = vmatprep.subr.mxu0 0.0
    %2081 = vmatpush1.msra.mxu0 %v1906
    %2082 = vmatprep.subr.mxu0 0.0
    %2083 = vmatpush1.msra.mxu0 %v1909
    %2084 = vmatprep.subr.mxu0 0.0
    %2085 = vmatpush1.msra.mxu0 %v1912
    %2086 = vmatprep.subr.mxu0 0.0
    %2087 = vmatpush1.msra.mxu0 %v1915
    %2088 = vmatprep.subr.mxu0 0.0
    %2089 = vmatpush1.msra.mxu0 %v1918
    %2090 = vmatprep.subr.mxu0 0.0
    %2091 = vmatpush1.msra.mxu0 %v1921
    %2092 = vmatprep.subr.mxu0 0.0
    %2093 = vmatpush1.msra.mxu0 %v1924
    %2094 = vmatprep.subr.mxu0 0.0
    %2095 = vmatpush1.msra.mxu0 %v1927
    %2096 = vmatprep.subr.mxu0 0.0
    %2097 = vmatpush1.msra.mxu0 %v1930
    %2098 = vmatprep.subr.mxu0 0.0
    %2099 = vmatpush1.msra.mxu0 %v1933
    %2100 = vmatprep.subr.mxu0 0.0
    %2101 = vmatpush1.msra.mxu0 %v1936
    %2102 = vmatprep.subr.mxu0 0.0
    %2103 = vmatpush1.msra.mxu0 %v1939
    %2104 = vmatprep.subr.mxu0 0.0
    %2105 = vmatpush1.msra.mxu0 %v1942
    %2106 = vmatprep.subr.mxu0 0.0
    %2107 = vmatpush1.msra.mxu0 %v1945
    %2108 = vmatprep.subr.mxu0 0.0
    %2109 = vmatpush1.msra.mxu0 %v1948
    %2110 = vmatprep.subr.mxu0 0.0
    %2111 = vmatpush1.msra.mxu0 %v1951
    %2112 = vmatprep.subr.mxu0 0.0
    %2113 = vmatpush1.msra.mxu0 %v1954
    %2114 = vmatprep.subr.mxu0 0.0
    %2115 = vmatpush1.msra.mxu0 %v1957
    %2116 = vmatprep.subr.mxu0 0.0
    %2117 = vmatpush1.msra.mxu0 %v1960
    %2118 = vmatprep.subr.mxu0 0.0
    %2119 = vmatpush1.msra.mxu0 %v1963
    %2120 = vmatprep.subr.mxu0 0.0
    %2121 = vmatpush1.msra.mxu0 %v1966
    %2122 = vmatprep.subr.mxu0 0.0
    %2123 = vmatpush1.msra.mxu0 %v1969
    %2124 = vmatprep.subr.mxu0 0.0
    %2125 = vmatpush1.msra.mxu0 %v1972
    %2126 = vmatprep.subr.mxu0 0.0
    %2127 = vmatpush1.msra.mxu0 %v1975
    %2128 = vmatprep.subr.mxu0 0.0
    %2129 = vmatpush1.msra.mxu0 %v1978
    %2130 = vmatprep.subr.mxu0 0.0
    %2131 = vmatpush1.msra.mxu0 0.0
    %2132 = vmatprep.subr.mxu0 0.0
    %2133 = vmatpush1.msra.mxu0 0.0
    %2134 = vmatprep.subr.mxu0 0.0
    %2135 = vmatpush1.msra.mxu0 0.0
    %2136 = vmatprep.subr.mxu0 0.0
    %2137 = vmatpush1.msra.mxu0 0.0
    %2138 = vmatprep.subr.mxu0 0.0
    %2139 = vmatpush1.msra.mxu0 0.0
    %2140 = vmatprep.mubr.f32.mxu0 %v1979
    %2141 = vmatmul.mubr.f32.gmra.mrb[0].mxu0 %v1875
    %v2142 = vpop.f32.mrb[0].mxu0
    %v2143 = vadd.f32 0.0, %v2142
    %v2144 = vpop.f32.mrb[0].mxu0
    %2145 = vmatprep.mubr.f32.mxu0 %v1981
    %2146 = vmatmul.mubr.f32.gmra.mrb[0].mxu0 %v1880
    %v2147 = vpop.f32.mrb[0].mxu0
    %v2148 = vadd.f32 0.0, %v2147
    %v2149 = vpop.f32.mrb[0].mxu0
    %2150 = vmatprep.mubr.f32.mxu0 %v1983
    %2151 = vmatmul.mubr.f32.gmra.mrb[0].mxu0 %v1885
    %v2152 = vpop.f32.mrb[0].mxu0
    %v2153 = vadd.f32 0.0, %v2152
    %v2154 = vpop.f32.mrb[0].mxu0
    %2155 = vmatprep.mubr.f32.mxu0 %v1985
    %2156 = vmatmul.mubr.f32.gmra.mrb[0].mxu0 %v1890
    %v2157 = vpop.f32.mrb[0].mxu0
    %v2158 = vadd.f32 0.0, %v2157
    %v2159 = vpop.f32.mrb[0].mxu0
    %2160 = vdwg.mxu0
    %v2161 = vadd.f32 %v1749, %v2054
    %v2162 = vadd.f32 %v1751, %v2056
    %v2163 = vadd.f32 %v1838, %v2143
    %v2164 = vadd.f32 %v1755, %v2060
    %v2165 = vadd.f32 %v1757, %v2062
    %v2166 = vadd.f32 %v1843, %v2148
    %v2167 = vadd.f32 %v1761, %v2066
    %v2168 = vadd.f32 %v1763, %v2068
    %v2169 = vadd.f32 %v1848, %v2153
    %v2170 = vadd.f32 %v1767, %v2072
    %v2171 = vadd.f32 %v1769, %v2074
    %v2172 = vadd.f32 %v1853, %v2158
    %v2173 = vtanh.pop %v2161
    %v2174 = vtanh.pop %v2162
    %v2175 = vtanh.pop %v2163
    %v2176 = vtanh.pop %v2164
    %v2177 = vtanh.pop %v2165
    %v2178 = vtanh.pop %v2166
    %v2179 = vtanh.pop %v2167
    %v2180 = vtanh.pop %v2168
    %v2181 = vtanh.pop %v2169
    %v2182 = vtanh.pop %v2170
    %v2183 = vtanh.pop %v2171
    %v2184 = vtanh.pop %v2172
    %v2185 = vld [vmem:[%s8] sm:$0xff]
    %v2186 = vld [vmem:[%s8 + $0x8] sm:$0xff]
    %v2187 = vld [vmem:[%s8 + $0x10] sm:$0xff]
    %v2188 = vld [vmem:[%s8 + $0x18] sm:$0xff]
    %v2189 = vld [vmem:[%s8 + $0x20] sm:$0xff]
    %v2190 = vld [vmem:[%s8 + $0x28] sm:$0xff]
    %v2191 = vld [vmem:[%s8 + $0x30] sm:$0xff]
    %v2192 = vld [vmem:[%s8 + $0x38] sm:$0xff]
    %v2194 = vsel %vm67, %v2185, 0
    %v2197 = vsel %vm67, %v2186, 0
    %v2200 = vsel %vm67, %v2187, 0
    %v2203 = vsel %vm67, %v2188, 0
    %v2206 = vsel %vm67, %v2189, 0
    %v2209 = vsel %vm67, %v2190, 0
    %v2212 = vsel %vm67, %v2191, 0
    %v2215 = vsel %vm67, %v2192, 0
    %2217 = vmatprep.subr.mxu0 %v2174
    %2218 = vmatpush1.msra.mxu0 %v2173
    %2219 = vmatprep.subr.mxu0 %v2177
    %2220 = vmatpush1.msra.mxu0 %v2176
    %2221 = vmatprep.subr.mxu0 %v2180
    %2222 = vmatpush1.msra.mxu0 %v2179
    %2223 = vmatprep.subr.mxu0 %v2183
    %2224 = vmatpush1.msra.mxu0 %v2182
    %2225 = vmatprep.subr.mxu0 0.0
    %2226 = vmatpush1.msra.mxu0 0.0
    %2227 = vmatprep.subr.mxu0 0.0
    %2228 = vmatpush1.msra.mxu0 0.0
    %2229 = vmatprep.subr.mxu0 0.0
    %2230 = vmatpush1.msra.mxu0 0.0
    %2231 = vmatprep.subr.mxu0 0.0
    %2232 = vmatpush1.msra.mxu0 0.0
    %2233 = vmatprep.subr.mxu0 0.0
    %2234 = vmatpush1.msra.mxu0 0.0
    %2235 = vmatprep.subr.mxu0 0.0
    %2236 = vmatpush1.msra.mxu0 0.0
    %2237 = vmatprep.subr.mxu0 0.0
    %2238 = vmatpush1.msra.mxu0 0.0
    %2239 = vmatprep.subr.mxu0 0.0
    %2240 = vmatpush1.msra.mxu0 0.0
    %2241 = vmatprep.subr.mxu0 0.0
    %2242 = vmatpush1.msra.mxu0 0.0
    %2243 = vmatprep.subr.mxu0 0.0
    %2244 = vmatpush1.msra.mxu0 0.0
    %2245 = vmatprep.subr.mxu0 0.0
    %2246 = vmatpush1.msra.mxu0 0.0
    %2247 = vmatprep.subr.mxu0 0.0
    %2248 = vmatpush1.msra.mxu0 0.0
    %2249 = vmatprep.subr.mxu0 0.0
    %2250 = vmatpush1.msra.mxu0 0.0
    %2251 = vmatprep.subr.mxu0 0.0
    %2252 = vmatpush1.msra.mxu0 0.0
    %2253 = vmatprep.subr.mxu0 0.0
    %2254 = vmatpush1.msra.mxu0 0.0
    %2255 = vmatprep.subr.mxu0 0.0
    %2256 = vmatpush1.msra.mxu0 0.0
    %2257 = vmatprep.subr.mxu0 0.0
    %2258 = vmatpush1.msra.mxu0 0.0
    %2259 = vmatprep.subr.mxu0 0.0
    %2260 = vmatpush1.msra.mxu0 0.0
    %2261 = vmatprep.subr.mxu0 0.0
    %2262 = vmatpush1.msra.mxu0 0.0
    %2263 = vmatprep.subr.mxu0 0.0
    %2264 = vmatpush1.msra.mxu0 0.0
    %2265 = vmatprep.subr.mxu0 0.0
    %2266 = vmatpush1.msra.mxu0 0.0
    %2267 = vmatprep.subr.mxu0 0.0
    %2268 = vmatpush1.msra.mxu0 0.0
    %2269 = vmatprep.subr.mxu0 0.0
    %2270 = vmatpush1.msra.mxu0 0.0
    %2271 = vmatprep.subr.mxu0 0.0
    %2272 = vmatpush1.msra.mxu0 0.0
    %2273 = vmatprep.subr.mxu0 0.0
    %2274 = vmatpush1.msra.mxu0 0.0
    %2275 = vmatprep.subr.mxu0 0.0
    %2276 = vmatpush1.msra.mxu0 0.0
    %2277 = vmatprep.subr.mxu0 0.0
    %2278 = vmatpush1.msra.mxu0 0.0
    %2279 = vmatprep.subr.mxu0 0.0
    %2280 = vmatpush1.msra.mxu0 0.0
    %2281 = vmatprep.mubr.f32.mxu0 0.0
    %2282 = vmatmul.mubr.f32.gmra.mrb[0].mxu0 %v2194
    %v2283 = vpop.f32.mrb[0].mxu0
    %v2284 = vadd.f32 0.0, %v2283
    %v2285 = vpop.f32.mrb[0].mxu0
    %v2286 = vadd.f32 0.0, %v2285
    %2287 = vmatprep.mubr.f32.mxu0 0.0
    %2288 = vmatmul.mubr.f32.gmra.mrb[0].mxu0 %v2197
    %v2289 = vpop.f32.mrb[0].mxu0
    %v2290 = vadd.f32 0.0, %v2289
    %v2291 = vpop.f32.mrb[0].mxu0
    %v2292 = vadd.f32 0.0, %v2291
    %2293 = vmatprep.mubr.f32.mxu0 0.0
    %2294 = vmatmul.mubr.f32.gmra.mrb[0].mxu0 %v2200
    %v2295 = vpop.f32.mrb[0].mxu0
    %v2296 = vadd.f32 0.0, %v2295
    %v2297 = vpop.f32.mrb[0].mxu0
    %v2298 = vadd.f32 0.0, %v2297
    %2299 = vmatprep.mubr.f32.mxu0 0.0
    %2300 = vmatmul.mubr.f32.gmra.mrb[0].mxu0 %v2203
    %v2301 = vpop.f32.mrb[0].mxu0
    %v2302 = vadd.f32 0.0, %v2301
    %v2303 = vpop.f32.mrb[0].mxu0
    %v2304 = vadd.f32 0.0, %v2303
    %2305 = vmatprep.mubr.f32.mxu0 0.0
    %2306 = vmatmul.mubr.f32.gmra.mrb[0].mxu0 %v2206
    %v2307 = vpop.f32.mrb[0].mxu0
    %v2308 = vadd.f32 0.0, %v2307
    %v2309 = vpop.f32.mrb[0].mxu0
    %v2310 = vadd.f32 0.0, %v2309
    %2311 = vmatprep.mubr.f32.mxu0 0.0
    %2312 = vmatmul.mubr.f32.gmra.mrb[0].mxu0 %v2209
    %v2313 = vpop.f32.mrb[0].mxu0
    %v2314 = vadd.f32 0.0, %v2313
    %v2315 = vpop.f32.mrb[0].mxu0
    %v2316 = vadd.f32 0.0, %v2315
    %2317 = vmatprep.mubr.f32.mxu0 0.0
    %2318 = vmatmul.mubr.f32.gmra.mrb[0].mxu0 %v2212
    %v2319 = vpop.f32.mrb[0].mxu0
    %v2320 = vadd.f32 0.0, %v2319
    %v2321 = vpop.f32.mrb[0].mxu0
    %v2322 = vadd.f32 0.0, %v2321
    %2323 = vmatprep.mubr.f32.mxu0 0.0
    %2324 = vmatmul.mubr.f32.gmra.mrb[0].mxu0 %v2215
    %v2325 = vpop.f32.mrb[0].mxu0
    %v2326 = vadd.f32 0.0, %v2325
    %v2327 = vpop.f32.mrb[0].mxu0
    %v2328 = vadd.f32 0.0, %v2327
    %2329 = vdwg.mxu0
    %2330 = vmatprep.subr.mxu0 0.0
    %2331 = vmatpush1.msra.mxu0 %v2175
    %2332 = vmatprep.subr.mxu0 0.0
    %2333 = vmatpush1.msra.mxu0 %v2178
    %2334 = vmatprep.subr.mxu0 0.0
    %2335 = vmatpush1.msra.mxu0 %v2181
    %2336 = vmatprep.subr.mxu0 0.0
    %2337 = vmatpush1.msra.mxu0 %v2184
    %2338 = vmatprep.subr.mxu0 0.0
    %2339 = vmatpush1.msra.mxu0 0.0
    %2340 = vmatprep.subr.mxu0 0.0
    %2341 = vmatpush1.msra.mxu0 0.0
    %2342 = vmatprep.subr.mxu0 0.0
    %2343 = vmatpush1.msra.mxu0 0.0
    %2344 = vmatprep.subr.mxu0 0.0
    %2345 = vmatpush1.msra.mxu0 0.0
    %2346 = vmatprep.subr.mxu0 0.0
    %2347 = vmatpush1.msra.mxu0 0.0
    %2348 = vmatprep.subr.mxu0 0.0
    %2349 = vmatpush1.msra.mxu0 0.0
    %2350 = vmatprep.subr.mxu0 0.0
    %2351 = vmatpush1.msra.mxu0 0.0
    %2352 = vmatprep.subr.mxu0 0.0
    %2353 = vmatpush1.msra.mxu0 0.0
    %2354 = vmatprep.subr.mxu0 0.0
    %2355 = vmatpush1.msra.mxu0 0.0
    %2356 = vmatprep.subr.mxu0 0.0
    %2357 = vmatpush1.msra.mxu0 0.0
    %2358 = vmatprep.subr.mxu0 0.0
    %2359 = vmatpush1.msra.mxu0 0.0
    %2360 = vmatprep.subr.mxu0 0.0
    %2361 = vmatpush1.msra.mxu0 0.0
    %2362 = vmatprep.subr.mxu0 0.0
    %2363 = vmatpush1.msra.mxu0 0.0
    %2364 = vmatprep.subr.mxu0 0.0
    %2365 = vmatpush1.msra.mxu0 0.0
    %2366 = vmatprep.subr.mxu0 0.0
    %2367 = vmatpush1.msra.mxu0 0.0
    %2368 = vmatprep.subr.mxu0 0.0
    %2369 = vmatpush1.msra.mxu0 0.0
    %2370 = vmatprep.subr.mxu0 0.0
    %2371 = vmatpush1.msra.mxu0 0.0
    %2372 = vmatprep.subr.mxu0 0.0
    %2373 = vmatpush1.msra.mxu0 0.0
    %2374 = vmatprep.subr.mxu0 0.0
    %2375 = vmatpush1.msra.mxu0 0.0
    %2376 = vmatprep.subr.mxu0 0.0
    %2377 = vmatpush1.msra.mxu0 0.0
    %2378 = vmatprep.subr.mxu0 0.0
    %2379 = vmatpush1.msra.mxu0 0.0
    %2380 = vmatprep.subr.mxu0 0.0
    %2381 = vmatpush1.msra.mxu0 0.0
    %2382 = vmatprep.subr.mxu0 0.0
    %2383 = vmatpush1.msra.mxu0 0.0
    %2384 = vmatprep.subr.mxu0 0.0
    %2385 = vmatpush1.msra.mxu0 0.0
    %2386 = vmatprep.subr.mxu0 0.0
    %2387 = vmatpush1.msra.mxu0 0.0
    %2388 = vmatprep.subr.mxu0 0.0
    %2389 = vmatpush1.msra.mxu0 0.0
    %2390 = vmatprep.subr.mxu0 0.0
    %2391 = vmatpush1.msra.mxu0 0.0
    %2392 = vmatprep.subr.mxu0 0.0
    %2393 = vmatpush1.msra.mxu0 0.0
    %2394 = vmatprep.mubr.f32.mxu0 0.0
    %2395 = vmatmul.mubr.f32.gmra.mrb[0].mxu0 %v2194
    %v2396 = vpop.f32.mrb[0].mxu0
    %v2397 = vadd.f32 0.0, %v2396
    %v2398 = vpop.f32.mrb[0].mxu0
    %2399 = vmatprep.mubr.f32.mxu0 0.0
    %2400 = vmatmul.mubr.f32.gmra.mrb[0].mxu0 %v2197
    %v2401 = vpop.f32.mrb[0].mxu0
    %v2402 = vadd.f32 0.0, %v2401
    %v2403 = vpop.f32.mrb[0].mxu0
    %2404 = vmatprep.mubr.f32.mxu0 0.0
    %2405 = vmatmul.mubr.f32.gmra.mrb[0].mxu0 %v2200
    %v2406 = vpop.f32.mrb[0].mxu0
    %v2407 = vadd.f32 0.0, %v2406
    %v2408 = vpop.f32.mrb[0].mxu0
    %2409 = vmatprep.mubr.f32.mxu0 0.0
    %2410 = vmatmul.mubr.f32.gmra.mrb[0].mxu0 %v2203
    %v2411 = vpop.f32.mrb[0].mxu0
    %v2412 = vadd.f32 0.0, %v2411
    %v2413 = vpop.f32.mrb[0].mxu0
    %2414 = vmatprep.mubr.f32.mxu0 0.0
    %2415 = vmatmul.mubr.f32.gmra.mrb[0].mxu0 %v2206
    %v2416 = vpop.f32.mrb[0].mxu0
    %v2417 = vadd.f32 0.0, %v2416
    %v2418 = vpop.f32.mrb[0].mxu0
    %2419 = vmatprep.mubr.f32.mxu0 0.0
    %2420 = vmatmul.mubr.f32.gmra.mrb[0].mxu0 %v2209
    %v2421 = vpop.f32.mrb[0].mxu0
    %v2422 = vadd.f32 0.0, %v2421
    %v2423 = vpop.f32.mrb[0].mxu0
    %2424 = vmatprep.mubr.f32.mxu0 0.0
    %2425 = vmatmul.mubr.f32.gmra.mrb[0].mxu0 %v2212
    %v2426 = vpop.f32.mrb[0].mxu0
    %v2427 = vadd.f32 0.0, %v2426
    %v2428 = vpop.f32.mrb[0].mxu0
    %2429 = vmatprep.mubr.f32.mxu0 0.0
    %2430 = vmatmul.mubr.f32.gmra.mrb[0].mxu0 %v2215
    %v2431 = vpop.f32.mrb[0].mxu0
    %v2432 = vadd.f32 0.0, %v2431
    %v2433 = vpop.f32.mrb[0].mxu0
    %2434 = vdwg.mxu0
    %vm2435 = vcmp.lt.s32.totalorder %v1211, 272
    %vm2436 = vmand %vm1212, %vm2435
    %2437 = vst.msk [vmem:[#allocation5] ss:$8 sm:$0x7] %vm2436, 0.0
    %2438 = vst.msk [vmem:[#allocation5] ss:$8 sm:$0x0] %vm2436, 0.0
    %s2439 = scalar_lea.vmem [#allocation5], 120
    %2440 = vst.msk [vmem:[%s2439] ss:$8 sm:$0x7] %vm2436, 0.0
    %2441 = vst.msk [vmem:[%s2439] ss:$8 sm:$0x0] %vm2436, 0.0
    %s2442 = scalar_lea.vmem [#allocation5], 97
    %2443 = vst.msk [vmem:[%s2442] ss:$8 sm:$0x7] %vm2436, 0.0
    %2444 = vst.msk [vmem:[%s2442] ss:$8 sm:$0x0] %vm2436, 0.0
    %s2445 = scalar_lea.vmem [#allocation5], 217
    %2446 = vst.msk [vmem:[%s2445] ss:$8 sm:$0x7] %vm2436, 0.0
    %2447 = vst.msk [vmem:[%s2445] ss:$8 sm:$0x0] %vm2436, 0.0
    %v2472 = vrot.slane %v2284, 7
    %v2473 = vrot.slane %v2286, 7
    %v2474 = vrot.slane %v2397, 7
    %v2475 = vrot.slane %v2290, 7
    %v2476 = vsel %vm1234, %v2472, %v2475
    %v2477 = vrot.slane %v2292, 7
    %v2478 = vsel %vm1234, %v2473, %v2477
    %v2479 = vrot.slane %v2402, 7
    %v2480 = vsel %vm1234, %v2474, %v2479
    %v2481 = vrot.slane %v2296, 7
    %v2482 = vsel %vm1234, %v2475, %v2481
    %v2483 = vrot.slane %v2298, 7
    %v2484 = vsel %vm1234, %v2477, %v2483
    %v2485 = vrot.slane %v2407, 7
    %v2486 = vsel %vm1234, %v2479, %v2485
    %v2487 = vrot.slane %v2302, 7
    %v2488 = vsel %vm1234, %v2481, %v2487
    %v2489 = vrot.slane %v2304, 7
    %v2490 = vsel %vm1234, %v2483, %v2489
    %v2491 = vrot.slane %v2412, 7
    %v2492 = vsel %vm1234, %v2485, %v2491
    %v2493 = vrot.slane %v2308, 7
    %v2494 = vrot.slane %v2310, 7
    %v2495 = vrot.slane %v2417, 7
    %v2496 = vrot.slane %v2314, 7
    %v2497 = vsel %vm1234, %v2493, %v2496
    %v2498 = vrot.slane %v2316, 7
    %v2499 = vsel %vm1234, %v2494, %v2498
    %v2500 = vrot.slane %v2422, 7
    %v2501 = vsel %vm1234, %v2495, %v2500
    %v2502 = vrot.slane %v2320, 7
    %v2503 = vsel %vm1234, %v2496, %v2502
    %v2504 = vrot.slane %v2322, 7
    %v2505 = vsel %vm1234, %v2498, %v2504
    %v2506 = vrot.slane %v2427, 7
    %v2507 = vsel %vm1234, %v2500, %v2506
    %v2508 = vrot.slane %v2326, 7
    %v2509 = vsel %vm1234, %v2502, %v2508
    %v2510 = vrot.slane %v2328, 7
    %v2511 = vsel %vm1234, %v2504, %v2510
    %v2512 = vrot.slane %v2432, 7
    %v2513 = vsel %vm1234, %v2506, %v2512
    %2544 = vst [vmem:[#allocation5] sm:$0xfe] %v2472
    %2545 = vst [vmem:[#allocation5 + $0x8] sm:$0xfe] %v2473
    %vm2546 = vcmask 130049
    %2547 = vst.msk [vmem:[#allocation5 + $0x10] sm:$0xfe] %vm2546, %v2474
    %2548 = vst [vmem:[#allocation5 + $0x18] sm:$0xff] %v2476
    %2549 = vst [vmem:[#allocation5 + $0x20] sm:$0xff] %v2478
    %2550 = vst.msk [vmem:[#allocation5 + $0x28] sm:$0xff] %vm1109, %v2480
    %2551 = vst [vmem:[#allocation5 + $0x30] sm:$0xff] %v2482
    %2552 = vst [vmem:[#allocation5 + $0x38] sm:$0xff] %v2484
    %2553 = vst.msk [vmem:[#allocation5 + $0x40] sm:$0xff] %vm1109, %v2486
    %2554 = vst [vmem:[#allocation5 + $0x48] sm:$0xff] %v2488
    %2555 = vst [vmem:[#allocation5 + $0x50] sm:$0xff] %v2490
    %2556 = vst.msk [vmem:[#allocation5 + $0x58] sm:$0xff] %vm1109, %v2492
    %2557 = vst [vmem:[#allocation5 + $0x60] sm:$0x1] %v2487
    %2558 = vst [vmem:[#allocation5 + $0x68] sm:$0x1] %v2489
    %vm2559 = vcmask 122880
    %2560 = vst.msk [vmem:[#allocation5 + $0x70] sm:$0x1] %vm2559, %v2491
    %2561 = vst [vmem:[#allocation5 + $0x78] sm:$0xfe] %v2493
    %2562 = vst [vmem:[#allocation5 + $0x80] sm:$0xfe] %v2494
    %2563 = vst.msk [vmem:[#allocation5 + $0x88] sm:$0xfe] %vm2546, %v2495
    %2564 = vst [vmem:[#allocation5 + $0x90] sm:$0xff] %v2497
    %2565 = vst [vmem:[#allocation5 + $0x98] sm:$0xff] %v2499
    %2566 = vst.msk [vmem:[#allocation5 + $0xa0] sm:$0xff] %vm1109, %v2501
    %2567 = vst [vmem:[#allocation5 + $0xa8] sm:$0xff] %v2503
    %2568 = vst [vmem:[#allocation5 + $0xb0] sm:$0xff] %v2505
    %2569 = vst.msk [vmem:[#allocation5 + $0xb8] sm:$0xff] %vm1109, %v2507
    %2570 = vst [vmem:[#allocation5 + $0xc0] sm:$0xff] %v2509
    %2571 = vst [vmem:[#allocation5 + $0xc8] sm:$0xff] %v2511
    %2572 = vst.msk [vmem:[#allocation5 + $0xd0] sm:$0xff] %vm1109, %v2513
    %2573 = vst [vmem:[#allocation5 + $0xd8] sm:$0x1] %v2508
    %2574 = vst [vmem:[#allocation5 + $0xe0] sm:$0x1] %v2510
    %2575 = vst.msk [vmem:[#allocation5 + $0xe8] sm:$0x1] %vm2559, %v2512
    %v2576 = vld [vmem:[#allocation5] sm:$0xff]
    %v2577 = vld [vmem:[#allocation5 + $0x8] sm:$0xff]
    %v2578 = vld [vmem:[#allocation5 + $0x10] sm:$0xff]
    %v2579 = vld [vmem:[#allocation5 + $0x18] sm:$0xff]
    %v2580 = vld [vmem:[#allocation5 + $0x20] sm:$0xff]
    %v2581 = vld [vmem:[#allocation5 + $0x28] sm:$0xff]
    %v2582 = vld [vmem:[#allocation5 + $0x30] sm:$0xff]
    %v2583 = vld [vmem:[#allocation5 + $0x38] sm:$0xff]
    %v2584 = vld [vmem:[#allocation5 + $0x40] sm:$0xff]
    %v2585 = vld [vmem:[#allocation5 + $0x48] sm:$0xff]
    %v2586 = vld [vmem:[#allocation5 + $0x50] sm:$0xff]
    %v2587 = vld [vmem:[#allocation5 + $0x58] sm:$0xff]
    %v2588 = vld [vmem:[#allocation5 + $0x78] sm:$0xff]
    %v2589 = vld [vmem:[#allocation5 + $0x80] sm:$0xff]
    %v2590 = vld [vmem:[#allocation5 + $0x88] sm:$0xff]
    %v2591 = vld [vmem:[#allocation5 + $0x90] sm:$0xff]
    %v2592 = vld [vmem:[#allocation5 + $0x98] sm:$0xff]
    %v2593 = vld [vmem:[#allocation5 + $0xa0] sm:$0xff]
    %v2594 = vld [vmem:[#allocation5 + $0xa8] sm:$0xff]
    %v2595 = vld [vmem:[#allocation5 + $0xb0] sm:$0xff]
    %v2596 = vld [vmem:[#allocation5 + $0xb8] sm:$0xff]
    %v2597 = vld [vmem:[#allocation5 + $0xc0] sm:$0xff]
    %v2598 = vld [vmem:[#allocation5 + $0xc8] sm:$0xff]
    %v2599 = vld [vmem:[#allocation5 + $0xd0] sm:$0xff]
    %v2600 = vld [vmem:[%s9] sm:$0xff]
    %v2601 = vld [vmem:[%s9 + $0x8] sm:$0xff]
    %v2602 = vld [vmem:[%s9 + $0x10] sm:$0xff]
    %v2603 = vld [vmem:[%s9 + $0x18] sm:$0xff]
    %v2604 = vld [vmem:[%s9 + $0x20] sm:$0xff]
    %v2605 = vld [vmem:[%s9 + $0x28] sm:$0xff]
    %v2606 = vld [vmem:[%s9 + $0x30] sm:$0xff]
    %v2607 = vld [vmem:[%s9 + $0x38] sm:$0xff]
    %v2608 = vld [vmem:[%s9 + $0x40] sm:$0xff]
    %v2609 = vld [vmem:[%s9 + $0x48] sm:$0xff]
    %v2610 = vld [vmem:[%s9 + $0x50] sm:$0xff]
    %v2611 = vld [vmem:[%s9 + $0x58] sm:$0xff]
    %v2612 = vld [vmem:[%s9 + $0x60] sm:$0xff]
    %v2613 = vld [vmem:[%s9 + $0x68] sm:$0xff]
    %v2614 = vld [vmem:[%s9 + $0x70] sm:$0xff]
    %v2615 = vld [vmem:[%s9 + $0x78] sm:$0xff]
    %v2616 = vld [vmem:[%s9 + $0x80] sm:$0xff]
    %v2617 = vld [vmem:[%s9 + $0x88] sm:$0xff]
    %v2618 = vld [vmem:[%s9 + $0x90] sm:$0xff]
    %v2619 = vld [vmem:[%s9 + $0x98] sm:$0xff]
    %v2620 = vld [vmem:[%s9 + $0xa0] sm:$0xff]
    %v2621 = vld [vmem:[%s9 + $0xa8] sm:$0xff]
    %v2622 = vld [vmem:[%s9 + $0xb0] sm:$0xff]
    %v2623 = vld [vmem:[%s9 + $0xb8] sm:$0xff]
    %v2624 = vld [vmem:[%s9 + $0xc0] sm:$0xff]
    %v2625 = vld [vmem:[%s9 + $0xc8] sm:$0xff]
    %v2626 = vld [vmem:[%s9 + $0xd0] sm:$0xff]
    %v2627 = vld [vmem:[%s9 + $0xd8] sm:$0xff]
    %v2628 = vld [vmem:[%s9 + $0xe0] sm:$0xff]
    %v2629 = vld [vmem:[%s9 + $0xe8] sm:$0xff]
    %v2630 = vld [vmem:[%s9 + $0xf0] sm:$0xff]
    %v2631 = vld [vmem:[%s9 + $0xf8] sm:$0xff]
    %v2632 = vld [vmem:[%s9 + $0x100] sm:$0xff]
    %v2633 = vld [vmem:[%s9 + $0x108] sm:$0xff]
    %v2634 = vld [vmem:[#allocation5] sm:$0xfe]
    %v2635 = vld [vmem:[#allocation5 + $0x8] sm:$0xfe]
    %v2636 = vld [vmem:[#allocation5 + $0x10] sm:$0xfe]
    %v2637 = vld [vmem:[#allocation5 + $0x60] sm:$0x1]
    %v2638 = vld [vmem:[#allocation5 + $0x68] sm:$0x1]
    %v2639 = vld [vmem:[#allocation5 + $0x70] sm:$0x1]
    %v2640 = vld [vmem:[#allocation5 + $0x78] sm:$0xfe]
    %v2641 = vld [vmem:[#allocation5 + $0x80] sm:$0xfe]
    %v2642 = vld [vmem:[#allocation5 + $0x88] sm:$0xfe]
    %v2643 = vld [vmem:[#allocation5 + $0xd8] sm:$0x1]
    %v2644 = vld [vmem:[#allocation5 + $0xe0] sm:$0x1]
    %v2645 = vld [vmem:[#allocation5 + $0xe8] sm:$0x1]
    %v2676 = vrot.slane %v2634, 1
    %v2677 = vrot.slane %v2579, 1
    %v2678 = vsel %vm1383, %v2676, %v2677
    %v2679 = vrot.slane %v2635, 1
    %v2680 = vrot.slane %v2580, 1
    %v2681 = vsel %vm1383, %v2679, %v2680
    %v2682 = vrot.slane %v2636, 1
    %v2683 = vrot.slane %v2581, 1
    %v2684 = vsel %vm1383, %v2682, %v2683
    %v2685 = vrot.slane %v2582, 1
    %v2686 = vsel %vm1383, %v2677, %v2685
    %v2687 = vrot.slane %v2583, 1
    %v2688 = vsel %vm1383, %v2680, %v2687
    %v2689 = vrot.slane %v2584, 1
    %v2690 = vsel %vm1383, %v2683, %v2689
    %v2691 = vrot.slane %v2585, 1
    %v2692 = vsel %vm1383, %v2685, %v2691
    %v2693 = vrot.slane %v2586, 1
    %v2694 = vsel %vm1383, %v2687, %v2693
    %v2695 = vrot.slane %v2587, 1
    %v2696 = vsel %vm1383, %v2689, %v2695
    %v2697 = vrot.slane %v2637, 1
    %v2698 = vsel %vm1383, %v2691, %v2697
    %v2699 = vrot.slane %v2638, 1
    %v2700 = vsel %vm1383, %v2693, %v2699
    %v2701 = vrot.slane %v2639, 1
    %v2702 = vsel %vm1383, %v2695, %v2701
    %v2703 = vrot.slane %v2640, 1
    %v2704 = vrot.slane %v2591, 1
    %v2705 = vsel %vm1383, %v2703, %v2704
    %v2706 = vrot.slane %v2641, 1
    %v2707 = vrot.slane %v2592, 1
    %v2708 = vsel %vm1383, %v2706, %v2707
    %v2709 = vrot.slane %v2642, 1
    %v2710 = vrot.slane %v2593, 1
    %v2711 = vsel %vm1383, %v2709, %v2710
    %v2712 = vrot.slane %v2594, 1
    %v2713 = vsel %vm1383, %v2704, %v2712
    %v2714 = vrot.slane %v2595, 1
    %v2715 = vsel %vm1383, %v2707, %v2714
    %v2716 = vrot.slane %v2596, 1
    %v2717 = vsel %vm1383, %v2710, %v2716
    %v2718 = vrot.slane %v2597, 1
    %v2719 = vsel %vm1383, %v2712, %v2718
    %v2720 = vrot.slane %v2598, 1
    %v2721 = vsel %vm1383, %v2714, %v2720
    %v2722 = vrot.slane %v2599, 1
    %v2723 = vsel %vm1383, %v2716, %v2722
    %v2724 = vrot.slane %v2643, 1
    %v2725 = vsel %vm1383, %v2718, %v2724
    %v2726 = vrot.slane %v2644, 1
    %v2727 = vsel %vm1383, %v2720, %v2726
    %v2728 = vrot.slane %v2645, 1
    %v2729 = vsel %vm1383, %v2722, %v2728
    %s2746 = scalar_lea.vmem %s9, 272
    %v2747 = vld [vmem:[%s2746] sm:$0xff]
    %v2748 = vld [vmem:[%s2746 + $0x8] sm:$0xff]
    %v2749 = vld [vmem:[%s2746 + $0x10] sm:$0xff]
    %v2750 = vld [vmem:[%s2746 + $0x18] sm:$0xff]
    %v2751 = vld [vmem:[%s2746 + $0x20] sm:$0xff]
    %v2752 = vld [vmem:[%s2746 + $0x28] sm:$0xff]
    %v2753 = vld [vmem:[%s2746 + $0x30] sm:$0xff]
    %v2754 = vld [vmem:[%s2746 + $0x38] sm:$0xff]
    %v2755 = vld [vmem:[%s2746 + $0x40] sm:$0xff]
    %v2756 = vld [vmem:[%s2746 + $0x48] sm:$0xff]
    %v2757 = vld [vmem:[%s2746 + $0x50] sm:$0xff]
    %v2758 = vld [vmem:[%s2746 + $0x58] sm:$0xff]
    %v2759 = vld [vmem:[%s2746 + $0x60] sm:$0xff]
    %v2760 = vld [vmem:[%s2746 + $0x68] sm:$0xff]
    %v2761 = vld [vmem:[%s2746 + $0x70] sm:$0xff]
    %v2762 = vld [vmem:[%s2746 + $0x78] sm:$0xff]
    %v2763 = vld [vmem:[%s2746 + $0x80] sm:$0xff]
    %v2764 = vld [vmem:[%s2746 + $0x88] sm:$0xff]
    %v2765 = vld [vmem:[%s2746 + $0x90] sm:$0xff]
    %v2766 = vld [vmem:[%s2746 + $0x98] sm:$0xff]
    %v2767 = vld [vmem:[%s2746 + $0xa0] sm:$0xff]
    %v2768 = vld [vmem:[%s2746 + $0xa8] sm:$0xff]
    %v2769 = vld [vmem:[%s2746 + $0xb0] sm:$0xff]
    %v2770 = vld [vmem:[%s2746 + $0xb8] sm:$0xff]
    %v2771 = vld [vmem:[%s2746 + $0xc0] sm:$0xff]
    %v2772 = vld [vmem:[%s2746 + $0xc8] sm:$0xff]
    %v2773 = vld [vmem:[%s2746 + $0xd0] sm:$0xff]
    %v2774 = vld [vmem:[%s2746 + $0xd8] sm:$0xff]
    %v2775 = vld [vmem:[%s2746 + $0xe0] sm:$0xff]
    %v2776 = vld [vmem:[%s2746 + $0xe8] sm:$0xff]
    %v2777 = vld [vmem:[%s2746 + $0xf0] sm:$0xff]
    %v2778 = vld [vmem:[%s2746 + $0xf8] sm:$0xff]
    %v2779 = vld [vmem:[%s2746 + $0x100] sm:$0xff]
    %v2780 = vld [vmem:[%s2746 + $0x108] sm:$0xff]
    %v2781 = vsel %vm1109, %v2684, 0
    %v2783 = vsel %vm1109, %v2690, 0
    %v2785 = vsel %vm1109, %v2696, 0
    %v2787 = vsel %vm1109, %v2702, 0
    %v2789 = vsel %vm1109, %v2711, 0
    %v2791 = vsel %vm1109, %v2717, 0
    %v2793 = vsel %vm1109, %v2723, 0
    %v2795 = vsel %vm1109, %v2729, 0
    %2797 = vmatprep.subr.mxu0 0.0
    %2798 = vmatpush1.msra.mxu0 %v2747
    %2799 = vmatprep.subr.mxu0 0.0
    %2800 = vmatpush1.msra.mxu0 %v2748
    %2801 = vmatprep.subr.mxu0 0.0
    %2802 = vmatpush1.msra.mxu0 %v2749
    %2803 = vmatprep.subr.mxu0 0.0
    %2804 = vmatpush1.msra.mxu0 %v2750
    %2805 = vmatprep.subr.mxu0 0.0
    %2806 = vmatpush1.msra.mxu0 %v2751
    %2807 = vmatprep.subr.mxu0 0.0
    %2808 = vmatpush1.msra.mxu0 %v2752
    %2809 = vmatprep.subr.mxu0 0.0
    %2810 = vmatpush1.msra.mxu0 %v2753
    %2811 = vmatprep.subr.mxu0 0.0
    %2812 = vmatpush1.msra.mxu0 %v2754
    %2813 = vmatprep.subr.mxu0 0.0
    %2814 = vmatpush1.msra.mxu0 %v2755
    %2815 = vmatprep.subr.mxu0 0.0
    %2816 = vmatpush1.msra.mxu0 %v2756
    %2817 = vmatprep.subr.mxu0 0.0
    %2818 = vmatpush1.msra.mxu0 %v2757
    %2819 = vmatprep.subr.mxu0 0.0
    %2820 = vmatpush1.msra.mxu0 %v2758
    %2821 = vmatprep.subr.mxu0 0.0
    %2822 = vmatpush1.msra.mxu0 %v2759
    %2823 = vmatprep.subr.mxu0 0.0
    %2824 = vmatpush1.msra.mxu0 %v2760
    %2825 = vmatprep.subr.mxu0 0.0
    %2826 = vmatpush1.msra.mxu0 %v2761
    %2827 = vmatprep.subr.mxu0 0.0
    %2828 = vmatpush1.msra.mxu0 %v2762
    %2829 = vmatprep.subr.mxu0 0.0
    %2830 = vmatpush1.msra.mxu0 %v2763
    %2831 = vmatprep.subr.mxu0 0.0
    %2832 = vmatpush1.msra.mxu0 %v2764
    %2833 = vmatprep.subr.mxu0 0.0
    %2834 = vmatpush1.msra.mxu0 %v2765
    %2835 = vmatprep.subr.mxu0 0.0
    %2836 = vmatpush1.msra.mxu0 %v2766
    %2837 = vmatprep.subr.mxu0 0.0
    %2838 = vmatpush1.msra.mxu0 %v2767
    %2839 = vmatprep.subr.mxu0 0.0
    %2840 = vmatpush1.msra.mxu0 %v2768
    %2841 = vmatprep.subr.mxu0 0.0
    %2842 = vmatpush1.msra.mxu0 %v2769
    %2843 = vmatprep.subr.mxu0 0.0
    %2844 = vmatpush1.msra.mxu0 %v2770
    %2845 = vmatprep.subr.mxu0 0.0
    %2846 = vmatpush1.msra.mxu0 %v2771
    %2847 = vmatprep.subr.mxu0 0.0
    %2848 = vmatpush1.msra.mxu0 %v2772
    %2849 = vmatprep.subr.mxu0 0.0
    %2850 = vmatpush1.msra.mxu0 %v2773
    %2851 = vmatprep.subr.mxu0 0.0
    %2852 = vmatpush1.msra.mxu0 %v2774
    %2853 = vmatprep.subr.mxu0 0.0
    %2854 = vmatpush1.msra.mxu0 %v2775
    %2855 = vmatprep.subr.mxu0 0.0
    %2856 = vmatpush1.msra.mxu0 %v2776
    %2857 = vmatprep.subr.mxu0 0.0
    %2858 = vmatpush1.msra.mxu0 %v2777
    %2859 = vmatprep.subr.mxu0 0.0
    %2860 = vmatpush1.msra.mxu0 %v2778
    %2861 = vmatprep.mubr.f32.mxu0 %v2681
    %2862 = vmatmul.mubr.f32.gmra.mrb[0].mxu0 %v2678
    %v2863 = vpop.f32.mrb[0].mxu0
    %v2864 = vadd.f32 0.0, %v2863
    %v2865 = vpop.f32.mrb[0].mxu0
    %2866 = vmatprep.mubr.f32.mxu0 %v2688
    %2867 = vmatmul.mubr.f32.gmra.mrb[0].mxu0 %v2686
    %v2868 = vpop.f32.mrb[0].mxu0
    %v2869 = vadd.f32 0.0, %v2868
    %v2870 = vpop.f32.mrb[0].mxu0
    %2871 = vmatprep.mubr.f32.mxu0 %v2694
    %2872 = vmatmul.mubr.f32.gmra.mrb[0].mxu0 %v2692
    %v2873 = vpop.f32.mrb[0].mxu0
    %v2874 = vadd.f32 0.0, %v2873
    %v2875 = vpop.f32.mrb[0].mxu0
    %2876 = vmatprep.mubr.f32.mxu0 %v2700
    %2877 = vmatmul.mubr.f32.gmra.mrb[0].mxu0 %v2698
    %v2878 = vpop.f32.mrb[0].mxu0
    %v2879 = vadd.f32 0.0, %v2878
    %v2880 = vpop.f32.mrb[0].mxu0
    %2881 = vmatprep.mubr.f32.mxu0 %v2708
    %2882 = vmatmul.mubr.f32.gmra.mrb[0].mxu0 %v2705
    %v2883 = vpop.f32.mrb[0].mxu0
    %v2884 = vadd.f32 0.0, %v2883
    %v2885 = vpop.f32.mrb[0].mxu0
    %2886 = vmatprep.mubr.f32.mxu0 %v2715
    %2887 = vmatmul.mubr.f32.gmra.mrb[0].mxu0 %v2713
    %v2888 = vpop.f32.mrb[0].mxu0
    %v2889 = vadd.f32 0.0, %v2888
    %v2890 = vpop.f32.mrb[0].mxu0
    %2891 = vmatprep.mubr.f32.mxu0 %v2721
    %2892 = vmatmul.mubr.f32.gmra.mrb[0].mxu0 %v2719
    %v2893 = vpop.f32.mrb[0].mxu0
    %v2894 = vadd.f32 0.0, %v2893
    %v2895 = vpop.f32.mrb[0].mxu0
    %2896 = vmatprep.mubr.f32.mxu0 %v2727
    %2897 = vmatmul.mubr.f32.gmra.mrb[0].mxu0 %v2725
    %v2898 = vpop.f32.mrb[0].mxu0
    %v2899 = vadd.f32 0.0, %v2898
    %v2900 = vpop.f32.mrb[0].mxu0
    %2901 = vdwg.mxu0
    %2902 = vmatprep.subr.mxu0 0.0
    %2903 = vmatpush1.msra.mxu0 %v2779
    %2904 = vmatprep.subr.mxu0 0.0
    %2905 = vmatpush1.msra.mxu0 %v2780
    %2906 = vmatprep.subr.mxu0 0.0
    %2907 = vmatpush1.msra.mxu0 0.0
    %2908 = vmatprep.subr.mxu0 0.0
    %2909 = vmatpush1.msra.mxu0 0.0
    %2910 = vmatprep.subr.mxu0 0.0
    %2911 = vmatpush1.msra.mxu0 0.0
    %2912 = vmatprep.subr.mxu0 0.0
    %2913 = vmatpush1.msra.mxu0 0.0
    %2914 = vmatprep.subr.mxu0 0.0
    %2915 = vmatpush1.msra.mxu0 0.0
    %2916 = vmatprep.subr.mxu0 0.0
    %2917 = vmatpush1.msra.mxu0 0.0
    %2918 = vmatprep.subr.mxu0 0.0
    %2919 = vmatpush1.msra.mxu0 0.0
    %2920 = vmatprep.subr.mxu0 0.0
    %2921 = vmatpush1.msra.mxu0 0.0
    %2922 = vmatprep.subr.mxu0 0.0
    %2923 = vmatpush1.msra.mxu0 0.0
    %2924 = vmatprep.subr.mxu0 0.0
    %2925 = vmatpush1.msra.mxu0 0.0
    %2926 = vmatprep.subr.mxu0 0.0
    %2927 = vmatpush1.msra.mxu0 0.0
    %2928 = vmatprep.subr.mxu0 0.0
    %2929 = vmatpush1.msra.mxu0 0.0
    %2930 = vmatprep.subr.mxu0 0.0
    %2931 = vmatpush1.msra.mxu0 0.0
    %2932 = vmatprep.subr.mxu0 0.0
    %2933 = vmatpush1.msra.mxu0 0.0
    %2934 = vmatprep.subr.mxu0 0.0
    %2935 = vmatpush1.msra.mxu0 0.0
    %2936 = vmatprep.subr.mxu0 0.0
    %2937 = vmatpush1.msra.mxu0 0.0
    %2938 = vmatprep.subr.mxu0 0.0
    %2939 = vmatpush1.msra.mxu0 0.0
    %2940 = vmatprep.subr.mxu0 0.0
    %2941 = vmatpush1.msra.mxu0 0.0
    %2942 = vmatprep.subr.mxu0 0.0
    %2943 = vmatpush1.msra.mxu0 0.0
    %2944 = vmatprep.subr.mxu0 0.0
    %2945 = vmatpush1.msra.mxu0 0.0
    %2946 = vmatprep.subr.mxu0 0.0
    %2947 = vmatpush1.msra.mxu0 0.0
    %2948 = vmatprep.subr.mxu0 0.0
    %2949 = vmatpush1.msra.mxu0 0.0
    %2950 = vmatprep.subr.mxu0 0.0
    %2951 = vmatpush1.msra.mxu0 0.0
    %2952 = vmatprep.subr.mxu0 0.0
    %2953 = vmatpush1.msra.mxu0 0.0
    %2954 = vmatprep.subr.mxu0 0.0
    %2955 = vmatpush1.msra.mxu0 0.0
    %2956 = vmatprep.subr.mxu0 0.0
    %2957 = vmatpush1.msra.mxu0 0.0
    %2958 = vmatprep.subr.mxu0 0.0
    %2959 = vmatpush1.msra.mxu0 0.0
    %2960 = vmatprep.subr.mxu0 0.0
    %2961 = vmatpush1.msra.mxu0 0.0
    %2962 = vmatprep.subr.mxu0 0.0
    %2963 = vmatpush1.msra.mxu0 0.0
    %2964 = vmatprep.subr.mxu0 0.0
    %2965 = vmatpush1.msra.mxu0 0.0
    %2966 = vmatprep.mubr.f32.mxu0 0.0
    %2967 = vmatmul.mubr.f32.gmra.mrb[0].mxu0 %v2781
    %v2968 = vpop.f32.mrb[0].mxu0
    %v2969 = vadd.f32 %v2864, %v2968
    %v2970 = vpop.f32.mrb[0].mxu0
    %2971 = vmatprep.mubr.f32.mxu0 0.0
    %2972 = vmatmul.mubr.f32.gmra.mrb[0].mxu0 %v2783
    %v2973 = vpop.f32.mrb[0].mxu0
    %v2974 = vadd.f32 %v2869, %v2973
    %v2975 = vpop.f32.mrb[0].mxu0
    %2976 = vmatprep.mubr.f32.mxu0 0.0
    %2977 = vmatmul.mubr.f32.gmra.mrb[0].mxu0 %v2785
    %v2978 = vpop.f32.mrb[0].mxu0
    %v2979 = vadd.f32 %v2874, %v2978
    %v2980 = vpop.f32.mrb[0].mxu0
    %2981 = vmatprep.mubr.f32.mxu0 0.0
    %2982 = vmatmul.mubr.f32.gmra.mrb[0].mxu0 %v2787
    %v2983 = vpop.f32.mrb[0].mxu0
    %v2984 = vadd.f32 %v2879, %v2983
    %v2985 = vpop.f32.mrb[0].mxu0
    %2986 = vmatprep.mubr.f32.mxu0 0.0
    %2987 = vmatmul.mubr.f32.gmra.mrb[0].mxu0 %v2789
    %v2988 = vpop.f32.mrb[0].mxu0
    %v2989 = vadd.f32 %v2884, %v2988
    %v2990 = vpop.f32.mrb[0].mxu0
    %2991 = vmatprep.mubr.f32.mxu0 0.0
    %2992 = vmatmul.mubr.f32.gmra.mrb[0].mxu0 %v2791
    %v2993 = vpop.f32.mrb[0].mxu0
    %v2994 = vadd.f32 %v2889, %v2993
    %v2995 = vpop.f32.mrb[0].mxu0
    %2996 = vmatprep.mubr.f32.mxu0 0.0
    %2997 = vmatmul.mubr.f32.gmra.mrb[0].mxu0 %v2793
    %v2998 = vpop.f32.mrb[0].mxu0
    %v2999 = vadd.f32 %v2894, %v2998
    %v3000 = vpop.f32.mrb[0].mxu0
    %3001 = vmatprep.mubr.f32.mxu0 0.0
    %3002 = vmatmul.mubr.f32.gmra.mrb[0].mxu0 %v2795
    %v3003 = vpop.f32.mrb[0].mxu0
    %v3004 = vadd.f32 %v2899, %v3003
    %v3005 = vpop.f32.mrb[0].mxu0
    %3006 = vdwg.mxu0
    %v3008 = vsel %vm1109, %v2578, 0
    %v3010 = vsel %vm1109, %v2581, 0
    %v3012 = vsel %vm1109, %v2584, 0
    %v3014 = vsel %vm1109, %v2587, 0
    %v3017 = vsel %vm1109, %v2590, 0
    %v3019 = vsel %vm1109, %v2593, 0
    %v3021 = vsel %vm1109, %v2596, 0
    %v3023 = vsel %vm1109, %v2599, 0
    %3025 = vmatprep.subr.mxu0 0.0
    %3026 = vmatpush1.msra.mxu0 %v2600
    %3027 = vmatprep.subr.mxu0 0.0
    %3028 = vmatpush1.msra.mxu0 %v2601
    %3029 = vmatprep.subr.mxu0 0.0
    %3030 = vmatpush1.msra.mxu0 %v2602
    %3031 = vmatprep.subr.mxu0 0.0
    %3032 = vmatpush1.msra.mxu0 %v2603
    %3033 = vmatprep.subr.mxu0 0.0
    %3034 = vmatpush1.msra.mxu0 %v2604
    %3035 = vmatprep.subr.mxu0 0.0
    %3036 = vmatpush1.msra.mxu0 %v2605
    %3037 = vmatprep.subr.mxu0 0.0
    %3038 = vmatpush1.msra.mxu0 %v2606
    %3039 = vmatprep.subr.mxu0 0.0
    %3040 = vmatpush1.msra.mxu0 %v2607
    %3041 = vmatprep.subr.mxu0 0.0
    %3042 = vmatpush1.msra.mxu0 %v2608
    %3043 = vmatprep.subr.mxu0 0.0
    %3044 = vmatpush1.msra.mxu0 %v2609
    %3045 = vmatprep.subr.mxu0 0.0
    %3046 = vmatpush1.msra.mxu0 %v2610
    %3047 = vmatprep.subr.mxu0 0.0
    %3048 = vmatpush1.msra.mxu0 %v2611
    %3049 = vmatprep.subr.mxu0 0.0
    %3050 = vmatpush1.msra.mxu0 %v2612
    %3051 = vmatprep.subr.mxu0 0.0
    %3052 = vmatpush1.msra.mxu0 %v2613
    %3053 = vmatprep.subr.mxu0 0.0
    %3054 = vmatpush1.msra.mxu0 %v2614
    %3055 = vmatprep.subr.mxu0 0.0
    %3056 = vmatpush1.msra.mxu0 %v2615
    %3057 = vmatprep.subr.mxu0 0.0
    %3058 = vmatpush1.msra.mxu0 %v2616
    %3059 = vmatprep.subr.mxu0 0.0
    %3060 = vmatpush1.msra.mxu0 %v2617
    %3061 = vmatprep.subr.mxu0 0.0
    %3062 = vmatpush1.msra.mxu0 %v2618
    %3063 = vmatprep.subr.mxu0 0.0
    %3064 = vmatpush1.msra.mxu0 %v2619
    %3065 = vmatprep.subr.mxu0 0.0
    %3066 = vmatpush1.msra.mxu0 %v2620
    %3067 = vmatprep.subr.mxu0 0.0
    %3068 = vmatpush1.msra.mxu0 %v2621
    %3069 = vmatprep.subr.mxu0 0.0
    %3070 = vmatpush1.msra.mxu0 %v2622
    %3071 = vmatprep.subr.mxu0 0.0
    %3072 = vmatpush1.msra.mxu0 %v2623
    %3073 = vmatprep.subr.mxu0 0.0
    %3074 = vmatpush1.msra.mxu0 %v2624
    %3075 = vmatprep.subr.mxu0 0.0
    %3076 = vmatpush1.msra.mxu0 %v2625
    %3077 = vmatprep.subr.mxu0 0.0
    %3078 = vmatpush1.msra.mxu0 %v2626
    %3079 = vmatprep.subr.mxu0 0.0
    %3080 = vmatpush1.msra.mxu0 %v2627
    %3081 = vmatprep.subr.mxu0 0.0
    %3082 = vmatpush1.msra.mxu0 %v2628
    %3083 = vmatprep.subr.mxu0 0.0
    %3084 = vmatpush1.msra.mxu0 %v2629
    %3085 = vmatprep.subr.mxu0 0.0
    %3086 = vmatpush1.msra.mxu0 %v2630
    %3087 = vmatprep.subr.mxu0 0.0
    %3088 = vmatpush1.msra.mxu0 %v2631
    %3089 = vmatprep.mubr.f32.mxu0 %v2577
    %3090 = vmatmul.mubr.f32.gmra.mrb[0].mxu0 %v2576
    %v3091 = vpop.f32.mrb[0].mxu0
    %v3092 = vadd.f32 %v2969, %v3091
    %v3093 = vpop.f32.mrb[0].mxu0
    %3094 = vmatprep.mubr.f32.mxu0 %v2580
    %3095 = vmatmul.mubr.f32.gmra.mrb[0].mxu0 %v2579
    %v3096 = vpop.f32.mrb[0].mxu0
    %v3097 = vadd.f32 %v2974, %v3096
    %v3098 = vpop.f32.mrb[0].mxu0
    %3099 = vmatprep.mubr.f32.mxu0 %v2583
    %3100 = vmatmul.mubr.f32.gmra.mrb[0].mxu0 %v2582
    %v3101 = vpop.f32.mrb[0].mxu0
    %v3102 = vadd.f32 %v2979, %v3101
    %v3103 = vpop.f32.mrb[0].mxu0
    %3104 = vmatprep.mubr.f32.mxu0 %v2586
    %3105 = vmatmul.mubr.f32.gmra.mrb[0].mxu0 %v2585
    %v3106 = vpop.f32.mrb[0].mxu0
    %v3107 = vadd.f32 %v2984, %v3106
    %v3108 = vpop.f32.mrb[0].mxu0
    %3109 = vmatprep.mubr.f32.mxu0 %v2589
    %3110 = vmatmul.mubr.f32.gmra.mrb[0].mxu0 %v2588
    %v3111 = vpop.f32.mrb[0].mxu0
    %v3112 = vadd.f32 %v2989, %v3111
    %v3113 = vpop.f32.mrb[0].mxu0
    %3114 = vmatprep.mubr.f32.mxu0 %v2592
    %3115 = vmatmul.mubr.f32.gmra.mrb[0].mxu0 %v2591
    %v3116 = vpop.f32.mrb[0].mxu0
    %v3117 = vadd.f32 %v2994, %v3116
    %v3118 = vpop.f32.mrb[0].mxu0
    %3119 = vmatprep.mubr.f32.mxu0 %v2595
    %3120 = vmatmul.mubr.f32.gmra.mrb[0].mxu0 %v2594
    %v3121 = vpop.f32.mrb[0].mxu0
    %v3122 = vadd.f32 %v2999, %v3121
    %v3123 = vpop.f32.mrb[0].mxu0
    %3124 = vmatprep.mubr.f32.mxu0 %v2598
    %3125 = vmatmul.mubr.f32.gmra.mrb[0].mxu0 %v2597
    %v3126 = vpop.f32.mrb[0].mxu0
    %v3127 = vadd.f32 %v3004, %v3126
    %v3128 = vpop.f32.mrb[0].mxu0
    %3129 = vdwg.mxu0
    %3130 = vmatprep.subr.mxu0 0.0
    %3131 = vmatpush1.msra.mxu0 %v2632
    %3132 = vmatprep.subr.mxu0 0.0
    %3133 = vmatpush1.msra.mxu0 %v2633
    %3134 = vmatprep.subr.mxu0 0.0
    %3135 = vmatpush1.msra.mxu0 0.0
    %3136 = vmatprep.subr.mxu0 0.0
    %3137 = vmatpush1.msra.mxu0 0.0
    %3138 = vmatprep.subr.mxu0 0.0
    %3139 = vmatpush1.msra.mxu0 0.0
    %3140 = vmatprep.subr.mxu0 0.0
    %3141 = vmatpush1.msra.mxu0 0.0
    %3142 = vmatprep.subr.mxu0 0.0
    %3143 = vmatpush1.msra.mxu0 0.0
    %3144 = vmatprep.subr.mxu0 0.0
    %3145 = vmatpush1.msra.mxu0 0.0
    %3146 = vmatprep.subr.mxu0 0.0
    %3147 = vmatpush1.msra.mxu0 0.0
    %3148 = vmatprep.subr.mxu0 0.0
    %3149 = vmatpush1.msra.mxu0 0.0
    %3150 = vmatprep.subr.mxu0 0.0
    %3151 = vmatpush1.msra.mxu0 0.0
    %3152 = vmatprep.subr.mxu0 0.0
    %3153 = vmatpush1.msra.mxu0 0.0
    %3154 = vmatprep.subr.mxu0 0.0
    %3155 = vmatpush1.msra.mxu0 0.0
    %3156 = vmatprep.subr.mxu0 0.0
    %3157 = vmatpush1.msra.mxu0 0.0
    %3158 = vmatprep.subr.mxu0 0.0
    %3159 = vmatpush1.msra.mxu0 0.0
    %3160 = vmatprep.subr.mxu0 0.0
    %3161 = vmatpush1.msra.mxu0 0.0
    %3162 = vmatprep.subr.mxu0 0.0
    %3163 = vmatpush1.msra.mxu0 0.0
    %3164 = vmatprep.subr.mxu0 0.0
    %3165 = vmatpush1.msra.mxu0 0.0
    %3166 = vmatprep.subr.mxu0 0.0
    %3167 = vmatpush1.msra.mxu0 0.0
    %3168 = vmatprep.subr.mxu0 0.0
    %3169 = vmatpush1.msra.mxu0 0.0
    %3170 = vmatprep.subr.mxu0 0.0
    %3171 = vmatpush1.msra.mxu0 0.0
    %3172 = vmatprep.subr.mxu0 0.0
    %3173 = vmatpush1.msra.mxu0 0.0
    %3174 = vmatprep.subr.mxu0 0.0
    %3175 = vmatpush1.msra.mxu0 0.0
    %3176 = vmatprep.subr.mxu0 0.0
    %3177 = vmatpush1.msra.mxu0 0.0
    %3178 = vmatprep.subr.mxu0 0.0
    %3179 = vmatpush1.msra.mxu0 0.0
    %3180 = vmatprep.subr.mxu0 0.0
    %3181 = vmatpush1.msra.mxu0 0.0
    %3182 = vmatprep.subr.mxu0 0.0
    %3183 = vmatpush1.msra.mxu0 0.0
    %3184 = vmatprep.subr.mxu0 0.0
    %3185 = vmatpush1.msra.mxu0 0.0
    %3186 = vmatprep.subr.mxu0 0.0
    %3187 = vmatpush1.msra.mxu0 0.0
    %3188 = vmatprep.subr.mxu0 0.0
    %3189 = vmatpush1.msra.mxu0 0.0
    %3190 = vmatprep.subr.mxu0 0.0
    %3191 = vmatpush1.msra.mxu0 0.0
    %3192 = vmatprep.subr.mxu0 0.0
    %3193 = vmatpush1.msra.mxu0 0.0
    %3194 = vmatprep.mubr.f32.mxu0 0.0
    %3195 = vmatmul.mubr.f32.gmra.mrb[0].mxu0 %v3008
    %v3196 = vpop.f32.mrb[0].mxu0
    %v3197 = vadd.f32 %v3092, %v3196
    %v3198 = vpop.f32.mrb[0].mxu0
    %3199 = vmatprep.mubr.f32.mxu0 0.0
    %3200 = vmatmul.mubr.f32.gmra.mrb[0].mxu0 %v3010
    %v3201 = vpop.f32.mrb[0].mxu0
    %v3202 = vadd.f32 %v3097, %v3201
    %v3203 = vpop.f32.mrb[0].mxu0
    %3204 = vmatprep.mubr.f32.mxu0 0.0
    %3205 = vmatmul.mubr.f32.gmra.mrb[0].mxu0 %v3012
    %v3206 = vpop.f32.mrb[0].mxu0
    %v3207 = vadd.f32 %v3102, %v3206
    %v3208 = vpop.f32.mrb[0].mxu0
    %3209 = vmatprep.mubr.f32.mxu0 0.0
    %3210 = vmatmul.mubr.f32.gmra.mrb[0].mxu0 %v3014
    %v3211 = vpop.f32.mrb[0].mxu0
    %v3212 = vadd.f32 %v3107, %v3211
    %v3213 = vpop.f32.mrb[0].mxu0
    %3214 = vmatprep.mubr.f32.mxu0 0.0
    %3215 = vmatmul.mubr.f32.gmra.mrb[0].mxu0 %v3017
    %v3216 = vpop.f32.mrb[0].mxu0
    %v3217 = vadd.f32 %v3112, %v3216
    %v3218 = vpop.f32.mrb[0].mxu0
    %3219 = vmatprep.mubr.f32.mxu0 0.0
    %3220 = vmatmul.mubr.f32.gmra.mrb[0].mxu0 %v3019
    %v3221 = vpop.f32.mrb[0].mxu0
    %v3222 = vadd.f32 %v3117, %v3221
    %v3223 = vpop.f32.mrb[0].mxu0
    %3224 = vmatprep.mubr.f32.mxu0 0.0
    %3225 = vmatmul.mubr.f32.gmra.mrb[0].mxu0 %v3021
    %v3226 = vpop.f32.mrb[0].mxu0
    %v3227 = vadd.f32 %v3122, %v3226
    %v3228 = vpop.f32.mrb[0].mxu0
    %3229 = vmatprep.mubr.f32.mxu0 0.0
    %3230 = vmatmul.mubr.f32.gmra.mrb[0].mxu0 %v3023
    %v3231 = vpop.f32.mrb[0].mxu0
    %v3232 = vadd.f32 %v3127, %v3231
    %v3233 = vpop.f32.mrb[0].mxu0
    %3234 = vdwg.mxu0
    %v3235 = vld [vmem:[#allocation5] sm:$0xfc]
    %v3236 = vld [vmem:[#allocation5 + $0x8] sm:$0xfc]
    %v3237 = vld [vmem:[#allocation5 + $0x10] sm:$0xfc]
    %v3238 = vld [vmem:[#allocation5 + $0x60] sm:$0x3]
    %v3239 = vld [vmem:[#allocation5 + $0x68] sm:$0x3]
    %v3240 = vld [vmem:[#allocation5 + $0x70] sm:$0x3]
    %v3241 = vld [vmem:[#allocation5 + $0x78] sm:$0xfc]
    %v3242 = vld [vmem:[#allocation5 + $0x80] sm:$0xfc]
    %v3243 = vld [vmem:[#allocation5 + $0x88] sm:$0xfc]
    %v3244 = vld [vmem:[#allocation5 + $0xd8] sm:$0x3]
    %v3245 = vld [vmem:[#allocation5 + $0xe0] sm:$0x3]
    %v3246 = vld [vmem:[#allocation5 + $0xe8] sm:$0x3]
    %v3259 = vrot.slane %v3235, 2
    %v3260 = vrot.slane %v2579, 2
    %v3261 = vsel %vm1872, %v3259, %v3260
    %v3262 = vrot.slane %v3236, 2
    %v3263 = vrot.slane %v2580, 2
    %v3264 = vsel %vm1872, %v3262, %v3263
    %v3265 = vrot.slane %v3237, 2
    %v3266 = vrot.slane %v2581, 2
    %v3267 = vsel %vm1872, %v3265, %v3266
    %v3268 = vrot.slane %v2582, 2
    %v3269 = vsel %vm1872, %v3260, %v3268
    %v3270 = vrot.slane %v2583, 2
    %v3271 = vsel %vm1872, %v3263, %v3270
    %v3272 = vrot.slane %v2584, 2
    %v3273 = vsel %vm1872, %v3266, %v3272
    %v3274 = vrot.slane %v2585, 2
    %v3275 = vsel %vm1872, %v3268, %v3274
    %v3276 = vrot.slane %v2586, 2
    %v3277 = vsel %vm1872, %v3270, %v3276
    %v3278 = vrot.slane %v2587, 2
    %v3279 = vsel %vm1872, %v3272, %v3278
    %v3280 = vrot.slane %v3238, 2
    %v3281 = vsel %vm1872, %v3274, %v3280
    %v3282 = vrot.slane %v3239, 2
    %v3283 = vsel %vm1872, %v3276, %v3282
    %v3284 = vrot.slane %v3240, 2
    %v3285 = vsel %vm1872, %v3278, %v3284
    %v3286 = vrot.slane %v3241, 2
    %v3287 = vrot.slane %v2591, 2
    %v3288 = vsel %vm1872, %v3286, %v3287
    %v3289 = vrot.slane %v3242, 2
    %v3290 = vrot.slane %v2592, 2
    %v3291 = vsel %vm1872, %v3289, %v3290
    %v3292 = vrot.slane %v3243, 2
    %v3293 = vrot.slane %v2593, 2
    %v3294 = vsel %vm1872, %v3292, %v3293
    %v3295 = vrot.slane %v2594, 2
    %v3296 = vsel %vm1872, %v3287, %v3295
    %v3297 = vrot.slane %v2595, 2
    %v3298 = vsel %vm1872, %v3290, %v3297
    %v3299 = vrot.slane %v2596, 2
    %v3300 = vsel %vm1872, %v3293, %v3299
    %v3301 = vrot.slane %v2597, 2
    %v3302 = vsel %vm1872, %v3295, %v3301
    %v3303 = vrot.slane %v2598, 2
    %v3304 = vsel %vm1872, %v3297, %v3303
    %v3305 = vrot.slane %v2599, 2
    %v3306 = vsel %vm1872, %v3299, %v3305
    %v3307 = vrot.slane %v3244, 2
    %v3308 = vsel %vm1872, %v3301, %v3307
    %v3309 = vrot.slane %v3245, 2
    %v3310 = vsel %vm1872, %v3303, %v3309
    %v3311 = vrot.slane %v3246, 2
    %v3312 = vsel %vm1872, %v3305, %v3311
    %s3329 = scalar_lea.vmem %s9, 544
    %v3330 = vld [vmem:[%s3329] sm:$0xff]
    %v3331 = vld [vmem:[%s3329 + $0x8] sm:$0xff]
    %v3332 = vld [vmem:[%s3329 + $0x10] sm:$0xff]
    %v3333 = vld [vmem:[%s3329 + $0x18] sm:$0xff]
    %v3334 = vld [vmem:[%s3329 + $0x20] sm:$0xff]
    %v3335 = vld [vmem:[%s3329 + $0x28] sm:$0xff]
    %v3336 = vld [vmem:[%s3329 + $0x30] sm:$0xff]
    %v3337 = vld [vmem:[%s3329 + $0x38] sm:$0xff]
    %v3338 = vld [vmem:[%s3329 + $0x40] sm:$0xff]
    %v3339 = vld [vmem:[%s3329 + $0x48] sm:$0xff]
    %v3340 = vld [vmem:[%s3329 + $0x50] sm:$0xff]
    %v3341 = vld [vmem:[%s3329 + $0x58] sm:$0xff]
    %v3342 = vld [vmem:[%s3329 + $0x60] sm:$0xff]
    %v3343 = vld [vmem:[%s3329 + $0x68] sm:$0xff]
    %v3344 = vld [vmem:[%s3329 + $0x70] sm:$0xff]
    %v3345 = vld [vmem:[%s3329 + $0x78] sm:$0xff]
    %v3346 = vld [vmem:[%s3329 + $0x80] sm:$0xff]
    %v3347 = vld [vmem:[%s3329 + $0x88] sm:$0xff]
    %v3348 = vld [vmem:[%s3329 + $0x90] sm:$0xff]
    %v3349 = vld [vmem:[%s3329 + $0x98] sm:$0xff]
    %v3350 = vld [vmem:[%s3329 + $0xa0] sm:$0xff]
    %v3351 = vld [vmem:[%s3329 + $0xa8] sm:$0xff]
    %v3352 = vld [vmem:[%s3329 + $0xb0] sm:$0xff]
    %v3353 = vld [vmem:[%s3329 + $0xb8] sm:$0xff]
    %v3354 = vld [vmem:[%s3329 + $0xc0] sm:$0xff]
    %v3355 = vld [vmem:[%s3329 + $0xc8] sm:$0xff]
    %v3356 = vld [vmem:[%s3329 + $0xd0] sm:$0xff]
    %v3357 = vld [vmem:[%s3329 + $0xd8] sm:$0xff]
    %v3358 = vld [vmem:[%s3329 + $0xe0] sm:$0xff]
    %v3359 = vld [vmem:[%s3329 + $0xe8] sm:$0xff]
    %v3360 = vld [vmem:[%s3329 + $0xf0] sm:$0xff]
    %v3361 = vld [vmem:[%s3329 + $0xf8] sm:$0xff]
    %v3362 = vld [vmem:[%s3329 + $0x100] sm:$0xff]
    %v3363 = vld [vmem:[%s3329 + $0x108] sm:$0xff]
    %v3364 = vsel %vm1109, %v3267, 0
    %v3366 = vsel %vm1109, %v3273, 0
    %v3368 = vsel %vm1109, %v3279, 0
    %v3370 = vsel %vm1109, %v3285, 0
    %v3372 = vsel %vm1109, %v3294, 0
    %v3374 = vsel %vm1109, %v3300, 0
    %v3376 = vsel %vm1109, %v3306, 0
    %v3378 = vsel %vm1109, %v3312, 0
    %3380 = vmatprep.subr.mxu0 0.0
    %3381 = vmatpush1.msra.mxu0 %v3330
    %3382 = vmatprep.subr.mxu0 0.0
    %3383 = vmatpush1.msra.mxu0 %v3331
    %3384 = vmatprep.subr.mxu0 0.0
    %3385 = vmatpush1.msra.mxu0 %v3332
    %3386 = vmatprep.subr.mxu0 0.0
    %3387 = vmatpush1.msra.mxu0 %v3333
    %3388 = vmatprep.subr.mxu0 0.0
    %3389 = vmatpush1.msra.mxu0 %v3334
    %3390 = vmatprep.subr.mxu0 0.0
    %3391 = vmatpush1.msra.mxu0 %v3335
    %3392 = vmatprep.subr.mxu0 0.0
    %3393 = vmatpush1.msra.mxu0 %v3336
    %3394 = vmatprep.subr.mxu0 0.0
    %3395 = vmatpush1.msra.mxu0 %v3337
    %3396 = vmatprep.subr.mxu0 0.0
    %3397 = vmatpush1.msra.mxu0 %v3338
    %3398 = vmatprep.subr.mxu0 0.0
    %3399 = vmatpush1.msra.mxu0 %v3339
    %3400 = vmatprep.subr.mxu0 0.0
    %3401 = vmatpush1.msra.mxu0 %v3340
    %3402 = vmatprep.subr.mxu0 0.0
    %3403 = vmatpush1.msra.mxu0 %v3341
    %3404 = vmatprep.subr.mxu0 0.0
    %3405 = vmatpush1.msra.mxu0 %v3342
    %3406 = vmatprep.subr.mxu0 0.0
    %3407 = vmatpush1.msra.mxu0 %v3343
    %3408 = vmatprep.subr.mxu0 0.0
    %3409 = vmatpush1.msra.mxu0 %v3344
    %3410 = vmatprep.subr.mxu0 0.0
    %3411 = vmatpush1.msra.mxu0 %v3345
    %3412 = vmatprep.subr.mxu0 0.0
    %3413 = vmatpush1.msra.mxu0 %v3346
    %3414 = vmatprep.subr.mxu0 0.0
    %3415 = vmatpush1.msra.mxu0 %v3347
    %3416 = vmatprep.subr.mxu0 0.0
    %3417 = vmatpush1.msra.mxu0 %v3348
    %3418 = vmatprep.subr.mxu0 0.0
    %3419 = vmatpush1.msra.mxu0 %v3349
    %3420 = vmatprep.subr.mxu0 0.0
    %3421 = vmatpush1.msra.mxu0 %v3350
    %3422 = vmatprep.subr.mxu0 0.0
    %3423 = vmatpush1.msra.mxu0 %v3351
    %3424 = vmatprep.subr.mxu0 0.0
    %3425 = vmatpush1.msra.mxu0 %v3352
    %3426 = vmatprep.subr.mxu0 0.0
    %3427 = vmatpush1.msra.mxu0 %v3353
    %3428 = vmatprep.subr.mxu0 0.0
    %3429 = vmatpush1.msra.mxu0 %v3354
    %3430 = vmatprep.subr.mxu0 0.0
    %3431 = vmatpush1.msra.mxu0 %v3355
    %3432 = vmatprep.subr.mxu0 0.0
    %3433 = vmatpush1.msra.mxu0 %v3356
    %3434 = vmatprep.subr.mxu0 0.0
    %3435 = vmatpush1.msra.mxu0 %v3357
    %3436 = vmatprep.subr.mxu0 0.0
    %3437 = vmatpush1.msra.mxu0 %v3358
    %3438 = vmatprep.subr.mxu0 0.0
    %3439 = vmatpush1.msra.mxu0 %v3359
    %3440 = vmatprep.subr.mxu0 0.0
    %3441 = vmatpush1.msra.mxu0 %v3360
    %3442 = vmatprep.subr.mxu0 0.0
    %3443 = vmatpush1.msra.mxu0 %v3361
    %3444 = vmatprep.mubr.f32.mxu0 %v3264
    %3445 = vmatmul.mubr.f32.gmra.mrb[0].mxu0 %v3261
    %v3446 = vpop.f32.mrb[0].mxu0
    %v3447 = vadd.f32 0.0, %v3446
    %v3448 = vpop.f32.mrb[0].mxu0
    %3449 = vmatprep.mubr.f32.mxu0 %v3271
    %3450 = vmatmul.mubr.f32.gmra.mrb[0].mxu0 %v3269
    %v3451 = vpop.f32.mrb[0].mxu0
    %v3452 = vadd.f32 0.0, %v3451
    %v3453 = vpop.f32.mrb[0].mxu0
    %3454 = vmatprep.mubr.f32.mxu0 %v3277
    %3455 = vmatmul.mubr.f32.gmra.mrb[0].mxu0 %v3275
    %v3456 = vpop.f32.mrb[0].mxu0
    %v3457 = vadd.f32 0.0, %v3456
    %v3458 = vpop.f32.mrb[0].mxu0
    %3459 = vmatprep.mubr.f32.mxu0 %v3283
    %3460 = vmatmul.mubr.f32.gmra.mrb[0].mxu0 %v3281
    %v3461 = vpop.f32.mrb[0].mxu0
    %v3462 = vadd.f32 0.0, %v3461
    %v3463 = vpop.f32.mrb[0].mxu0
    %3464 = vmatprep.mubr.f32.mxu0 %v3291
    %3465 = vmatmul.mubr.f32.gmra.mrb[0].mxu0 %v3288
    %v3466 = vpop.f32.mrb[0].mxu0
    %v3467 = vadd.f32 0.0, %v3466
    %v3468 = vpop.f32.mrb[0].mxu0
    %3469 = vmatprep.mubr.f32.mxu0 %v3298
    %3470 = vmatmul.mubr.f32.gmra.mrb[0].mxu0 %v3296
    %v3471 = vpop.f32.mrb[0].mxu0
    %v3472 = vadd.f32 0.0, %v3471
    %v3473 = vpop.f32.mrb[0].mxu0
    %3474 = vmatprep.mubr.f32.mxu0 %v3304
    %3475 = vmatmul.mubr.f32.gmra.mrb[0].mxu0 %v3302
    %v3476 = vpop.f32.mrb[0].mxu0
    %v3477 = vadd.f32 0.0, %v3476
    %v3478 = vpop.f32.mrb[0].mxu0
    %3479 = vmatprep.mubr.f32.mxu0 %v3310
    %3480 = vmatmul.mubr.f32.gmra.mrb[0].mxu0 %v3308
    %v3481 = vpop.f32.mrb[0].mxu0
    %v3482 = vadd.f32 0.0, %v3481
    %v3483 = vpop.f32.mrb[0].mxu0
    %3484 = vdwg.mxu0
    %3485 = vmatprep.subr.mxu0 0.0
    %3486 = vmatpush1.msra.mxu0 %v3362
    %3487 = vmatprep.subr.mxu0 0.0
    %3488 = vmatpush1.msra.mxu0 %v3363
    %3489 = vmatprep.subr.mxu0 0.0
    %3490 = vmatpush1.msra.mxu0 0.0
    %3491 = vmatprep.subr.mxu0 0.0
    %3492 = vmatpush1.msra.mxu0 0.0
    %3493 = vmatprep.subr.mxu0 0.0
    %3494 = vmatpush1.msra.mxu0 0.0
    %3495 = vmatprep.subr.mxu0 0.0
    %3496 = vmatpush1.msra.mxu0 0.0
    %3497 = vmatprep.subr.mxu0 0.0
    %3498 = vmatpush1.msra.mxu0 0.0
    %3499 = vmatprep.subr.mxu0 0.0
    %3500 = vmatpush1.msra.mxu0 0.0
    %3501 = vmatprep.subr.mxu0 0.0
    %3502 = vmatpush1.msra.mxu0 0.0
    %3503 = vmatprep.subr.mxu0 0.0
    %3504 = vmatpush1.msra.mxu0 0.0
    %3505 = vmatprep.subr.mxu0 0.0
    %3506 = vmatpush1.msra.mxu0 0.0
    %3507 = vmatprep.subr.mxu0 0.0
    %3508 = vmatpush1.msra.mxu0 0.0
    %3509 = vmatprep.subr.mxu0 0.0
    %3510 = vmatpush1.msra.mxu0 0.0
    %3511 = vmatprep.subr.mxu0 0.0
    %3512 = vmatpush1.msra.mxu0 0.0
    %3513 = vmatprep.subr.mxu0 0.0
    %3514 = vmatpush1.msra.mxu0 0.0
    %3515 = vmatprep.subr.mxu0 0.0
    %3516 = vmatpush1.msra.mxu0 0.0
    %3517 = vmatprep.subr.mxu0 0.0
    %3518 = vmatpush1.msra.mxu0 0.0
    %3519 = vmatprep.subr.mxu0 0.0
    %3520 = vmatpush1.msra.mxu0 0.0
    %3521 = vmatprep.subr.mxu0 0.0
    %3522 = vmatpush1.msra.mxu0 0.0
    %3523 = vmatprep.subr.mxu0 0.0
    %3524 = vmatpush1.msra.mxu0 0.0
    %3525 = vmatprep.subr.mxu0 0.0
    %3526 = vmatpush1.msra.mxu0 0.0
    %3527 = vmatprep.subr.mxu0 0.0
    %3528 = vmatpush1.msra.mxu0 0.0
    %3529 = vmatprep.subr.mxu0 0.0
    %3530 = vmatpush1.msra.mxu0 0.0
    %3531 = vmatprep.subr.mxu0 0.0
    %3532 = vmatpush1.msra.mxu0 0.0
    %3533 = vmatprep.subr.mxu0 0.0
    %3534 = vmatpush1.msra.mxu0 0.0
    %3535 = vmatprep.subr.mxu0 0.0
    %3536 = vmatpush1.msra.mxu0 0.0
    %3537 = vmatprep.subr.mxu0 0.0
    %3538 = vmatpush1.msra.mxu0 0.0
    %3539 = vmatprep.subr.mxu0 0.0
    %3540 = vmatpush1.msra.mxu0 0.0
    %3541 = vmatprep.subr.mxu0 0.0
    %3542 = vmatpush1.msra.mxu0 0.0
    %3543 = vmatprep.subr.mxu0 0.0
    %3544 = vmatpush1.msra.mxu0 0.0
    %3545 = vmatprep.subr.mxu0 0.0
    %3546 = vmatpush1.msra.mxu0 0.0
    %3547 = vmatprep.subr.mxu0 0.0
    %3548 = vmatpush1.msra.mxu0 0.0
    %3549 = vmatprep.mubr.f32.mxu0 0.0
    %3550 = vmatmul.mubr.f32.gmra.mrb[0].mxu0 %v3364
    %v3551 = vpop.f32.mrb[0].mxu0
    %v3552 = vadd.f32 %v3447, %v3551
    %v3553 = vpop.f32.mrb[0].mxu0
    %3554 = vmatprep.mubr.f32.mxu0 0.0
    %3555 = vmatmul.mubr.f32.gmra.mrb[0].mxu0 %v3366
    %v3556 = vpop.f32.mrb[0].mxu0
    %v3557 = vadd.f32 %v3452, %v3556
    %v3558 = vpop.f32.mrb[0].mxu0
    %3559 = vmatprep.mubr.f32.mxu0 0.0
    %3560 = vmatmul.mubr.f32.gmra.mrb[0].mxu0 %v3368
    %v3561 = vpop.f32.mrb[0].mxu0
    %v3562 = vadd.f32 %v3457, %v3561
    %v3563 = vpop.f32.mrb[0].mxu0
    %3564 = vmatprep.mubr.f32.mxu0 0.0
    %3565 = vmatmul.mubr.f32.gmra.mrb[0].mxu0 %v3370
    %v3566 = vpop.f32.mrb[0].mxu0
    %v3567 = vadd.f32 %v3462, %v3566
    %v3568 = vpop.f32.mrb[0].mxu0
    %3569 = vmatprep.mubr.f32.mxu0 0.0
    %3570 = vmatmul.mubr.f32.gmra.mrb[0].mxu0 %v3372
    %v3571 = vpop.f32.mrb[0].mxu0
    %v3572 = vadd.f32 %v3467, %v3571
    %v3573 = vpop.f32.mrb[0].mxu0
    %3574 = vmatprep.mubr.f32.mxu0 0.0
    %3575 = vmatmul.mubr.f32.gmra.mrb[0].mxu0 %v3374
    %v3576 = vpop.f32.mrb[0].mxu0
    %v3577 = vadd.f32 %v3472, %v3576
    %v3578 = vpop.f32.mrb[0].mxu0
    %3579 = vmatprep.mubr.f32.mxu0 0.0
    %3580 = vmatmul.mubr.f32.gmra.mrb[0].mxu0 %v3376
    %v3581 = vpop.f32.mrb[0].mxu0
    %v3582 = vadd.f32 %v3477, %v3581
    %v3583 = vpop.f32.mrb[0].mxu0
    %3584 = vmatprep.mubr.f32.mxu0 0.0
    %3585 = vmatmul.mubr.f32.gmra.mrb[0].mxu0 %v3378
    %v3586 = vpop.f32.mrb[0].mxu0
    %v3587 = vadd.f32 %v3482, %v3586
    %v3588 = vpop.f32.mrb[0].mxu0
    %3589 = vdwg.mxu0
    %v3590 = vadd.f32 %v3197, %v3552
    %v3591 = vadd.f32 %v3202, %v3557
    %v3592 = vadd.f32 %v3207, %v3562
    %v3593 = vadd.f32 %v3212, %v3567
    %v3594 = vadd.f32 %v3217, %v3572
    %v3595 = vadd.f32 %v3222, %v3577
    %v3596 = vadd.f32 %v3227, %v3582
    %v3597 = vadd.f32 %v3232, %v3587
    %3598 = vst.msk [vmem:[#allocation6] sm:$0xff] %vm67, %v3590
    %3599 = vst.msk [vmem:[#allocation6 + $0x8] sm:$0xff] %vm67, %v3591
    %3600 = vst.msk [vmem:[#allocation6 + $0x10] sm:$0xff] %vm67, %v3592
    %3601 = vst.msk [vmem:[#allocation6 + $0x18] sm:$0xff] %vm67, %v3593
    %3602 = vst.msk [vmem:[#allocation6 + $0x60] sm:$0xff] %vm67, %v3594
    %3603 = vst.msk [vmem:[#allocation6 + $0x68] sm:$0xff] %vm67, %v3595
    %3604 = vst.msk [vmem:[#allocation6 + $0x70] sm:$0xff] %vm67, %v3596
    %3605 = vst.msk [vmem:[#allocation6 + $0x78] sm:$0xff] %vm67, %v3597
    %3614 = vrot.lane.b32.xlu0 %v3590, 96
    %v3615 = vpop.permute.xlu0 %3614
    %3616 = vrot.lane.b32.xlu0 %v3591, 96
    %v3617 = vpop.permute.xlu0 %3616
    %3618 = vrot.lane.b32.xlu0 %v3592, 96
    %v3619 = vpop.permute.xlu0 %3618
    %3620 = vrot.lane.b32.xlu0 %v3593, 96
    %v3621 = vpop.permute.xlu0 %3620
    %3622 = vrot.lane.b32.xlu0 %v3594, 96
    %v3623 = vpop.permute.xlu0 %3622
    %3624 = vrot.lane.b32.xlu0 %v3595, 96
    %v3625 = vpop.permute.xlu0 %3624
    %3626 = vrot.lane.b32.xlu0 %v3596, 96
    %v3627 = vpop.permute.xlu0 %3626
    %3628 = vrot.lane.b32.xlu0 %v3597, 96
    %v3629 = vpop.permute.xlu0 %3628
    %s3638 = scalar_lea.vmem [#allocation6], 32
    %3639 = vst.msk [vmem:[%s3638] sm:$0xff] %vm67, %v3615
    %3640 = vst.msk [vmem:[%s3638 + $0x8] sm:$0xff] %vm67, %v3617
    %3641 = vst.msk [vmem:[%s3638 + $0x10] sm:$0xff] %vm67, %v3619
    %3642 = vst.msk [vmem:[%s3638 + $0x18] sm:$0xff] %vm67, %v3621
    %3643 = vst.msk [vmem:[%s3638 + $0x60] sm:$0xff] %vm67, %v3623
    %3644 = vst.msk [vmem:[%s3638 + $0x68] sm:$0xff] %vm67, %v3625
    %3645 = vst.msk [vmem:[%s3638 + $0x70] sm:$0xff] %vm67, %v3627
    %3646 = vst.msk [vmem:[%s3638 + $0x78] sm:$0xff] %vm67, %v3629
    %3647 = vrot.lane.b32.xlu0 %v3590, 64
    %v3648 = vpop.permute.xlu0 %3647
    %3649 = vrot.lane.b32.xlu0 %v3591, 64
    %v3650 = vpop.permute.xlu0 %3649
    %3651 = vrot.lane.b32.xlu0 %v3592, 64
    %v3652 = vpop.permute.xlu0 %3651
    %3653 = vrot.lane.b32.xlu0 %v3593, 64
    %v3654 = vpop.permute.xlu0 %3653
    %3655 = vrot.lane.b32.xlu0 %v3594, 64
    %v3656 = vpop.permute.xlu0 %3655
    %3657 = vrot.lane.b32.xlu0 %v3595, 64
    %v3658 = vpop.permute.xlu0 %3657
    %3659 = vrot.lane.b32.xlu0 %v3596, 64
    %v3660 = vpop.permute.xlu0 %3659
    %3661 = vrot.lane.b32.xlu0 %v3597, 64
    %v3662 = vpop.permute.xlu0 %3661
    %s3671 = scalar_lea.vmem [#allocation6], 64
    %3672 = vst.msk [vmem:[%s3671] sm:$0xff] %vm67, %v3648
    %3673 = vst.msk [vmem:[%s3671 + $0x8] sm:$0xff] %vm67, %v3650
    %3674 = vst.msk [vmem:[%s3671 + $0x10] sm:$0xff] %vm67, %v3652
    %3675 = vst.msk [vmem:[%s3671 + $0x18] sm:$0xff] %vm67, %v3654
    %3676 = vst.msk [vmem:[%s3671 + $0x60] sm:$0xff] %vm67, %v3656
    %3677 = vst.msk [vmem:[%s3671 + $0x68] sm:$0xff] %vm67, %v3658
    %3678 = vst.msk [vmem:[%s3671 + $0x70] sm:$0xff] %vm67, %v3660
    %3679 = vst.msk [vmem:[%s3671 + $0x78] sm:$0xff] %vm67, %v3662
    // Predicated region
    $region42: #{decoder_forward.1} parent=1 // pred_check
      _
    $region43: #{decoder_forward.1} parent=1 // pred_check_branch
      %3681 = sbr.rel (0) target = $region45
    $region44: #{decoder_forward.1} parent=1 // pred_region
      %s3683 = ssub.s32 3072, 3072
      %3684 = vsyncadd [#allocation7], %s3683
      %s3685 = sshll.u32 [#allocation6], 4
      %s3686 = int_to_ptr.vmem [resolvable:$true] %s3685
      %3691 = dma.vmem_to_hbm [thread:$0]  %s3686, 3072, %s10, [#allocation7], 128, 128, 8
    $region45: #{decoder_forward.1} parent=1 // pred_fallthru
      _
    // Predicated region
    $region46: #{decoder_forward.1} parent=1 // pred_check
      _
    $region47: #{decoder_forward.1} parent=1 // pred_check_branch
      %3693 = sbr.rel (0) target = $region49
    $region48: #{decoder_forward.1} parent=1 // pred_region
      %3694 = dma.done [#allocation7], 3072
    $region49: #{decoder_forward.1} parent=1 // pred_fallthru
      _
    %3695 = vsyncpa [#allocation7], 1

</llo_original>
